<compile_context>
chip_gen: v5e
topology: v5e:2x2
jax: 0.10.0
libtpu: 0.0.40
codegen_flags: <defaults>
</compile_context>

<pallas_src>
import jax
import jax.numpy as jnp
import numpy as np
from jax.experimental import pallas as pl
from jax.experimental.pallas import tpu as pltpu

FILTERING_SIZE = 50
ENVELOPE_SIZE = 100            # = FILTERING_SIZE * 2
CHANNELS_PER_CHANNEL = 15
BN_EPS = 1e-5


def _round_up(x, m):
    return ((x + m - 1) // m) * m


# ----------------------------------------------------------------------------
# Kernel: one batch tile.  Everything heavy is an MXU matmul.
# ----------------------------------------------------------------------------
def _simple_net_kernel(xw_ref, t1_ref, w3_ref, bl_ref, out_ref):
    """
    xw_ref : (C, BT, W)       windowed input, channel-major (W = 149 on lanes)
    t1_ref : (C, W, 15*P)     banded-Toeplitz conv_filtering weights
    w3_ref : (C, 15*P, OUT)   fused conv_envelope * BN-scale * Linear weights
    bl_ref : (1, OUT)         fused output bias
    out_ref: (BT, OUT)
    """
    num_c = t1_ref.shape[0]
    acc = jnp.zeros(out_ref.shape, jnp.float32)
    # Small static loop over input channels (C is a handful); each iteration is
    # two MXU matmuls + one VPU abs.  Live values: acc (1 vreg) + one yc tile.
    for c in range(num_c):
        xc = xw_ref[c]                                                # (BT, W)
        yc = jnp.dot(xc, t1_ref[c],                                   # (BT, 15*P)
                     preferred_element_type=jnp.float32)
        acc = acc + jnp.dot(jnp.abs(yc), w3_ref[c],                   # (BT, OUT)
                            preferred_element_type=jnp.float32)
    out_ref[...] = acc + bl_ref[...]


# ----------------------------------------------------------------------------
# Parameter-only preprocessing (done once in the wrapper, pure weight math).
# ----------------------------------------------------------------------------
def _build_fused_params(w1, w2, b2, wl, bl, running_mean, running_var, num_channels):
    C = num_channels
    CPC = CHANNELS_PER_CHANNEL
    K1, K2 = FILTERING_SIZE, ENVELOPE_SIZE
    P = K2                               # conv_filtering positions actually needed
    W = K1 + K2 - 1                      # 149-sample input window
    out_ch = wl.shape[0]

    w1 = w1.astype(jnp.float32).reshape(C, CPC, K1)   # group c owns rows c*15..c*15+14
    w2 = w2.astype(jnp.float32).reshape(C, CPC, K2)
    b2 = b2.astype(jnp.float32)
    wl = wl.astype(jnp.float32)
    bl = bl.astype(jnp.float32)
    rm = running_mean.astype(jnp.float32)
    rv = running_var.astype(jnp.float32)

    # Banded Toeplitz expansion of conv_filtering:
    #   T1[c, t, j*P + p] = w1[c, j, t - p]   if 0 <= t - p < K1 else 0
    # so that (x_window[c] @ T1[c])[b, j*P + p] = sum_k x[b, c, p + k] * w1[c, j, k]
    t_idx = jnp.arange(W)[:, None]
    p_idx = jnp.arange(P)[None, :]
    k_idx = t_idx - p_idx                                            # (W, P)
    valid = (k_idx >= 0) & (k_idx < K1)
    tap = w1[:, :, jnp.clip(k_idx, 0, K1 - 1)]                       # (C, CPC, W, P)
    T1 = jnp.where(valid[None, None], tap, 0.0)
    T1 = jnp.transpose(T1, (0, 2, 1, 3)).reshape(C, W, CPC * P)      # (C, 149, 1500)

    # Fold eval-mode BatchNorm1d(affine=False) + final Linear:
    #   out = ((feat_raw + b2 - rm) * inv_std) @ wl.T + bl
    inv_std = 1.0 / jnp.sqrt(rv + BN_EPS)                            # (OC,)
    wlt_eff = wl.T * inv_std[:, None]                                # (OC, out_ch)
    bias_eff = bl + ((b2 - rm) * inv_std) @ wl.T                     # (out_ch,)

    # Fuse conv_envelope weights with the BN-scaled Linear:
    #   W3[c, j*P + p, o] = w2[c, j, p] * wlt_eff[c*CPC + j, o]
    wlt_g = wlt_eff.reshape(C, CPC, out_ch)
    W3 = (w2[:, :, :, None] * wlt_g[:, :, None, :]).reshape(C, CPC * P, out_ch)

    return T1, W3, bias_eff.reshape(1, out_ch)


# ----------------------------------------------------------------------------
# Wrapper
# ----------------------------------------------------------------------------
def simple_net_forward(x, params, lag_backward, lag_forward, *, b_tile=None):
    """x: (B, T, C) float, same layout as the PyTorch module's `inputs`.

    params = (w1, w2, b2, wl, bl, running_mean, running_var) with PyTorch shapes:
      w1: (15*C, 50)   conv_filtering.weight.squeeze(1)
      w2: (15*C, 100)  conv_envelope.weight.squeeze(1)
      b2: (15*C,)      conv_envelope.bias
      wl: (out, 15*C)  wights_second.weight       bl: (out,) wights_second.bias
      running_mean / running_var: (15*C,) features_batchnorm running statistics.
    """
    w1, w2, b2, wl, bl, rm, rv = params
    B, T, C = x.shape
    out_ch = wl.shape[0]
    W = FILTERING_SIZE + ENVELOPE_SIZE - 1            # 149
    L2 = T - W + 1                                    # conv_envelope output length
    assert L2 >= 1, "need at least 149 time samples"

    # Same middle-point arithmetic as the PyTorch module (static python int).
    middle_point_share = lag_backward * 1.0 / (lag_backward + lag_forward)
    middle_point = int((L2 - 1) * middle_point_share)

    # Only x[:, middle_point : middle_point + 149, :] contributes to the output.
    # Channel-major (C, B, W): channels on the leading (cheaply indexed) axis,
    # time (149) on the lane axis.
    xw = jnp.transpose(x[:, middle_point:middle_point + W, :], (2, 0, 1))
    xw = xw.astype(jnp.float32)
    # (Optional on v6e/v7x: cast xw/T1 to bf16 to halve load pressure; kept f32
    #  here for exact parity with the reference and v5e friendliness.)

    if b_tile is None:
        b_tile = min(128, _round_up(B, 8))
    b_tile = _round_up(b_tile, 8)                     # keep sublane tiling dense
    Bp = _round_up(B, b_tile)
    if Bp != B:
        xw = jnp.pad(xw, ((0, 0), (0, Bp - B), (0, 0)))

    T1, W3, bias_eff = _build_fused_params(w1, w2, b2, wl, bl, rm, rv, C)
    P15 = CHANNELS_PER_CHANNEL * ENVELOPE_SIZE        # 1500

    # VMEM per grid step (double-buffered): 2*(T1 ~3.6MB + W3 ~72KB + input tile)
    # + small intermediates  ->  ~7.5 MB, well inside the 32 MiB default scoped
    # limit (and v7x's 64 MiB physical VMEM), even with b_tile up to 128.
    out = pl.pallas_call(
        _simple_net_kernel,
        grid=(Bp // b_tile,),
        in_specs=[
            # batch-tiled input window
            pl.BlockSpec((C, b_tile, W), lambda i: (0, i, 0)),
            # fused weights: constant index_map -> DMA'd once, resident in VMEM
            pl.BlockSpec((C, W, P15), lambda i: (0, 0, 0)),
            pl.BlockSpec((C, P15, out_ch), lambda i: (0, 0, 0)),
            pl.BlockSpec((1, out_ch), lambda i: (0, 0)),
        ],
        out_specs=pl.BlockSpec((b_tile, out_ch), lambda i: (i, 0)),
        out_shape=jax.ShapeDtypeStruct((Bp, out_ch), jnp.float32),
        compiler_params=pltpu.CompilerParams(
            dimension_semantics=("parallel",),
        ),
    )(xw, T1, W3, bias_eff)
    return out[:B]


# ----------------------------------------------------------------------------
# Pure-JAX reference (direct transcription of the PyTorch eval-mode forward).
# ----------------------------------------------------------------------------
def simple_net_reference(x, params, lag_backward, lag_forward):
    w1, w2, b2, wl, bl, rm, rv = params
    xt = jnp.transpose(x, (0, 2, 1)).astype(jnp.float32)            # (B, C, T)
    B, C, T = xt.shape
    # grouped conv_filtering: output channel oc filters input channel oc // 15
    xg = jnp.repeat(xt, CHANNELS_PER_CHANNEL, axis=1)               # (B, OC, T)
    L1 = T - FILTERING_SIZE + 1
    y1 = jnp.zeros((B, xg.shape[1], L1), jnp.float32)
    for k in range(FILTERING_SIZE):
        y1 = y1 + xg[:, :, k:k + L1] * w1[None, :, k, None]
    y1 = jnp.abs(y1)                                                # leaky_relu(slope=-1)
    L2 = L1 - ENVELOPE_SIZE + 1
    y2 = jnp.zeros((B, xg.shape[1], L2), jnp.float32)
    for k in range(ENVELOPE_SIZE):
        y2 = y2 + y1[:, :, k:k + L2] * w2[None, :, k, None]
    y2 = y2 + b2[None, :, None]
    middle_point = int((L2 - 1) * (lag_backward * 1.0 / (lag_backward + lag_forward)))
    feat = y2[:, :, middle_point]                                   # (B, OC)
    feat = (feat - rm[None, :]) / jnp.sqrt(rv[None, :] + BN_EPS)    # BN eval
    # Dropout(p=0.8) is identity in eval mode.
    return feat @ wl.T + bl[None, :]


if __name__ == "__main__":
    # Small shapes consistent with the module: in_channels=4, output_channels=3,
    # lag_backward = lag_forward = 80  =>  T = 161 samples, conv output length 13.
    B, C, out_ch = 12, 4, 3
    lag_backward, lag_forward = 80, 80
    T = lag_backward + lag_forward + 1
    OC = CHANNELS_PER_CHANNEL * C                    # 60 == final_out_features

    key = jax.random.PRNGKey(0)
    ks = jax.random.split(key, 8)
    x = jax.random.normal(ks[0], (B, T, C), jnp.float32)
    w1 = jax.random.normal(ks[1], (OC, FILTERING_SIZE), jnp.float32) * 0.1
    w2 = jax.random.normal(ks[2], (OC, ENVELOPE_SIZE), jnp.float32) * 0.1
    b2 = jax.random.normal(ks[3], (OC,), jnp.float32) * 0.1
    wl = jax.random.normal(ks[4], (out_ch, OC), jnp.float32) * 0.1
    bl = jax.random.normal(ks[5], (out_ch,), jnp.float32) * 0.1
    rm = jax.random.normal(ks[6], (OC,), jnp.float32) * 0.05                  # BN running_mean
    rv = 1.0 + 0.1 * jnp.abs(jax.random.normal(ks[7], (OC,), jnp.float32))    # BN running_var

    params = (w1, w2, b2, wl, bl, rm, rv)

    # b_tile=8 with B=12 exercises the batch grid (2 tiles) + tail padding.
    out = simple_net_forward(x, params, lag_backward, lag_forward, b_tile=8)
    out = jax.block_until_ready(out)
    assert out.shape == (B, out_ch)

    ref = jax.block_until_ready(simple_net_reference(x, params, lag_backward, lag_forward))
    # Loose tolerance: MXU matmul accumulation order differs from the VPU reference.
    np.testing.assert_allclose(np.asarray(out), np.asarray(ref), rtol=5e-2, atol=5e-2)

    print("KERNEL_OK")
</pallas_src>

<mosaic_0001>
module attributes {stable_mosaic.version = 11 : i64} {
  func.func @_simple_net_kernel(%arg0: i32, %arg1: memref<4x8x149xf32, #tpu.memory_space<vmem>>, %arg2: memref<4x149x1500xf32, #tpu.memory_space<vmem>>, %arg3: memref<4x1500x3xf32, #tpu.memory_space<vmem>>, %arg4: memref<1x3xf32, #tpu.memory_space<vmem>>, %arg5: memref<8x3xf32, #tpu.memory_space<vmem>>) attributes {dimension_semantics = [#tpu.dimension_semantics<parallel>], iteration_bounds = array<i64: 2>, scalar_prefetch = 0 : i64, scratch_operands = 0 : i64, tpu.core_type = #tpu.core_type<tc>, window_params = [{transform_indices = @transform_0, window_bounds = array<i64: 4, 8, 149>}, {pipeline_mode = #tpu.pipeline_mode<synchronous>, transform_indices = @transform_1, window_bounds = array<i64: 4, 149, 1500>}, {pipeline_mode = #tpu.pipeline_mode<synchronous>, transform_indices = @transform_2, window_bounds = array<i64: 4, 1500, 3>}, {pipeline_mode = #tpu.pipeline_mode<synchronous>, transform_indices = @transform_3, window_bounds = array<i64: 1, 3>}, {transform_indices = @transform_4, window_bounds = array<i64: 8, 3>}]} {
    %cst = arith.constant 0.000000e+00 : f32
    %0 = vector.broadcast %cst : f32 to vector<8x3xf32>
    %c0 = arith.constant 0 : index
    %c0_0 = arith.constant 0 : index
    %c0_1 = arith.constant 0 : index
    %1 = vector.load %arg1[%c0, %c0_0, %c0_1] : memref<4x8x149xf32, #tpu.memory_space<vmem>>, vector<1x8x149xf32>
    %2 = vector.shape_cast %1 : vector<1x8x149xf32> to vector<8x149xf32>
    %c0_2 = arith.constant 0 : index
    %c0_3 = arith.constant 0 : index
    %c0_4 = arith.constant 0 : index
    %3 = vector.load %arg2[%c0_2, %c0_3, %c0_4] : memref<4x149x1500xf32, #tpu.memory_space<vmem>>, vector<1x149x1500xf32>
    %4 = vector.shape_cast %3 : vector<1x149x1500xf32> to vector<149x1500xf32>
    %cst_5 = arith.constant dense<0.000000e+00> : vector<8x1500xf32>
    %5 = tpu.matmul %2, %4, %cst_5 {dimension_numbers = #tpu.dot_dimension_numbers<[1], [0], [0], [1], [0, 0, 1, 1], [], []>} : vector<8x149xf32>, vector<149x1500xf32>, vector<8x1500xf32> -> vector<8x1500xf32>
    %6 = math.absf %5 : vector<8x1500xf32>
    %c0_6 = arith.constant 0 : index
    %c0_7 = arith.constant 0 : index
    %c0_8 = arith.constant 0 : index
    %7 = vector.load %arg3[%c0_6, %c0_7, %c0_8] : memref<4x1500x3xf32, #tpu.memory_space<vmem>>, vector<1x1500x3xf32>
    %8 = vector.shape_cast %7 : vector<1x1500x3xf32> to vector<1500x3xf32>
    %cst_9 = arith.constant dense<0.000000e+00> : vector<8x3xf32>
    %9 = tpu.matmul %6, %8, %cst_9 {dimension_numbers = #tpu.dot_dimension_numbers<[1], [0], [0], [1], [0, 0, 1, 1], [], []>} : vector<8x1500xf32>, vector<1500x3xf32>, vector<8x3xf32> -> vector<8x3xf32>
    %10 = arith.addf %0, %9 : vector<8x3xf32>
    %c1 = arith.constant 1 : index
    %c0_10 = arith.constant 0 : index
    %c0_11 = arith.constant 0 : index
    %11 = vector.load %arg1[%c1, %c0_10, %c0_11] : memref<4x8x149xf32, #tpu.memory_space<vmem>>, vector<1x8x149xf32>
    %12 = vector.shape_cast %11 : vector<1x8x149xf32> to vector<8x149xf32>
    %c1_12 = arith.constant 1 : index
    %c0_13 = arith.constant 0 : index
    %c0_14 = arith.constant 0 : index
    %13 = vector.load %arg2[%c1_12, %c0_13, %c0_14] : memref<4x149x1500xf32, #tpu.memory_space<vmem>>, vector<1x149x1500xf32>
    %14 = vector.shape_cast %13 : vector<1x149x1500xf32> to vector<149x1500xf32>
    %cst_15 = arith.constant dense<0.000000e+00> : vector<8x1500xf32>
    %15 = tpu.matmul %12, %14, %cst_15 {dimension_numbers = #tpu.dot_dimension_numbers<[1], [0], [0], [1], [0, 0, 1, 1], [], []>} : vector<8x149xf32>, vector<149x1500xf32>, vector<8x1500xf32> -> vector<8x1500xf32>
    %16 = math.absf %15 : vector<8x1500xf32>
    %c1_16 = arith.constant 1 : index
    %c0_17 = arith.constant 0 : index
    %c0_18 = arith.constant 0 : index
    %17 = vector.load %arg3[%c1_16, %c0_17, %c0_18] : memref<4x1500x3xf32, #tpu.memory_space<vmem>>, vector<1x1500x3xf32>
    %18 = vector.shape_cast %17 : vector<1x1500x3xf32> to vector<1500x3xf32>
    %cst_19 = arith.constant dense<0.000000e+00> : vector<8x3xf32>
    %19 = tpu.matmul %16, %18, %cst_19 {dimension_numbers = #tpu.dot_dimension_numbers<[1], [0], [0], [1], [0, 0, 1, 1], [], []>} : vector<8x1500xf32>, vector<1500x3xf32>, vector<8x3xf32> -> vector<8x3xf32>
    %20 = arith.addf %10, %19 : vector<8x3xf32>
    %c2 = arith.constant 2 : index
    %c0_20 = arith.constant 0 : index
    %c0_21 = arith.constant 0 : index
    %21 = vector.load %arg1[%c2, %c0_20, %c0_21] : memref<4x8x149xf32, #tpu.memory_space<vmem>>, vector<1x8x149xf32>
    %22 = vector.shape_cast %21 : vector<1x8x149xf32> to vector<8x149xf32>
    %c2_22 = arith.constant 2 : index
    %c0_23 = arith.constant 0 : index
    %c0_24 = arith.constant 0 : index
    %23 = vector.load %arg2[%c2_22, %c0_23, %c0_24] : memref<4x149x1500xf32, #tpu.memory_space<vmem>>, vector<1x149x1500xf32>
    %24 = vector.shape_cast %23 : vector<1x149x1500xf32> to vector<149x1500xf32>
    %cst_25 = arith.constant dense<0.000000e+00> : vector<8x1500xf32>
    %25 = tpu.matmul %22, %24, %cst_25 {dimension_numbers = #tpu.dot_dimension_numbers<[1], [0], [0], [1], [0, 0, 1, 1], [], []>} : vector<8x149xf32>, vector<149x1500xf32>, vector<8x1500xf32> -> vector<8x1500xf32>
    %26 = math.absf %25 : vector<8x1500xf32>
    %c2_26 = arith.constant 2 : index
    %c0_27 = arith.constant 0 : index
    %c0_28 = arith.constant 0 : index
    %27 = vector.load %arg3[%c2_26, %c0_27, %c0_28] : memref<4x1500x3xf32, #tpu.memory_space<vmem>>, vector<1x1500x3xf32>
    %28 = vector.shape_cast %27 : vector<1x1500x3xf32> to vector<1500x3xf32>
    %cst_29 = arith.constant dense<0.000000e+00> : vector<8x3xf32>
    %29 = tpu.matmul %26, %28, %cst_29 {dimension_numbers = #tpu.dot_dimension_numbers<[1], [0], [0], [1], [0, 0, 1, 1], [], []>} : vector<8x1500xf32>, vector<1500x3xf32>, vector<8x3xf32> -> vector<8x3xf32>
    %30 = arith.addf %20, %29 : vector<8x3xf32>
    %c3 = arith.constant 3 : index
    %c0_30 = arith.constant 0 : index
    %c0_31 = arith.constant 0 : index
    %31 = vector.load %arg1[%c3, %c0_30, %c0_31] : memref<4x8x149xf32, #tpu.memory_space<vmem>>, vector<1x8x149xf32>
    %32 = vector.shape_cast %31 : vector<1x8x149xf32> to vector<8x149xf32>
    %c3_32 = arith.constant 3 : index
    %c0_33 = arith.constant 0 : index
    %c0_34 = arith.constant 0 : index
    %33 = vector.load %arg2[%c3_32, %c0_33, %c0_34] : memref<4x149x1500xf32, #tpu.memory_space<vmem>>, vector<1x149x1500xf32>
    %34 = vector.shape_cast %33 : vector<1x149x1500xf32> to vector<149x1500xf32>
    %cst_35 = arith.constant dense<0.000000e+00> : vector<8x1500xf32>
    %35 = tpu.matmul %32, %34, %cst_35 {dimension_numbers = #tpu.dot_dimension_numbers<[1], [0], [0], [1], [0, 0, 1, 1], [], []>} : vector<8x149xf32>, vector<149x1500xf32>, vector<8x1500xf32> -> vector<8x1500xf32>
    %36 = math.absf %35 : vector<8x1500xf32>
    %c3_36 = arith.constant 3 : index
    %c0_37 = arith.constant 0 : index
    %c0_38 = arith.constant 0 : index
    %37 = vector.load %arg3[%c3_36, %c0_37, %c0_38] : memref<4x1500x3xf32, #tpu.memory_space<vmem>>, vector<1x1500x3xf32>
    %38 = vector.shape_cast %37 : vector<1x1500x3xf32> to vector<1500x3xf32>
    %cst_39 = arith.constant dense<0.000000e+00> : vector<8x3xf32>
    %39 = tpu.matmul %36, %38, %cst_39 {dimension_numbers = #tpu.dot_dimension_numbers<[1], [0], [0], [1], [0, 0, 1, 1], [], []>} : vector<8x1500xf32>, vector<1500x3xf32>, vector<8x3xf32> -> vector<8x3xf32>
    %40 = arith.addf %30, %39 : vector<8x3xf32>
    %c0_40 = arith.constant 0 : index
    %c0_41 = arith.constant 0 : index
    %41 = vector.load %arg4[%c0_40, %c0_41] : memref<1x3xf32, #tpu.memory_space<vmem>>, vector<1x3xf32>
    %42 = vector.broadcast %41 : vector<1x3xf32> to vector<8x3xf32>
    %43 = arith.addf %40, %42 : vector<8x3xf32>
    %c0_42 = arith.constant 0 : index
    %c0_43 = arith.constant 0 : index
    %44 = vector.load %arg5[%c0_42, %c0_43] : memref<8x3xf32, #tpu.memory_space<vmem>>, vector<8x3xf32>
    tpu.vector_store %arg5[%c0_42, %c0_43], %43 {strides = array<i32>} : memref<8x3xf32, #tpu.memory_space<vmem>>, vector<8x3xf32>,
    return
  }
  func.func @transform_0(%arg0: i32) -> (i32, i32, i32) {
    %c0_i32 = arith.constant 0 : i32
    %c0_i32_0 = arith.constant 0 : i32
    %c0_i32_1 = arith.constant 0 : i32
    return %c0_i32, %arg0, %c0_i32_0 : i32, i32, i32
  }
  func.func @transform_1(%arg0: i32) -> (i32, i32, i32) {
    %c0_i32 = arith.constant 0 : i32
    %c0_i32_0 = arith.constant 0 : i32
    %c0_i32_1 = arith.constant 0 : i32
    %c0_i32_2 = arith.constant 0 : i32
    return %c0_i32, %c0_i32_0, %c0_i32_1 : i32, i32, i32
  }
  func.func @transform_2(%arg0: i32) -> (i32, i32, i32) {
    %c0_i32 = arith.constant 0 : i32
    %c0_i32_0 = arith.constant 0 : i32
    %c0_i32_1 = arith.constant 0 : i32
    %c0_i32_2 = arith.constant 0 : i32
    return %c0_i32, %c0_i32_0, %c0_i32_1 : i32, i32, i32
  }
  func.func @transform_3(%arg0: i32) -> (i32, i32) {
    %c0_i32 = arith.constant 0 : i32
    %c0_i32_0 = arith.constant 0 : i32
    %c0_i32_1 = arith.constant 0 : i32
    return %c0_i32, %c0_i32_0 : i32, i32
  }
  func.func @transform_4(%arg0: i32) -> (i32, i32) {
    %c0_i32 = arith.constant 0 : i32
    %c0_i32_0 = arith.constant 0 : i32
    return %arg0, %c0_i32 : i32, i32
  }
}

</mosaic_0001>

<llo_original>
// kernel: tpu_custom_call.1
$region0: #{tpu_custom_call.1}
  #allocation0 [shape = 'u32[]', space=smem, size = 0x4, offset = 0x4, fixed_abs, tag = 'smem constant byte address 0x4 - core index']
  #allocation1 [shape = 'u32[72,128]{1,0:T(1,128)}', space=vmem, size = 0x9000, scoped, tag = 'internal scratch']
  %s0 = inlined_call_operand.vmem [shape: f32[4,16,149], index: 0, kind: input, shape index: {}]
  %s1 = inlined_call_operand.vmem [shape: f32[4,149,1500], index: 1, kind: input, shape index: {}]
  %s2 = inlined_call_operand.vmem [shape: f32[4,1500,3], index: 2, kind: input, shape index: {}]
  %s3 = inlined_call_operand.vmem [shape: f32[1,3], index: 3, kind: input, shape index: {}]
  %s4 = inlined_call_operand.vmem [shape: f32[16,3], index: 4, kind: output, shape index: {}]
  %s5 = sld [smem:[#allocation0]]
  $region72: #{tpu_custom_call.1} parent=0
    _
  %s7 = ssub.s32 1, %s5
  %s8 = scalar_select 0, %s7, %s5
  $region1: #{tpu_custom_call.1} parent=0
    #allocation2 [shape = 'u8[65536]{0}', space=vmem, size = 0x10000, scoped, tag = 'input window, operand 0']
    loop: start=0, step=1, limit=4
    $region2: #{tpu_custom_call.1} parent=1 // loop_pre_header
      _
    $region3: #{tpu_custom_call.1} parent=1 // loop_header
      %s10 = sphi 0, %s14
      %p11 = scmp.ge.s32.totalorder %s10, 4
      %s20 = sphi 0, %s22
      %s23 = sphi 0, %s20
      %s24 = sphi 0, %s23
      %s40 = sphi 0, %s24
      %s44 = sphi 0, %s44
      %s46 = sphi 0, %s44
      %s47 = sphi 0, %s46
      %s61 = sphi 0, %s47
      %s65 = sphi 0, %s65
      %s67 = sphi 0, %s65
      %s68 = sphi 0, %s67
      %s82 = sphi 0, %s68
      %s86 = sphi 0, %s86
      %s88 = sphi 0, %s86
      %s89 = sphi 0, %s88
      %s103 = sphi 0, %s89
      %s109 = sphi 0, %s111
      %s112 = sphi 0, %s109
      %s113 = sphi 0, %s112
      %s129 = sphi 0, %s113
    $region4: #{tpu_custom_call.1} parent=1 // loop_header_branch
      %13 = sbr.rel (%p11) target = $region8
    $region5: #{tpu_custom_call.1} parent=1 // loop_body
      %s15 = ssub.s32 %s10, 1
      %s16 = ssub.s32 %s10, 2
      %s17 = sadd.s32 %s10, 1
      %s18 = ssub.s32 %s10, %s17
      %p19 = scmp.eq.s32.totalorder %s18, 0
      %s21 = sadd.s32 %s20, 1
      %s22 = scalar_select %p19, %s20, %s21
      %p25 = pneg %p19
      %p26 = scmp.eq.s32.totalorder %s10, 1
      %p27 = por %p25, %p26
      %p28 = scmp.ne.s32.totalorder %s20, %s23
      %p29 = scmp.eq.s32.totalorder %s10, 0
      %p30 = por %p28, %p29
      %p31 = scmp.ne.s32.totalorder %s20, %s23
      %p32 = scmp.eq.s32.totalorder %s15, 1
      %p33 = por %p31, %p32
      %p34 = scmp.ne.s32.totalorder %s23, %s24
      %p35 = scmp.eq.s32.totalorder %s15, 0
      %p36 = por %p34, %p35
      %p37 = scmp.ne.s32.totalorder %s23, %s24
      %p38 = scmp.eq.s32.totalorder %s16, 1
      %p39 = por %p37, %p38
      %p41 = scmp.ne.s32.totalorder %s24, %s40
      %p42 = scmp.eq.s32.totalorder %s16, 0
      %p43 = por %p41, %p42
      %s45 = sadd.s32 %s44, 1
      %p48 = scmp.eq.s32.totalorder %s10, 1
      %p49 = scmp.ne.s32.totalorder %s44, %s46
      %p50 = scmp.eq.s32.totalorder %s10, 0
      %p51 = por %p49, %p50
      %p52 = scmp.ne.s32.totalorder %s44, %s46
      %p53 = scmp.eq.s32.totalorder %s15, 1
      %p54 = por %p52, %p53
      %p55 = scmp.ne.s32.totalorder %s46, %s47
      %p56 = scmp.eq.s32.totalorder %s15, 0
      %p57 = por %p55, %p56
      %p58 = scmp.ne.s32.totalorder %s46, %s47
      %p59 = scmp.eq.s32.totalorder %s16, 1
      %p60 = por %p58, %p59
      %p62 = scmp.ne.s32.totalorder %s47, %s61
      %p63 = scmp.eq.s32.totalorder %s16, 0
      %p64 = por %p62, %p63
      %s66 = sadd.s32 %s65, 1
      %p69 = scmp.eq.s32.totalorder %s10, 1
      %p70 = scmp.ne.s32.totalorder %s65, %s67
      %p71 = scmp.eq.s32.totalorder %s10, 0
      %p72 = por %p70, %p71
      %p73 = scmp.ne.s32.totalorder %s65, %s67
      %p74 = scmp.eq.s32.totalorder %s15, 1
      %p75 = por %p73, %p74
      %p76 = scmp.ne.s32.totalorder %s67, %s68
      %p77 = scmp.eq.s32.totalorder %s15, 0
      %p78 = por %p76, %p77
      %p79 = scmp.ne.s32.totalorder %s67, %s68
      %p80 = scmp.eq.s32.totalorder %s16, 1
      %p81 = por %p79, %p80
      %p83 = scmp.ne.s32.totalorder %s68, %s82
      %p84 = scmp.eq.s32.totalorder %s16, 0
      %p85 = por %p83, %p84
      %s87 = sadd.s32 %s86, 1
      %p90 = scmp.eq.s32.totalorder %s10, 1
      %p91 = scmp.ne.s32.totalorder %s86, %s88
      %p92 = scmp.eq.s32.totalorder %s10, 0
      %p93 = por %p91, %p92
      %p94 = scmp.ne.s32.totalorder %s86, %s88
      %p95 = scmp.eq.s32.totalorder %s15, 1
      %p96 = por %p94, %p95
      %p97 = scmp.ne.s32.totalorder %s88, %s89
      %p98 = scmp.eq.s32.totalorder %s15, 0
      %p99 = por %p97, %p98
      %p100 = scmp.ne.s32.totalorder %s88, %s89
      %p101 = scmp.eq.s32.totalorder %s16, 1
      %p102 = por %p100, %p101
      %p104 = scmp.ne.s32.totalorder %s89, %s103
      %p105 = scmp.eq.s32.totalorder %s16, 0
      %p106 = por %p104, %p105
      %s107 = ssub.s32 %s10, %s17
      %p108 = scmp.eq.s32.totalorder %s107, 0
      %s110 = sadd.s32 %s109, 1
      %s111 = scalar_select %p108, %s109, %s110
      %p114 = pneg %p108
      %p115 = scmp.eq.s32.totalorder %s10, 1
      %p116 = por %p114, %p115
      %p117 = scmp.ne.s32.totalorder %s109, %s112
      %p118 = scmp.eq.s32.totalorder %s10, 0
      %p119 = por %p117, %p118
      %p120 = scmp.ne.s32.totalorder %s109, %s112
      %p121 = scmp.eq.s32.totalorder %s15, 1
      %p122 = por %p120, %p121
      %p123 = scmp.ne.s32.totalorder %s112, %s113
      %p124 = scmp.eq.s32.totalorder %s15, 0
      %p125 = por %p123, %p124
      %p126 = scmp.ne.s32.totalorder %s112, %s113
      %p127 = scmp.eq.s32.totalorder %s16, 1
      %p128 = por %p126, %p127
      %p130 = scmp.ne.s32.totalorder %s113, %s129
      %p131 = scmp.eq.s32.totalorder %s16, 0
      %p132 = por %p130, %p131
      %p133 = scmp.le.s32.totalorder 1, %s10
      %p134 = scmp.lt.s32.totalorder %s10, 3
      %p135 = pnand %p133, %p134
      %p136 = pneg %p135
      // Predicated region
      $region9: #{tpu_custom_call.1} parent=5 // pred_check
        _
      $region10: #{tpu_custom_call.1} parent=5 // pred_check_branch
        %138 = sbr.rel (%p135) target = $region12
      $region11: #{tpu_custom_call.1} parent=5 // pred_region
        %s139 = ssub.s32 %s10, 1
        // Predicated region
        $region13: #{tpu_custom_call.1} parent=11 // pred_check
          %p140 = pneg %p57
        $region14: #{tpu_custom_call.1} parent=11 // pred_check_branch
          %142 = sbr.rel (%p140) target = $region16
        $region15: #{tpu_custom_call.1} parent=11 // pred_region
          _
        $region16: #{tpu_custom_call.1} parent=11 // pred_fallthru
          _
        // Predicated region
        $region17: #{tpu_custom_call.1} parent=11 // pred_check
          %p143 = pneg %p78
        $region18: #{tpu_custom_call.1} parent=11 // pred_check_branch
          %145 = sbr.rel (%p143) target = $region20
        $region19: #{tpu_custom_call.1} parent=11 // pred_region
          _
        $region20: #{tpu_custom_call.1} parent=11 // pred_fallthru
          _
        // Predicated region
        $region21: #{tpu_custom_call.1} parent=11 // pred_check
          %p146 = pneg %p99
        $region22: #{tpu_custom_call.1} parent=11 // pred_check_branch
          %148 = sbr.rel (%p146) target = $region24
        $region23: #{tpu_custom_call.1} parent=11 // pred_region
          _
        $region24: #{tpu_custom_call.1} parent=11 // pred_fallthru
          _
      $region12: #{tpu_custom_call.1} parent=5 // pred_fallthru
        _
      %p149 = scmp.lt.s32.totalorder %s10, 2
      // Predicated region
      $region25: #{tpu_custom_call.1} parent=5 // pred_check
        %p150 = pneg %p149
      $region26: #{tpu_custom_call.1} parent=5 // pred_check_branch
        %152 = sbr.rel (%p150) target = $region28
      $region27: #{tpu_custom_call.1} parent=5 // pred_region
        // Predicated region
        $region29: #{tpu_custom_call.1} parent=27 // pred_check
          %p153 = pneg %p30
        $region30: #{tpu_custom_call.1} parent=27 // pred_check_branch
          %155 = sbr.rel (%p153) target = $region32
        $region31: #{tpu_custom_call.1} parent=27 // pred_region
          %s156 = sand.u32 %s20, 1
          %s157 = sand.u32 %s20, 1
          %s158 = smul.addr %s157, 64
          %s159 = scalar_lea.vmem [#allocation2], %s158
          %s160 = smul.addr %s10, 2
          %s161 = smul.addr %s160, 8
          %s162 = scalar_lea.vmem %s0, %s161
          // Predicated region
          $region33: #{tpu_custom_call.1} parent=31 // pred_check
            _
          $region34: #{tpu_custom_call.1} parent=31 // pred_check_branch
            %164 = sbr.rel (0) target = $region36
          $region35: #{tpu_custom_call.1} parent=31 // pred_region
            // Predicated region
            $region37: #{tpu_custom_call.1} parent=35 // pred_check
              _
            $region38: #{tpu_custom_call.1} parent=35 // pred_check_branch
              %166 = sbr.rel (0) target = $region40
            $region39: #{tpu_custom_call.1} parent=35 // pred_region
              loop: start=0, step=1, limit=1
              $region41: #{tpu_custom_call.1} parent=39 // loop_pre_header
                _
              $region42: #{tpu_custom_call.1} parent=39 // loop_header
                %s168 = sphi 0, %s172
                %p169 = scmp.ge.s32.totalorder %s168, 1
                %s173 = sphi %s162, %s162
                %s174 = sphi %s159, %s159
              $region43: #{tpu_custom_call.1} parent=39 // loop_header_branch
                %171 = sbr.rel (%p169) target = $region47
              $region44: #{tpu_custom_call.1} parent=39 // loop_body
                %v175 = vld [vmem:[%s173] sm:$0xff]
                %176 = vst [vmem:[%s174] sm:$0xff] %v175
                %v177 = vld [vmem:[%s173 + $0x8] sm:$0xff]
                %178 = vst [vmem:[%s174 + $0x8] sm:$0xff] %v177
                %v179 = vld [vmem:[%s173 + $0x20] sm:$0xff]
                %180 = vst [vmem:[%s174 + $0x10] sm:$0xff] %v179
                %v181 = vld [vmem:[%s173 + $0x28] sm:$0xff]
                %182 = vst [vmem:[%s174 + $0x18] sm:$0xff] %v181
                %v183 = vld [vmem:[%s173 + $0x40] sm:$0xff]
                %184 = vst [vmem:[%s174 + $0x20] sm:$0xff] %v183
                %v185 = vld [vmem:[%s173 + $0x48] sm:$0xff]
                %186 = vst [vmem:[%s174 + $0x28] sm:$0xff] %v185
                %v187 = vld [vmem:[%s173 + $0x60] sm:$0xff]
                %188 = vst [vmem:[%s174 + $0x30] sm:$0xff] %v187
                %v189 = vld [vmem:[%s173 + $0x68] sm:$0xff]
                %190 = vst [vmem:[%s174 + $0x38] sm:$0xff] %v189
              $region45: #{tpu_custom_call.1} parent=39 // loop_footer
                %s172 = sadd.s32 1, %s168
              $region46: #{tpu_custom_call.1} parent=39 // loop_footer_branch
                %167 = sbr.rel target = $region42
              $region47: #{tpu_custom_call.1} parent=39 // loop_exit
                _
            $region40: #{tpu_custom_call.1} parent=35 // pred_fallthru
              _
            // Predicated region
            $region48: #{tpu_custom_call.1} parent=35 // pred_check
              _
            $region49: #{tpu_custom_call.1} parent=35 // pred_check_branch
              %192 = sbr.rel target = $region51
            $region50: #{tpu_custom_call.1} parent=35 // pred_region
              _
            $region51: #{tpu_custom_call.1} parent=35 // pred_fallthru
              _
          $region36: #{tpu_custom_call.1} parent=31 // pred_fallthru
            _
          %193 = vnop
        $region32: #{tpu_custom_call.1} parent=27 // pred_fallthru
          _
      $region28: #{tpu_custom_call.1} parent=5 // pred_fallthru
        _
      %p194 = scmp.le.s32.totalorder 1, %s10
      %p195 = scmp.lt.s32.totalorder %s10, 3
      %p196 = pnand %p194, %p195
      %p197 = pneg %p196
      // Predicated region
      $region52: #{tpu_custom_call.1} parent=5 // pred_check
        _
      $region53: #{tpu_custom_call.1} parent=5 // pred_check_branch
        %199 = sbr.rel (%p196) target = $region55
      $region54: #{tpu_custom_call.1} parent=5 // pred_region
        %s200 = ssub.s32 %s10, 1
        %s201 = sand.u32 %s23, 1
        %s202 = sand.u32 %s23, 1
        %s203 = smul.addr %s202, 64
        %s204 = scalar_lea.vmem [#allocation2], %s203
        // Predicated region
        $region56: #{tpu_custom_call.1} parent=54 // pred_check
          %p205 = pneg %p36
        $region57: #{tpu_custom_call.1} parent=54 // pred_check_branch
          %207 = sbr.rel (%p205) target = $region59
        $region58: #{tpu_custom_call.1} parent=54 // pred_region
          _
        $region59: #{tpu_custom_call.1} parent=54 // pred_fallthru
          _
        %s208 = sand.u32 %s23, 1
        %s209 = sand.u32 %s23, 1
        %s210 = smul.addr %s209, 64
        %s211 = scalar_lea.vmem [#allocation2], %s210
        %p212 = pneg %p36
        %p213 = pneg %p33
        %p214 = pneg %p57
        %p215 = pneg %p54
        %p216 = pneg %p78
        %p217 = pneg %p75
        %p218 = pneg %p99
        %p219 = pneg %p96
        %p220 = pneg %p125
        %p221 = pneg %p122
        %p222 = scmp.lt.s32.totalorder %s15, 1
        %s223 = scalar_select %p222, %s15, 1
        %s224 = smul.addr %s223, 8
        %s225 = scalar_lea.vmem %s4, %s224
        %p226 = scmp.lt.s32.totalorder %s15, 1
        %s227 = scalar_select %p226, %s15, 1
        %s228 = smul.addr %s227, 8
        %s229 = scalar_lea.vmem %s4, %s228
        %v230 = vld [vmem:[%s204] sm:$0xff]
        %v231 = vld [vmem:[%s204 + $0x8] sm:$0xff]
        %v232 = vld [vmem:[%s1] sm:$0xff]
        %v233 = vld [vmem:[%s1 + $0x8] sm:$0xff]
        %v234 = vld [vmem:[%s1 + $0x10] sm:$0xff]
        %v235 = vld [vmem:[%s1 + $0x18] sm:$0xff]
        %v236 = vld [vmem:[%s1 + $0x20] sm:$0xff]
        %v237 = vld [vmem:[%s1 + $0x28] sm:$0xff]
        %v238 = vld [vmem:[%s1 + $0x30] sm:$0xff]
        %v239 = vld [vmem:[%s1 + $0x38] sm:$0xff]
        %v240 = vld [vmem:[%s1 + $0x40] sm:$0xff]
        %v241 = vld [vmem:[%s1 + $0x48] sm:$0xff]
        %v242 = vld [vmem:[%s1 + $0x50] sm:$0xff]
        %v243 = vld [vmem:[%s1 + $0x58] sm:$0xff]
        %v244 = vld [vmem:[%s1 + $0x60] sm:$0xff]
        %v245 = vld [vmem:[%s1 + $0x68] sm:$0xff]
        %v246 = vld [vmem:[%s1 + $0x70] sm:$0xff]
        %v247 = vld [vmem:[%s1 + $0x78] sm:$0xff]
        %v248 = vld [vmem:[%s1 + $0x80] sm:$0xff]
        %v249 = vld [vmem:[%s1 + $0x88] sm:$0xff]
        %v250 = vld [vmem:[%s1 + $0x90] sm:$0xff]
        %v251 = vld [vmem:[%s1 + $0x98] sm:$0xff]
        %v252 = vld [vmem:[%s1 + $0xa0] sm:$0xff]
        %v253 = vld [vmem:[%s1 + $0xa8] sm:$0xff]
        %v254 = vld [vmem:[%s1 + $0xb0] sm:$0xff]
        %v255 = vld [vmem:[%s1 + $0xb8] sm:$0xff]
        %v256 = vld [vmem:[%s1 + $0xc0] sm:$0xff]
        %v257 = vld [vmem:[%s1 + $0xc8] sm:$0xff]
        %v258 = vld [vmem:[%s1 + $0xd0] sm:$0xff]
        %v259 = vld [vmem:[%s1 + $0xd8] sm:$0xff]
        %v260 = vld [vmem:[%s1 + $0xe0] sm:$0xff]
        %v261 = vld [vmem:[%s1 + $0xe8] sm:$0xff]
        %v262 = vld [vmem:[%s1 + $0xf0] sm:$0xff]
        %v263 = vld [vmem:[%s1 + $0xf8] sm:$0xff]
        %v264 = vld [vmem:[%s1 + $0x100] sm:$0xff]
        %v265 = vld [vmem:[%s1 + $0x108] sm:$0xff]
        %v266 = vld [vmem:[%s1 + $0x110] sm:$0xff]
        %v267 = vld [vmem:[%s1 + $0x118] sm:$0xff]
        %v268 = vld [vmem:[%s1 + $0x120] sm:$0xff]
        %v269 = vld [vmem:[%s1 + $0x128] sm:$0xff]
        %v270 = vld [vmem:[%s1 + $0x130] sm:$0xff]
        %v271 = vld [vmem:[%s1 + $0x138] sm:$0xff]
        %v272 = vld [vmem:[%s1 + $0x140] sm:$0xff]
        %v273 = vld [vmem:[%s1 + $0x148] sm:$0xff]
        %v274 = vld [vmem:[%s1 + $0x150] sm:$0xff]
        %v275 = vld [vmem:[%s1 + $0x158] sm:$0xff]
        %v276 = vld [vmem:[%s1 + $0x160] sm:$0xff]
        %v277 = vld [vmem:[%s1 + $0x168] sm:$0xff]
        %v278 = vld [vmem:[%s1 + $0x170] sm:$0xff]
        %v279 = vld [vmem:[%s1 + $0x178] sm:$0xff]
        %v280 = vld [vmem:[%s1 + $0x180] sm:$0xff]
        %v281 = vld [vmem:[%s1 + $0x188] sm:$0xff]
        %v282 = vld [vmem:[%s1 + $0x190] sm:$0xff]
        %v283 = vld [vmem:[%s1 + $0x198] sm:$0xff]
        %v284 = vld [vmem:[%s1 + $0x1a0] sm:$0xff]
        %v285 = vld [vmem:[%s1 + $0x1a8] sm:$0xff]
        %v286 = vld [vmem:[%s1 + $0x1b0] sm:$0xff]
        %v287 = vld [vmem:[%s1 + $0x1b8] sm:$0xff]
        %v288 = vld [vmem:[%s1 + $0x1c0] sm:$0xff]
        %v289 = vld [vmem:[%s1 + $0x1c8] sm:$0xff]
        %v290 = vld [vmem:[%s1 + $0x1d0] sm:$0xff]
        %v291 = vld [vmem:[%s1 + $0x1d8] sm:$0xff]
        %v292 = vld [vmem:[%s1 + $0x1e0] sm:$0xff]
        %v293 = vld [vmem:[%s1 + $0x1e8] sm:$0xff]
        %v294 = vld [vmem:[%s1 + $0x1f0] sm:$0xff]
        %v295 = vld [vmem:[%s1 + $0x1f8] sm:$0xff]
        %v296 = vld [vmem:[%s1 + $0x200] sm:$0xff]
        %v297 = vld [vmem:[%s1 + $0x208] sm:$0xff]
        %v298 = vld [vmem:[%s1 + $0x210] sm:$0xff]
        %v299 = vld [vmem:[%s1 + $0x218] sm:$0xff]
        %v300 = vld [vmem:[%s1 + $0x220] sm:$0xff]
        %v301 = vld [vmem:[%s1 + $0x228] sm:$0xff]
        %v302 = vld [vmem:[%s1 + $0x230] sm:$0xff]
        %v303 = vld [vmem:[%s1 + $0x238] sm:$0xff]
        %v304 = vld [vmem:[%s1 + $0x240] sm:$0xff]
        %v305 = vld [vmem:[%s1 + $0x248] sm:$0xff]
        %v306 = vld [vmem:[%s1 + $0x250] sm:$0xff]
        %v307 = vld [vmem:[%s1 + $0x258] sm:$0xff]
        %v308 = vld [vmem:[%s1 + $0x260] sm:$0xff]
        %v309 = vld [vmem:[%s1 + $0x268] sm:$0xff]
        %v310 = vld [vmem:[%s1 + $0x270] sm:$0xff]
        %v311 = vld [vmem:[%s1 + $0x278] sm:$0xff]
        %v312 = vld [vmem:[%s1 + $0x280] sm:$0xff]
        %v313 = vld [vmem:[%s1 + $0x288] sm:$0xff]
        %v314 = vld [vmem:[%s1 + $0x290] sm:$0xff]
        %v315 = vld [vmem:[%s1 + $0x298] sm:$0xff]
        %v316 = vld [vmem:[%s1 + $0x2a0] sm:$0xff]
        %v317 = vld [vmem:[%s1 + $0x2a8] sm:$0xff]
        %v318 = vld [vmem:[%s1 + $0x2b0] sm:$0xff]
        %v319 = vld [vmem:[%s1 + $0x2b8] sm:$0xff]
        %v320 = vld [vmem:[%s1 + $0x2c0] sm:$0xff]
        %v321 = vld [vmem:[%s1 + $0x2c8] sm:$0xff]
        %v322 = vld [vmem:[%s1 + $0x2d0] sm:$0xff]
        %v323 = vld [vmem:[%s1 + $0x2d8] sm:$0xff]
        %v324 = vld [vmem:[%s1 + $0x2e0] sm:$0xff]
        %v325 = vld [vmem:[%s1 + $0x2e8] sm:$0xff]
        %v326 = vld [vmem:[%s1 + $0x2f0] sm:$0xff]
        %v327 = vld [vmem:[%s1 + $0x2f8] sm:$0xff]
        %v328 = vld [vmem:[%s1 + $0x300] sm:$0xff]
        %v329 = vld [vmem:[%s1 + $0x308] sm:$0xff]
        %v330 = vld [vmem:[%s1 + $0x310] sm:$0xff]
        %v331 = vld [vmem:[%s1 + $0x318] sm:$0xff]
        %v332 = vld [vmem:[%s1 + $0x320] sm:$0xff]
        %v333 = vld [vmem:[%s1 + $0x328] sm:$0xff]
        %v334 = vld [vmem:[%s1 + $0x330] sm:$0xff]
        %v335 = vld [vmem:[%s1 + $0x338] sm:$0xff]
        %v336 = vld [vmem:[%s1 + $0x340] sm:$0xff]
        %v337 = vld [vmem:[%s1 + $0x348] sm:$0xff]
        %v338 = vld [vmem:[%s1 + $0x350] sm:$0xff]
        %v339 = vld [vmem:[%s1 + $0x358] sm:$0xff]
        %v340 = vld [vmem:[%s1 + $0x360] sm:$0xff]
        %v341 = vld [vmem:[%s1 + $0x368] sm:$0xff]
        %v342 = vld [vmem:[%s1 + $0x370] sm:$0xff]
        %v343 = vld [vmem:[%s1 + $0x378] sm:$0xff]
        %v344 = vld [vmem:[%s1 + $0x380] sm:$0xff]
        %v345 = vld [vmem:[%s1 + $0x388] sm:$0xff]
        %v346 = vld [vmem:[%s1 + $0x390] sm:$0xff]
        %v347 = vld [vmem:[%s1 + $0x398] sm:$0xff]
        %v348 = vld [vmem:[%s1 + $0x3a0] sm:$0xff]
        %v349 = vld [vmem:[%s1 + $0x3a8] sm:$0xff]
        %v350 = vld [vmem:[%s1 + $0x3b0] sm:$0xff]
        %v351 = vld [vmem:[%s1 + $0x3b8] sm:$0xff]
        %v352 = vld [vmem:[%s1 + $0x3c0] sm:$0xff]
        %v353 = vld [vmem:[%s1 + $0x3c8] sm:$0xff]
        %v354 = vld [vmem:[%s1 + $0x3d0] sm:$0xff]
        %v355 = vld [vmem:[%s1 + $0x3d8] sm:$0xff]
        %v356 = vld [vmem:[%s1 + $0x3e0] sm:$0xff]
        %v357 = vld [vmem:[%s1 + $0x3e8] sm:$0xff]
        %v358 = vld [vmem:[%s1 + $0x3f0] sm:$0xff]
        %v359 = vld [vmem:[%s1 + $0x3f8] sm:$0xff]
        %v360 = vld [vmem:[%s1 + $0x400] sm:$0xff]
        %v361 = vld [vmem:[%s1 + $0x408] sm:$0xff]
        %v362 = vld [vmem:[%s1 + $0x410] sm:$0xff]
        %v363 = vld [vmem:[%s1 + $0x418] sm:$0xff]
        %v364 = vld [vmem:[%s1 + $0x420] sm:$0xff]
        %v365 = vld [vmem:[%s1 + $0x428] sm:$0xff]
        %v366 = vld [vmem:[%s1 + $0x430] sm:$0xff]
        %v367 = vld [vmem:[%s1 + $0x438] sm:$0xff]
        %v368 = vld [vmem:[%s1 + $0x440] sm:$0xff]
        %v369 = vld [vmem:[%s1 + $0x448] sm:$0xff]
        %v370 = vld [vmem:[%s1 + $0x450] sm:$0xff]
        %v371 = vld [vmem:[%s1 + $0x458] sm:$0xff]
        %v372 = vld [vmem:[%s1 + $0x460] sm:$0xff]
        %v373 = vld [vmem:[%s1 + $0x468] sm:$0xff]
        %v374 = vld [vmem:[%s1 + $0x470] sm:$0xff]
        %v375 = vld [vmem:[%s1 + $0x478] sm:$0xff]
        %v376 = vld [vmem:[%s1 + $0x480] sm:$0xff]
        %v377 = vld [vmem:[%s1 + $0x488] sm:$0xff]
        %v378 = vld [vmem:[%s1 + $0x490] sm:$0xff]
        %v379 = vld [vmem:[%s1 + $0x498] sm:$0xff]
        %v380 = vld [vmem:[%s1 + $0x4a0] sm:$0xff]
        %v381 = vld [vmem:[%s1 + $0x4a8] sm:$0xff]
        %v382 = vld [vmem:[%s1 + $0x4b0] sm:$0xff]
        %v383 = vld [vmem:[%s1 + $0x4b8] sm:$0xff]
        %v384 = vld [vmem:[%s1 + $0x4c0] sm:$0xff]
        %v385 = vld [vmem:[%s1 + $0x4c8] sm:$0xff]
        %v386 = vld [vmem:[%s1 + $0x4d0] sm:$0xff]
        %v387 = vld [vmem:[%s1 + $0x4d8] sm:$0xff]
        %v388 = vld [vmem:[%s1 + $0x4e0] sm:$0xff]
        %v389 = vld [vmem:[%s1 + $0x4e8] sm:$0xff]
        %v390 = vld [vmem:[%s1 + $0x4f0] sm:$0xff]
        %v391 = vld [vmem:[%s1 + $0x4f8] sm:$0xff]
        %v392 = vld [vmem:[%s1 + $0x500] sm:$0xff]
        %v393 = vld [vmem:[%s1 + $0x508] sm:$0xff]
        %v394 = vld [vmem:[%s1 + $0x510] sm:$0xff]
        %v395 = vld [vmem:[%s1 + $0x518] sm:$0xff]
        %v396 = vld [vmem:[%s1 + $0x520] sm:$0xff]
        %v397 = vld [vmem:[%s1 + $0x528] sm:$0xff]
        %v398 = vld [vmem:[%s1 + $0x530] sm:$0xff]
        %v399 = vld [vmem:[%s1 + $0x538] sm:$0xff]
        %v400 = vld [vmem:[%s1 + $0x540] sm:$0xff]
        %v401 = vld [vmem:[%s1 + $0x548] sm:$0xff]
        %v402 = vld [vmem:[%s1 + $0x550] sm:$0xff]
        %v403 = vld [vmem:[%s1 + $0x558] sm:$0xff]
        %v404 = vld [vmem:[%s1 + $0x560] sm:$0xff]
        %v405 = vld [vmem:[%s1 + $0x568] sm:$0xff]
        %v406 = vld [vmem:[%s1 + $0x570] sm:$0xff]
        %v407 = vld [vmem:[%s1 + $0x578] sm:$0xff]
        %v408 = vld [vmem:[%s1 + $0x580] sm:$0xff]
        %v409 = vld [vmem:[%s1 + $0x588] sm:$0xff]
        %v410 = vld [vmem:[%s1 + $0x590] sm:$0xff]
        %v411 = vld [vmem:[%s1 + $0x598] sm:$0xff]
        %v412 = vld [vmem:[%s1 + $0x5a0] sm:$0xff]
        %v413 = vld [vmem:[%s1 + $0x5a8] sm:$0xff]
        %v414 = vld [vmem:[%s1 + $0x5b0] sm:$0xff]
        %v415 = vld [vmem:[%s1 + $0x5b8] sm:$0xff]
        %v416 = vld [vmem:[%s1 + $0x5c0] sm:$0xff]
        %v417 = vld [vmem:[%s1 + $0x5c8] sm:$0xff]
        %v418 = vld [vmem:[%s1 + $0x5d0] sm:$0xff]
        %v419 = vld [vmem:[%s1 + $0x5d8] sm:$0xff]
        %v420 = vld [vmem:[%s1 + $0x5e0] sm:$0xff]
        %v421 = vld [vmem:[%s1 + $0x5e8] sm:$0xff]
        %v422 = vld [vmem:[%s1 + $0x5f0] sm:$0xff]
        %v423 = vld [vmem:[%s1 + $0x5f8] sm:$0xff]
        %v424 = vld [vmem:[%s1 + $0x600] sm:$0xff]
        %v425 = vld [vmem:[%s1 + $0x608] sm:$0xff]
        %v426 = vld [vmem:[%s1 + $0x610] sm:$0xff]
        %v427 = vld [vmem:[%s1 + $0x618] sm:$0xff]
        %v428 = vld [vmem:[%s1 + $0x620] sm:$0xff]
        %v429 = vld [vmem:[%s1 + $0x628] sm:$0xff]
        %v430 = vld [vmem:[%s1 + $0x630] sm:$0xff]
        %v431 = vld [vmem:[%s1 + $0x638] sm:$0xff]
        %v432 = vld [vmem:[%s1 + $0x640] sm:$0xff]
        %v433 = vld [vmem:[%s1 + $0x648] sm:$0xff]
        %v434 = vld [vmem:[%s1 + $0x650] sm:$0xff]
        %v435 = vld [vmem:[%s1 + $0x658] sm:$0xff]
        %v436 = vld [vmem:[%s1 + $0x660] sm:$0xff]
        %v437 = vld [vmem:[%s1 + $0x668] sm:$0xff]
        %v438 = vld [vmem:[%s1 + $0x670] sm:$0xff]
        %v439 = vld [vmem:[%s1 + $0x678] sm:$0xff]
        %v440 = vld [vmem:[%s1 + $0x680] sm:$0xff]
        %v441 = vld [vmem:[%s1 + $0x688] sm:$0xff]
        %v442 = vld [vmem:[%s1 + $0x690] sm:$0xff]
        %v443 = vld [vmem:[%s1 + $0x698] sm:$0xff]
        %v444 = vld [vmem:[%s1 + $0x6a0] sm:$0xff]
        %v445 = vld [vmem:[%s1 + $0x6a8] sm:$0xff]
        %v446 = vld [vmem:[%s1 + $0x6b0] sm:$0xff]
        %v447 = vld [vmem:[%s1 + $0x6b8] sm:$0xff]
        %v448 = vld [vmem:[%s1 + $0x6c0] sm:$0x1f]
        %v449 = vld [vmem:[%s1 + $0x6c8] sm:$0x1f]
        %v450 = vld [vmem:[%s1 + $0x6d0] sm:$0x1f]
        %v451 = vld [vmem:[%s1 + $0x6d8] sm:$0x1f]
        %v452 = vld [vmem:[%s1 + $0x6e0] sm:$0x1f]
        %v453 = vld [vmem:[%s1 + $0x6e8] sm:$0x1f]
        %v454 = vld [vmem:[%s1 + $0x6f0] sm:$0x1f]
        %v455 = vld [vmem:[%s1 + $0x6f8] sm:$0x1f]
        %v456 = vld [vmem:[%s1 + $0x700] sm:$0x1f]
        %v457 = vld [vmem:[%s1 + $0x708] sm:$0x1f]
        %v458 = vld [vmem:[%s1 + $0x710] sm:$0x1f]
        %v459 = vld [vmem:[%s1 + $0x718] sm:$0x1f]
        %vm460 = vcmask 171008
        %v462 = vsel %vm460, %v231, 0
        %vm464 = vcmask 1044480
        %v466 = vsel %vm464, %v448, 0
        %v469 = vsel %vm464, %v449, 0
        %v472 = vsel %vm464, %v450, 0
        %v475 = vsel %vm464, %v451, 0
        %v478 = vsel %vm464, %v452, 0
        %v481 = vsel %vm464, %v453, 0
        %v484 = vsel %vm464, %v454, 0
        %v487 = vsel %vm464, %v455, 0
        %v490 = vsel %vm464, %v456, 0
        %v493 = vsel %vm464, %v457, 0
        %v496 = vsel %vm464, %v458, 0
        %v499 = vsel %vm464, %v459, 0
        %501 = vmatpush.msra.mxu0 %v412
        %502 = vmatpush.msra.mxu0 %v400
        %503 = vmatpush.msra.mxu0 %v388
        %504 = vmatpush.msra.mxu0 %v376
        %505 = vmatpush.msra.mxu0 %v364
        %506 = vmatpush.msra.mxu0 %v352
        %507 = vmatpush.msra.mxu0 %v340
        %508 = vmatpush.msra.mxu0 %v328
        %509 = vmatpush.msra.mxu0 %v316
        %510 = vmatpush.msra.mxu0 %v304
        %511 = vmatpush.msra.mxu0 %v292
        %512 = vmatpush.msra.mxu0 %v280
        %513 = vmatpush.msra.mxu0 %v268
        %514 = vmatpush.msra.mxu0 %v256
        %515 = vmatpush.msra.mxu0 %v244
        %516 = vmatpush.msra.mxu0 %v232
        %517 = vmatmul.f32.gmra.mxu0 %v230
        %v518 = vpop.f32.mrf.mxu0
        %v519 = vadd.f32 0.0, %v518
        %520 = vdwg.mxu0
        %521 = vmatpush.msra.mxu0 0.0
        %522 = vmatpush.msra.mxu0 0.0
        %523 = vmatpush.msra.mxu0 0.0
        %524 = vmatpush.msra.mxu0 0.0
        %525 = vmatpush.msra.mxu0 0.0
        %526 = vmatpush.msra.mxu0 0.0
        %527 = vmatpush.msra.mxu0 0.0
        %528 = vmatpush.msra.mxu0 0.0
        %529 = vmatpush.msra.mxu0 0.0
        %530 = vmatpush.msra.mxu0 0.0
        %531 = vmatpush.msra.mxu0 0.0
        %532 = vmatpush.msra.mxu0 0.0
        %533 = vmatpush.msra.mxu0 0.0
        %534 = vmatpush.msra.mxu0 %v466
        %535 = vmatpush.msra.mxu0 %v436
        %536 = vmatpush.msra.mxu0 %v424
        %537 = vmatmul.f32.gmra.mxu0 %v462
        %v538 = vpop.f32.mrf.mxu0
        %v539 = vadd.f32 %v519, %v538
        %540 = vdwg.mxu0
        %541 = vmatpush.msra.mxu0 %v413
        %542 = vmatpush.msra.mxu0 %v401
        %543 = vmatpush.msra.mxu0 %v389
        %544 = vmatpush.msra.mxu0 %v377
        %545 = vmatpush.msra.mxu0 %v365
        %546 = vmatpush.msra.mxu0 %v353
        %547 = vmatpush.msra.mxu0 %v341
        %548 = vmatpush.msra.mxu0 %v329
        %549 = vmatpush.msra.mxu0 %v317
        %550 = vmatpush.msra.mxu0 %v305
        %551 = vmatpush.msra.mxu0 %v293
        %552 = vmatpush.msra.mxu0 %v281
        %553 = vmatpush.msra.mxu0 %v269
        %554 = vmatpush.msra.mxu0 %v257
        %555 = vmatpush.msra.mxu0 %v245
        %556 = vmatpush.msra.mxu0 %v233
        %557 = vmatmul.f32.gmra.mxu0 %v230
        %v558 = vpop.f32.mrf.mxu0
        %v559 = vadd.f32 0.0, %v558
        %560 = vdwg.mxu0
        %561 = vmatpush.msra.mxu0 0.0
        %562 = vmatpush.msra.mxu0 0.0
        %563 = vmatpush.msra.mxu0 0.0
        %564 = vmatpush.msra.mxu0 0.0
        %565 = vmatpush.msra.mxu0 0.0
        %566 = vmatpush.msra.mxu0 0.0
        %567 = vmatpush.msra.mxu0 0.0
        %568 = vmatpush.msra.mxu0 0.0
        %569 = vmatpush.msra.mxu0 0.0
        %570 = vmatpush.msra.mxu0 0.0
        %571 = vmatpush.msra.mxu0 0.0
        %572 = vmatpush.msra.mxu0 0.0
        %573 = vmatpush.msra.mxu0 0.0
        %574 = vmatpush.msra.mxu0 %v469
        %575 = vmatpush.msra.mxu0 %v437
        %576 = vmatpush.msra.mxu0 %v425
        %577 = vmatmul.f32.gmra.mxu0 %v462
        %v578 = vpop.f32.mrf.mxu0
        %v579 = vadd.f32 %v559, %v578
        %580 = vdwg.mxu0
        %581 = vmatpush.msra.mxu0 %v414
        %582 = vmatpush.msra.mxu0 %v402
        %583 = vmatpush.msra.mxu0 %v390
        %584 = vmatpush.msra.mxu0 %v378
        %585 = vmatpush.msra.mxu0 %v366
        %586 = vmatpush.msra.mxu0 %v354
        %587 = vmatpush.msra.mxu0 %v342
        %588 = vmatpush.msra.mxu0 %v330
        %589 = vmatpush.msra.mxu0 %v318
        %590 = vmatpush.msra.mxu0 %v306
        %591 = vmatpush.msra.mxu0 %v294
        %592 = vmatpush.msra.mxu0 %v282
        %593 = vmatpush.msra.mxu0 %v270
        %594 = vmatpush.msra.mxu0 %v258
        %595 = vmatpush.msra.mxu0 %v246
        %596 = vmatpush.msra.mxu0 %v234
        %597 = vmatmul.f32.gmra.mxu0 %v230
        %v598 = vpop.f32.mrf.mxu0
        %v599 = vadd.f32 0.0, %v598
        %600 = vdwg.mxu0
        %601 = vmatpush.msra.mxu0 0.0
        %602 = vmatpush.msra.mxu0 0.0
        %603 = vmatpush.msra.mxu0 0.0
        %604 = vmatpush.msra.mxu0 0.0
        %605 = vmatpush.msra.mxu0 0.0
        %606 = vmatpush.msra.mxu0 0.0
        %607 = vmatpush.msra.mxu0 0.0
        %608 = vmatpush.msra.mxu0 0.0
        %609 = vmatpush.msra.mxu0 0.0
        %610 = vmatpush.msra.mxu0 0.0
        %611 = vmatpush.msra.mxu0 0.0
        %612 = vmatpush.msra.mxu0 0.0
        %613 = vmatpush.msra.mxu0 0.0
        %614 = vmatpush.msra.mxu0 %v472
        %615 = vmatpush.msra.mxu0 %v438
        %616 = vmatpush.msra.mxu0 %v426
        %617 = vmatmul.f32.gmra.mxu0 %v462
        %v618 = vpop.f32.mrf.mxu0
        %v619 = vadd.f32 %v599, %v618
        %620 = vdwg.mxu0
        %621 = vmatpush.msra.mxu0 %v415
        %622 = vmatpush.msra.mxu0 %v403
        %623 = vmatpush.msra.mxu0 %v391
        %624 = vmatpush.msra.mxu0 %v379
        %625 = vmatpush.msra.mxu0 %v367
        %626 = vmatpush.msra.mxu0 %v355
        %627 = vmatpush.msra.mxu0 %v343
        %628 = vmatpush.msra.mxu0 %v331
        %629 = vmatpush.msra.mxu0 %v319
        %630 = vmatpush.msra.mxu0 %v307
        %631 = vmatpush.msra.mxu0 %v295
        %632 = vmatpush.msra.mxu0 %v283
        %633 = vmatpush.msra.mxu0 %v271
        %634 = vmatpush.msra.mxu0 %v259
        %635 = vmatpush.msra.mxu0 %v247
        %636 = vmatpush.msra.mxu0 %v235
        %637 = vmatmul.f32.gmra.mxu0 %v230
        %v638 = vpop.f32.mrf.mxu0
        %v639 = vadd.f32 0.0, %v638
        %640 = vdwg.mxu0
        %641 = vmatpush.msra.mxu0 0.0
        %642 = vmatpush.msra.mxu0 0.0
        %643 = vmatpush.msra.mxu0 0.0
        %644 = vmatpush.msra.mxu0 0.0
        %645 = vmatpush.msra.mxu0 0.0
        %646 = vmatpush.msra.mxu0 0.0
        %647 = vmatpush.msra.mxu0 0.0
        %648 = vmatpush.msra.mxu0 0.0
        %649 = vmatpush.msra.mxu0 0.0
        %650 = vmatpush.msra.mxu0 0.0
        %651 = vmatpush.msra.mxu0 0.0
        %652 = vmatpush.msra.mxu0 0.0
        %653 = vmatpush.msra.mxu0 0.0
        %654 = vmatpush.msra.mxu0 %v475
        %655 = vmatpush.msra.mxu0 %v439
        %656 = vmatpush.msra.mxu0 %v427
        %657 = vmatmul.f32.gmra.mxu0 %v462
        %v658 = vpop.f32.mrf.mxu0
        %v659 = vadd.f32 %v639, %v658
        %660 = vdwg.mxu0
        %661 = vmatpush.msra.mxu0 %v416
        %662 = vmatpush.msra.mxu0 %v404
        %663 = vmatpush.msra.mxu0 %v392
        %664 = vmatpush.msra.mxu0 %v380
        %665 = vmatpush.msra.mxu0 %v368
        %666 = vmatpush.msra.mxu0 %v356
        %667 = vmatpush.msra.mxu0 %v344
        %668 = vmatpush.msra.mxu0 %v332
        %669 = vmatpush.msra.mxu0 %v320
        %670 = vmatpush.msra.mxu0 %v308
        %671 = vmatpush.msra.mxu0 %v296
        %672 = vmatpush.msra.mxu0 %v284
        %673 = vmatpush.msra.mxu0 %v272
        %674 = vmatpush.msra.mxu0 %v260
        %675 = vmatpush.msra.mxu0 %v248
        %676 = vmatpush.msra.mxu0 %v236
        %677 = vmatmul.f32.gmra.mxu0 %v230
        %v678 = vpop.f32.mrf.mxu0
        %v679 = vadd.f32 0.0, %v678
        %680 = vdwg.mxu0
        %681 = vmatpush.msra.mxu0 0.0
        %682 = vmatpush.msra.mxu0 0.0
        %683 = vmatpush.msra.mxu0 0.0
        %684 = vmatpush.msra.mxu0 0.0
        %685 = vmatpush.msra.mxu0 0.0
        %686 = vmatpush.msra.mxu0 0.0
        %687 = vmatpush.msra.mxu0 0.0
        %688 = vmatpush.msra.mxu0 0.0
        %689 = vmatpush.msra.mxu0 0.0
        %690 = vmatpush.msra.mxu0 0.0
        %691 = vmatpush.msra.mxu0 0.0
        %692 = vmatpush.msra.mxu0 0.0
        %693 = vmatpush.msra.mxu0 0.0
        %694 = vmatpush.msra.mxu0 %v478
        %695 = vmatpush.msra.mxu0 %v440
        %696 = vmatpush.msra.mxu0 %v428
        %697 = vmatmul.f32.gmra.mxu0 %v462
        %v698 = vpop.f32.mrf.mxu0
        %v699 = vadd.f32 %v679, %v698
        %700 = vdwg.mxu0
        %701 = vmatpush.msra.mxu0 %v417
        %702 = vmatpush.msra.mxu0 %v405
        %703 = vmatpush.msra.mxu0 %v393
        %704 = vmatpush.msra.mxu0 %v381
        %705 = vmatpush.msra.mxu0 %v369
        %706 = vmatpush.msra.mxu0 %v357
        %707 = vmatpush.msra.mxu0 %v345
        %708 = vmatpush.msra.mxu0 %v333
        %709 = vmatpush.msra.mxu0 %v321
        %710 = vmatpush.msra.mxu0 %v309
        %711 = vmatpush.msra.mxu0 %v297
        %712 = vmatpush.msra.mxu0 %v285
        %713 = vmatpush.msra.mxu0 %v273
        %714 = vmatpush.msra.mxu0 %v261
        %715 = vmatpush.msra.mxu0 %v249
        %716 = vmatpush.msra.mxu0 %v237
        %717 = vmatmul.f32.gmra.mxu0 %v230
        %v718 = vpop.f32.mrf.mxu0
        %v719 = vadd.f32 0.0, %v718
        %720 = vdwg.mxu0
        %721 = vmatpush.msra.mxu0 0.0
        %722 = vmatpush.msra.mxu0 0.0
        %723 = vmatpush.msra.mxu0 0.0
        %724 = vmatpush.msra.mxu0 0.0
        %725 = vmatpush.msra.mxu0 0.0
        %726 = vmatpush.msra.mxu0 0.0
        %727 = vmatpush.msra.mxu0 0.0
        %728 = vmatpush.msra.mxu0 0.0
        %729 = vmatpush.msra.mxu0 0.0
        %730 = vmatpush.msra.mxu0 0.0
        %731 = vmatpush.msra.mxu0 0.0
        %732 = vmatpush.msra.mxu0 0.0
        %733 = vmatpush.msra.mxu0 0.0
        %734 = vmatpush.msra.mxu0 %v481
        %735 = vmatpush.msra.mxu0 %v441
        %736 = vmatpush.msra.mxu0 %v429
        %737 = vmatmul.f32.gmra.mxu0 %v462
        %v738 = vpop.f32.mrf.mxu0
        %v739 = vadd.f32 %v719, %v738
        %740 = vdwg.mxu0
        %741 = vmatpush.msra.mxu0 %v418
        %742 = vmatpush.msra.mxu0 %v406
        %743 = vmatpush.msra.mxu0 %v394
        %744 = vmatpush.msra.mxu0 %v382
        %745 = vmatpush.msra.mxu0 %v370
        %746 = vmatpush.msra.mxu0 %v358
        %747 = vmatpush.msra.mxu0 %v346
        %748 = vmatpush.msra.mxu0 %v334
        %749 = vmatpush.msra.mxu0 %v322
        %750 = vmatpush.msra.mxu0 %v310
        %751 = vmatpush.msra.mxu0 %v298
        %752 = vmatpush.msra.mxu0 %v286
        %753 = vmatpush.msra.mxu0 %v274
        %754 = vmatpush.msra.mxu0 %v262
        %755 = vmatpush.msra.mxu0 %v250
        %756 = vmatpush.msra.mxu0 %v238
        %757 = vmatmul.f32.gmra.mxu0 %v230
        %v758 = vpop.f32.mrf.mxu0
        %v759 = vadd.f32 0.0, %v758
        %760 = vdwg.mxu0
        %761 = vmatpush.msra.mxu0 0.0
        %762 = vmatpush.msra.mxu0 0.0
        %763 = vmatpush.msra.mxu0 0.0
        %764 = vmatpush.msra.mxu0 0.0
        %765 = vmatpush.msra.mxu0 0.0
        %766 = vmatpush.msra.mxu0 0.0
        %767 = vmatpush.msra.mxu0 0.0
        %768 = vmatpush.msra.mxu0 0.0
        %769 = vmatpush.msra.mxu0 0.0
        %770 = vmatpush.msra.mxu0 0.0
        %771 = vmatpush.msra.mxu0 0.0
        %772 = vmatpush.msra.mxu0 0.0
        %773 = vmatpush.msra.mxu0 0.0
        %774 = vmatpush.msra.mxu0 %v484
        %775 = vmatpush.msra.mxu0 %v442
        %776 = vmatpush.msra.mxu0 %v430
        %777 = vmatmul.f32.gmra.mxu0 %v462
        %v778 = vpop.f32.mrf.mxu0
        %v779 = vadd.f32 %v759, %v778
        %780 = vdwg.mxu0
        %781 = vmatpush.msra.mxu0 %v419
        %782 = vmatpush.msra.mxu0 %v407
        %783 = vmatpush.msra.mxu0 %v395
        %784 = vmatpush.msra.mxu0 %v383
        %785 = vmatpush.msra.mxu0 %v371
        %786 = vmatpush.msra.mxu0 %v359
        %787 = vmatpush.msra.mxu0 %v347
        %788 = vmatpush.msra.mxu0 %v335
        %789 = vmatpush.msra.mxu0 %v323
        %790 = vmatpush.msra.mxu0 %v311
        %791 = vmatpush.msra.mxu0 %v299
        %792 = vmatpush.msra.mxu0 %v287
        %793 = vmatpush.msra.mxu0 %v275
        %794 = vmatpush.msra.mxu0 %v263
        %795 = vmatpush.msra.mxu0 %v251
        %796 = vmatpush.msra.mxu0 %v239
        %797 = vmatmul.f32.gmra.mxu0 %v230
        %v798 = vpop.f32.mrf.mxu0
        %v799 = vadd.f32 0.0, %v798
        %800 = vdwg.mxu0
        %801 = vmatpush.msra.mxu0 0.0
        %802 = vmatpush.msra.mxu0 0.0
        %803 = vmatpush.msra.mxu0 0.0
        %804 = vmatpush.msra.mxu0 0.0
        %805 = vmatpush.msra.mxu0 0.0
        %806 = vmatpush.msra.mxu0 0.0
        %807 = vmatpush.msra.mxu0 0.0
        %808 = vmatpush.msra.mxu0 0.0
        %809 = vmatpush.msra.mxu0 0.0
        %810 = vmatpush.msra.mxu0 0.0
        %811 = vmatpush.msra.mxu0 0.0
        %812 = vmatpush.msra.mxu0 0.0
        %813 = vmatpush.msra.mxu0 0.0
        %814 = vmatpush.msra.mxu0 %v487
        %815 = vmatpush.msra.mxu0 %v443
        %816 = vmatpush.msra.mxu0 %v431
        %817 = vmatmul.f32.gmra.mxu0 %v462
        %v818 = vpop.f32.mrf.mxu0
        %v819 = vadd.f32 %v799, %v818
        %820 = vdwg.mxu0
        %821 = vmatpush.msra.mxu0 %v420
        %822 = vmatpush.msra.mxu0 %v408
        %823 = vmatpush.msra.mxu0 %v396
        %824 = vmatpush.msra.mxu0 %v384
        %825 = vmatpush.msra.mxu0 %v372
        %826 = vmatpush.msra.mxu0 %v360
        %827 = vmatpush.msra.mxu0 %v348
        %828 = vmatpush.msra.mxu0 %v336
        %829 = vmatpush.msra.mxu0 %v324
        %830 = vmatpush.msra.mxu0 %v312
        %831 = vmatpush.msra.mxu0 %v300
        %832 = vmatpush.msra.mxu0 %v288
        %833 = vmatpush.msra.mxu0 %v276
        %834 = vmatpush.msra.mxu0 %v264
        %835 = vmatpush.msra.mxu0 %v252
        %836 = vmatpush.msra.mxu0 %v240
        %837 = vmatmul.f32.gmra.mxu0 %v230
        %v838 = vpop.f32.mrf.mxu0
        %v839 = vadd.f32 0.0, %v838
        %840 = vdwg.mxu0
        %841 = vmatpush.msra.mxu0 0.0
        %842 = vmatpush.msra.mxu0 0.0
        %843 = vmatpush.msra.mxu0 0.0
        %844 = vmatpush.msra.mxu0 0.0
        %845 = vmatpush.msra.mxu0 0.0
        %846 = vmatpush.msra.mxu0 0.0
        %847 = vmatpush.msra.mxu0 0.0
        %848 = vmatpush.msra.mxu0 0.0
        %849 = vmatpush.msra.mxu0 0.0
        %850 = vmatpush.msra.mxu0 0.0
        %851 = vmatpush.msra.mxu0 0.0
        %852 = vmatpush.msra.mxu0 0.0
        %853 = vmatpush.msra.mxu0 0.0
        %854 = vmatpush.msra.mxu0 %v490
        %855 = vmatpush.msra.mxu0 %v444
        %856 = vmatpush.msra.mxu0 %v432
        %857 = vmatmul.f32.gmra.mxu0 %v462
        %v858 = vpop.f32.mrf.mxu0
        %v859 = vadd.f32 %v839, %v858
        %860 = vdwg.mxu0
        %861 = vmatpush.msra.mxu0 %v421
        %862 = vmatpush.msra.mxu0 %v409
        %863 = vmatpush.msra.mxu0 %v397
        %864 = vmatpush.msra.mxu0 %v385
        %865 = vmatpush.msra.mxu0 %v373
        %866 = vmatpush.msra.mxu0 %v361
        %867 = vmatpush.msra.mxu0 %v349
        %868 = vmatpush.msra.mxu0 %v337
        %869 = vmatpush.msra.mxu0 %v325
        %870 = vmatpush.msra.mxu0 %v313
        %871 = vmatpush.msra.mxu0 %v301
        %872 = vmatpush.msra.mxu0 %v289
        %873 = vmatpush.msra.mxu0 %v277
        %874 = vmatpush.msra.mxu0 %v265
        %875 = vmatpush.msra.mxu0 %v253
        %876 = vmatpush.msra.mxu0 %v241
        %877 = vmatmul.f32.gmra.mxu0 %v230
        %v878 = vpop.f32.mrf.mxu0
        %v879 = vadd.f32 0.0, %v878
        %880 = vdwg.mxu0
        %881 = vmatpush.msra.mxu0 0.0
        %882 = vmatpush.msra.mxu0 0.0
        %883 = vmatpush.msra.mxu0 0.0
        %884 = vmatpush.msra.mxu0 0.0
        %885 = vmatpush.msra.mxu0 0.0
        %886 = vmatpush.msra.mxu0 0.0
        %887 = vmatpush.msra.mxu0 0.0
        %888 = vmatpush.msra.mxu0 0.0
        %889 = vmatpush.msra.mxu0 0.0
        %890 = vmatpush.msra.mxu0 0.0
        %891 = vmatpush.msra.mxu0 0.0
        %892 = vmatpush.msra.mxu0 0.0
        %893 = vmatpush.msra.mxu0 0.0
        %894 = vmatpush.msra.mxu0 %v493
        %895 = vmatpush.msra.mxu0 %v445
        %896 = vmatpush.msra.mxu0 %v433
        %897 = vmatmul.f32.gmra.mxu0 %v462
        %v898 = vpop.f32.mrf.mxu0
        %v899 = vadd.f32 %v879, %v898
        %900 = vdwg.mxu0
        %901 = vmatpush.msra.mxu0 %v422
        %902 = vmatpush.msra.mxu0 %v410
        %903 = vmatpush.msra.mxu0 %v398
        %904 = vmatpush.msra.mxu0 %v386
        %905 = vmatpush.msra.mxu0 %v374
        %906 = vmatpush.msra.mxu0 %v362
        %907 = vmatpush.msra.mxu0 %v350
        %908 = vmatpush.msra.mxu0 %v338
        %909 = vmatpush.msra.mxu0 %v326
        %910 = vmatpush.msra.mxu0 %v314
        %911 = vmatpush.msra.mxu0 %v302
        %912 = vmatpush.msra.mxu0 %v290
        %913 = vmatpush.msra.mxu0 %v278
        %914 = vmatpush.msra.mxu0 %v266
        %915 = vmatpush.msra.mxu0 %v254
        %916 = vmatpush.msra.mxu0 %v242
        %917 = vmatmul.f32.gmra.mxu0 %v230
        %v918 = vpop.f32.mrf.mxu0
        %v919 = vadd.f32 0.0, %v918
        %920 = vdwg.mxu0
        %921 = vmatpush.msra.mxu0 0.0
        %922 = vmatpush.msra.mxu0 0.0
        %923 = vmatpush.msra.mxu0 0.0
        %924 = vmatpush.msra.mxu0 0.0
        %925 = vmatpush.msra.mxu0 0.0
        %926 = vmatpush.msra.mxu0 0.0
        %927 = vmatpush.msra.mxu0 0.0
        %928 = vmatpush.msra.mxu0 0.0
        %929 = vmatpush.msra.mxu0 0.0
        %930 = vmatpush.msra.mxu0 0.0
        %931 = vmatpush.msra.mxu0 0.0
        %932 = vmatpush.msra.mxu0 0.0
        %933 = vmatpush.msra.mxu0 0.0
        %934 = vmatpush.msra.mxu0 %v496
        %935 = vmatpush.msra.mxu0 %v446
        %936 = vmatpush.msra.mxu0 %v434
        %937 = vmatmul.f32.gmra.mxu0 %v462
        %v938 = vpop.f32.mrf.mxu0
        %v939 = vadd.f32 %v919, %v938
        %940 = vdwg.mxu0
        %941 = vmatpush.msra.mxu0 %v423
        %942 = vmatpush.msra.mxu0 %v411
        %943 = vmatpush.msra.mxu0 %v399
        %944 = vmatpush.msra.mxu0 %v387
        %945 = vmatpush.msra.mxu0 %v375
        %946 = vmatpush.msra.mxu0 %v363
        %947 = vmatpush.msra.mxu0 %v351
        %948 = vmatpush.msra.mxu0 %v339
        %949 = vmatpush.msra.mxu0 %v327
        %950 = vmatpush.msra.mxu0 %v315
        %951 = vmatpush.msra.mxu0 %v303
        %952 = vmatpush.msra.mxu0 %v291
        %953 = vmatpush.msra.mxu0 %v279
        %954 = vmatpush.msra.mxu0 %v267
        %955 = vmatpush.msra.mxu0 %v255
        %956 = vmatpush.msra.mxu0 %v243
        %957 = vmatmul.f32.gmra.mxu0 %v230
        %v958 = vpop.f32.mrf.mxu0
        %v959 = vadd.f32 0.0, %v958
        %960 = vdwg.mxu0
        %961 = vmatpush.msra.mxu0 0.0
        %962 = vmatpush.msra.mxu0 0.0
        %963 = vmatpush.msra.mxu0 0.0
        %964 = vmatpush.msra.mxu0 0.0
        %965 = vmatpush.msra.mxu0 0.0
        %966 = vmatpush.msra.mxu0 0.0
        %967 = vmatpush.msra.mxu0 0.0
        %968 = vmatpush.msra.mxu0 0.0
        %969 = vmatpush.msra.mxu0 0.0
        %970 = vmatpush.msra.mxu0 0.0
        %971 = vmatpush.msra.mxu0 0.0
        %972 = vmatpush.msra.mxu0 0.0
        %973 = vmatpush.msra.mxu0 0.0
        %974 = vmatpush.msra.mxu0 %v499
        %975 = vmatpush.msra.mxu0 %v447
        %976 = vmatpush.msra.mxu0 %v435
        %977 = vmatmul.f32.gmra.mxu0 %v462
        %v978 = vpop.f32.mrf.mxu0
        %v979 = vadd.f32 %v959, %v978
        %980 = vdwg.mxu0
        %v981 = vand.u32 2147483647, %v539
        %v982 = vand.u32 2147483647, %v579
        %v983 = vand.u32 2147483647, %v619
        %v984 = vand.u32 2147483647, %v659
        %v985 = vand.u32 2147483647, %v699
        %v986 = vand.u32 2147483647, %v739
        %v987 = vand.u32 2147483647, %v779
        %v988 = vand.u32 2147483647, %v819
        %v989 = vand.u32 2147483647, %v859
        %v990 = vand.u32 2147483647, %v899
        %v991 = vand.u32 2147483647, %v939
        %v992 = vand.u32 2147483647, %v979
        %v993 = vld [vmem:[%s2] sm:$0xff]
        %v994 = vld [vmem:[%s2 + $0x8] sm:$0xff]
        %v995 = vld [vmem:[%s2 + $0x10] sm:$0xff]
        %v996 = vld [vmem:[%s2 + $0x18] sm:$0xff]
        %v997 = vld [vmem:[%s2 + $0x20] sm:$0xff]
        %v998 = vld [vmem:[%s2 + $0x28] sm:$0xff]
        %v999 = vld [vmem:[%s2 + $0x30] sm:$0xff]
        %v1000 = vld [vmem:[%s2 + $0x38] sm:$0xff]
        %v1001 = vld [vmem:[%s2 + $0x40] sm:$0xff]
        %v1002 = vld [vmem:[%s2 + $0x48] sm:$0xff]
        %v1003 = vld [vmem:[%s2 + $0x50] sm:$0xff]
        %v1004 = vld [vmem:[%s2 + $0x58] sm:$0xff]
        %v1005 = vld [vmem:[%s2 + $0x60] sm:$0xff]
        %v1006 = vld [vmem:[%s2 + $0x68] sm:$0xff]
        %v1007 = vld [vmem:[%s2 + $0x70] sm:$0xff]
        %v1008 = vld [vmem:[%s2 + $0x78] sm:$0xff]
        %v1009 = vld [vmem:[%s2 + $0x80] sm:$0xff]
        %v1010 = vld [vmem:[%s2 + $0x88] sm:$0xff]
        %v1011 = vld [vmem:[%s2 + $0x90] sm:$0xff]
        %v1012 = vld [vmem:[%s2 + $0x98] sm:$0xff]
        %v1013 = vld [vmem:[%s2 + $0xa0] sm:$0xff]
        %v1014 = vld [vmem:[%s2 + $0xa8] sm:$0xff]
        %v1015 = vld [vmem:[%s2 + $0xb0] sm:$0xff]
        %v1016 = vld [vmem:[%s2 + $0xb8] sm:$0xff]
        %v1017 = vld [vmem:[%s2 + $0xc0] sm:$0xff]
        %v1018 = vld [vmem:[%s2 + $0xc8] sm:$0xff]
        %v1019 = vld [vmem:[%s2 + $0xd0] sm:$0xff]
        %v1020 = vld [vmem:[%s2 + $0xd8] sm:$0xff]
        %v1021 = vld [vmem:[%s2 + $0xe0] sm:$0xff]
        %v1022 = vld [vmem:[%s2 + $0xe8] sm:$0xff]
        %v1023 = vld [vmem:[%s2 + $0xf0] sm:$0xff]
        %v1024 = vld [vmem:[%s2 + $0xf8] sm:$0xff]
        %v1025 = vld [vmem:[%s2 + $0x100] sm:$0xff]
        %v1026 = vld [vmem:[%s2 + $0x108] sm:$0xff]
        %v1027 = vld [vmem:[%s2 + $0x110] sm:$0xff]
        %v1028 = vld [vmem:[%s2 + $0x118] sm:$0xff]
        %v1029 = vld [vmem:[%s2 + $0x120] sm:$0xff]
        %v1030 = vld [vmem:[%s2 + $0x128] sm:$0xff]
        %v1031 = vld [vmem:[%s2 + $0x130] sm:$0xff]
        %v1032 = vld [vmem:[%s2 + $0x138] sm:$0xff]
        %v1033 = vld [vmem:[%s2 + $0x140] sm:$0xff]
        %v1034 = vld [vmem:[%s2 + $0x148] sm:$0xff]
        %v1035 = vld [vmem:[%s2 + $0x150] sm:$0xff]
        %v1036 = vld [vmem:[%s2 + $0x158] sm:$0xff]
        %v1037 = vld [vmem:[%s2 + $0x160] sm:$0xff]
        %v1038 = vld [vmem:[%s2 + $0x168] sm:$0xff]
        %v1039 = vld [vmem:[%s2 + $0x170] sm:$0xff]
        %v1040 = vld [vmem:[%s2 + $0x178] sm:$0xff]
        %v1041 = vld [vmem:[%s2 + $0x180] sm:$0xff]
        %v1042 = vld [vmem:[%s2 + $0x188] sm:$0xff]
        %v1043 = vld [vmem:[%s2 + $0x190] sm:$0xff]
        %v1044 = vld [vmem:[%s2 + $0x198] sm:$0xff]
        %v1045 = vld [vmem:[%s2 + $0x1a0] sm:$0xff]
        %v1046 = vld [vmem:[%s2 + $0x1a8] sm:$0xff]
        %v1047 = vld [vmem:[%s2 + $0x1b0] sm:$0xff]
        %v1048 = vld [vmem:[%s2 + $0x1b8] sm:$0xff]
        %v1049 = vld [vmem:[%s2 + $0x1c0] sm:$0xff]
        %v1050 = vld [vmem:[%s2 + $0x1c8] sm:$0xff]
        %v1051 = vld [vmem:[%s2 + $0x1d0] sm:$0xff]
        %v1052 = vld [vmem:[%s2 + $0x1d8] sm:$0xff]
        %v1053 = vld [vmem:[%s2 + $0x1e0] sm:$0xff]
        %v1054 = vld [vmem:[%s2 + $0x1e8] sm:$0xff]
        %v1055 = vld [vmem:[%s2 + $0x1f0] sm:$0xff]
        %v1056 = vld [vmem:[%s2 + $0x1f8] sm:$0xff]
        %v1057 = vld [vmem:[%s2 + $0x200] sm:$0xff]
        %v1058 = vld [vmem:[%s2 + $0x208] sm:$0xff]
        %v1059 = vld [vmem:[%s2 + $0x210] sm:$0xff]
        %v1060 = vld [vmem:[%s2 + $0x218] sm:$0xff]
        %v1061 = vld [vmem:[%s2 + $0x220] sm:$0xff]
        %v1062 = vld [vmem:[%s2 + $0x228] sm:$0xff]
        %v1063 = vld [vmem:[%s2 + $0x230] sm:$0xff]
        %v1064 = vld [vmem:[%s2 + $0x238] sm:$0xff]
        %v1065 = vld [vmem:[%s2 + $0x240] sm:$0xff]
        %v1066 = vld [vmem:[%s2 + $0x248] sm:$0xff]
        %v1067 = vld [vmem:[%s2 + $0x250] sm:$0xff]
        %v1068 = vld [vmem:[%s2 + $0x258] sm:$0xff]
        %v1069 = vld [vmem:[%s2 + $0x260] sm:$0xff]
        %v1070 = vld [vmem:[%s2 + $0x268] sm:$0xff]
        %v1071 = vld [vmem:[%s2 + $0x270] sm:$0xff]
        %v1072 = vld [vmem:[%s2 + $0x278] sm:$0xff]
        %v1073 = vld [vmem:[%s2 + $0x280] sm:$0xff]
        %v1074 = vld [vmem:[%s2 + $0x288] sm:$0xff]
        %v1075 = vld [vmem:[%s2 + $0x290] sm:$0xff]
        %v1076 = vld [vmem:[%s2 + $0x298] sm:$0xff]
        %v1077 = vld [vmem:[%s2 + $0x2a0] sm:$0xff]
        %v1078 = vld [vmem:[%s2 + $0x2a8] sm:$0xff]
        %v1079 = vld [vmem:[%s2 + $0x2b0] sm:$0xff]
        %v1080 = vld [vmem:[%s2 + $0x2b8] sm:$0xff]
        %v1081 = vld [vmem:[%s2 + $0x2c0] sm:$0xff]
        %v1082 = vld [vmem:[%s2 + $0x2c8] sm:$0xff]
        %v1083 = vld [vmem:[%s2 + $0x2d0] sm:$0xff]
        %v1084 = vld [vmem:[%s2 + $0x2d8] sm:$0xff]
        %v1085 = vld [vmem:[%s2 + $0x2e0] sm:$0xff]
        %v1086 = vld [vmem:[%s2 + $0x2e8] sm:$0xff]
        %v1087 = vld [vmem:[%s2 + $0x2f0] sm:$0xff]
        %v1088 = vld [vmem:[%s2 + $0x2f8] sm:$0xff]
        %v1089 = vld [vmem:[%s2 + $0x300] sm:$0xff]
        %v1090 = vld [vmem:[%s2 + $0x308] sm:$0xff]
        %v1091 = vld [vmem:[%s2 + $0x310] sm:$0xff]
        %v1092 = vld [vmem:[%s2 + $0x318] sm:$0xff]
        %v1093 = vld [vmem:[%s2 + $0x320] sm:$0xff]
        %v1094 = vld [vmem:[%s2 + $0x328] sm:$0xff]
        %v1095 = vld [vmem:[%s2 + $0x330] sm:$0xff]
        %v1096 = vld [vmem:[%s2 + $0x338] sm:$0xff]
        %v1097 = vld [vmem:[%s2 + $0x340] sm:$0xff]
        %v1098 = vld [vmem:[%s2 + $0x348] sm:$0xff]
        %v1099 = vld [vmem:[%s2 + $0x350] sm:$0xff]
        %v1100 = vld [vmem:[%s2 + $0x358] sm:$0xff]
        %v1101 = vld [vmem:[%s2 + $0x360] sm:$0xff]
        %v1102 = vld [vmem:[%s2 + $0x368] sm:$0xff]
        %v1103 = vld [vmem:[%s2 + $0x370] sm:$0xff]
        %v1104 = vld [vmem:[%s2 + $0x378] sm:$0xff]
        %v1105 = vld [vmem:[%s2 + $0x380] sm:$0xff]
        %v1106 = vld [vmem:[%s2 + $0x388] sm:$0xff]
        %v1107 = vld [vmem:[%s2 + $0x390] sm:$0xff]
        %v1108 = vld [vmem:[%s2 + $0x398] sm:$0xff]
        %v1109 = vld [vmem:[%s2 + $0x3a0] sm:$0xff]
        %v1110 = vld [vmem:[%s2 + $0x3a8] sm:$0xff]
        %v1111 = vld [vmem:[%s2 + $0x3b0] sm:$0xff]
        %v1112 = vld [vmem:[%s2 + $0x3b8] sm:$0xff]
        %v1113 = vld [vmem:[%s2 + $0x3c0] sm:$0xff]
        %v1114 = vld [vmem:[%s2 + $0x3c8] sm:$0xff]
        %v1115 = vld [vmem:[%s2 + $0x3d0] sm:$0xff]
        %v1116 = vld [vmem:[%s2 + $0x3d8] sm:$0xff]
        %v1117 = vld [vmem:[%s2 + $0x3e0] sm:$0xff]
        %v1118 = vld [vmem:[%s2 + $0x3e8] sm:$0xff]
        %v1119 = vld [vmem:[%s2 + $0x3f0] sm:$0xff]
        %v1120 = vld [vmem:[%s2 + $0x3f8] sm:$0xff]
        %v1121 = vld [vmem:[%s2 + $0x400] sm:$0xff]
        %v1122 = vld [vmem:[%s2 + $0x408] sm:$0xff]
        %v1123 = vld [vmem:[%s2 + $0x410] sm:$0xff]
        %v1124 = vld [vmem:[%s2 + $0x418] sm:$0xff]
        %v1125 = vld [vmem:[%s2 + $0x420] sm:$0xff]
        %v1126 = vld [vmem:[%s2 + $0x428] sm:$0xff]
        %v1127 = vld [vmem:[%s2 + $0x430] sm:$0xff]
        %v1128 = vld [vmem:[%s2 + $0x438] sm:$0xff]
        %v1129 = vld [vmem:[%s2 + $0x440] sm:$0xff]
        %v1130 = vld [vmem:[%s2 + $0x448] sm:$0xff]
        %v1131 = vld [vmem:[%s2 + $0x450] sm:$0xff]
        %v1132 = vld [vmem:[%s2 + $0x458] sm:$0xff]
        %v1133 = vld [vmem:[%s2 + $0x460] sm:$0xff]
        %v1134 = vld [vmem:[%s2 + $0x468] sm:$0xff]
        %v1135 = vld [vmem:[%s2 + $0x470] sm:$0xff]
        %v1136 = vld [vmem:[%s2 + $0x478] sm:$0xff]
        %v1137 = vld [vmem:[%s2 + $0x480] sm:$0xff]
        %v1138 = vld [vmem:[%s2 + $0x488] sm:$0xff]
        %v1139 = vld [vmem:[%s2 + $0x490] sm:$0xff]
        %v1140 = vld [vmem:[%s2 + $0x498] sm:$0xff]
        %v1141 = vld [vmem:[%s2 + $0x4a0] sm:$0xff]
        %v1142 = vld [vmem:[%s2 + $0x4a8] sm:$0xff]
        %v1143 = vld [vmem:[%s2 + $0x4b0] sm:$0xff]
        %v1144 = vld [vmem:[%s2 + $0x4b8] sm:$0xff]
        %v1145 = vld [vmem:[%s2 + $0x4c0] sm:$0xff]
        %v1146 = vld [vmem:[%s2 + $0x4c8] sm:$0xff]
        %v1147 = vld [vmem:[%s2 + $0x4d0] sm:$0xff]
        %v1148 = vld [vmem:[%s2 + $0x4d8] sm:$0xff]
        %v1149 = vld [vmem:[%s2 + $0x4e0] sm:$0xff]
        %v1150 = vld [vmem:[%s2 + $0x4e8] sm:$0xff]
        %v1151 = vld [vmem:[%s2 + $0x4f0] sm:$0xff]
        %v1152 = vld [vmem:[%s2 + $0x4f8] sm:$0xff]
        %v1153 = vld [vmem:[%s2 + $0x500] sm:$0xff]
        %v1154 = vld [vmem:[%s2 + $0x508] sm:$0xff]
        %v1155 = vld [vmem:[%s2 + $0x510] sm:$0xff]
        %v1156 = vld [vmem:[%s2 + $0x518] sm:$0xff]
        %v1157 = vld [vmem:[%s2 + $0x520] sm:$0xff]
        %v1158 = vld [vmem:[%s2 + $0x528] sm:$0xff]
        %v1159 = vld [vmem:[%s2 + $0x530] sm:$0xff]
        %v1160 = vld [vmem:[%s2 + $0x538] sm:$0xff]
        %v1161 = vld [vmem:[%s2 + $0x540] sm:$0xff]
        %v1162 = vld [vmem:[%s2 + $0x548] sm:$0xff]
        %v1163 = vld [vmem:[%s2 + $0x550] sm:$0xff]
        %v1164 = vld [vmem:[%s2 + $0x558] sm:$0xff]
        %v1165 = vld [vmem:[%s2 + $0x560] sm:$0xff]
        %v1166 = vld [vmem:[%s2 + $0x568] sm:$0xff]
        %v1167 = vld [vmem:[%s2 + $0x570] sm:$0xff]
        %v1168 = vld [vmem:[%s2 + $0x578] sm:$0xff]
        %v1169 = vld [vmem:[%s2 + $0x580] sm:$0xff]
        %v1170 = vld [vmem:[%s2 + $0x588] sm:$0xff]
        %v1171 = vld [vmem:[%s2 + $0x590] sm:$0xff]
        %v1172 = vld [vmem:[%s2 + $0x598] sm:$0xff]
        %v1173 = vld [vmem:[%s2 + $0x5a0] sm:$0xff]
        %v1174 = vld [vmem:[%s2 + $0x5a8] sm:$0xff]
        %v1175 = vld [vmem:[%s2 + $0x5b0] sm:$0xff]
        %v1176 = vld [vmem:[%s2 + $0x5b8] sm:$0xff]
        %v1177 = vld [vmem:[%s2 + $0x5c0] sm:$0xff]
        %v1178 = vld [vmem:[%s2 + $0x5c8] sm:$0xff]
        %v1179 = vld [vmem:[%s2 + $0x5d0] sm:$0xff]
        %v1180 = vld [vmem:[%s2 + $0x5d8] sm:$0xf]
        %s1181 = scalar_lea.vmem %s204, 16 [#allocation2]
        %v1182 = vld [vmem:[%s1181] sm:$0xff]
        %v1183 = vld [vmem:[%s1181 + $0x8] sm:$0xff]
        %s1184 = scalar_lea.vmem %s1, 1824
        %v1185 = vld [vmem:[%s1184] sm:$0xff]
        %v1186 = vld [vmem:[%s1184 + $0x8] sm:$0xff]
        %v1187 = vld [vmem:[%s1184 + $0x10] sm:$0xff]
        %v1188 = vld [vmem:[%s1184 + $0x18] sm:$0xff]
        %v1189 = vld [vmem:[%s1184 + $0x20] sm:$0xff]
        %v1190 = vld [vmem:[%s1184 + $0x28] sm:$0xff]
        %v1191 = vld [vmem:[%s1184 + $0x30] sm:$0xff]
        %v1192 = vld [vmem:[%s1184 + $0x38] sm:$0xff]
        %v1193 = vld [vmem:[%s1184 + $0x40] sm:$0xff]
        %v1194 = vld [vmem:[%s1184 + $0x48] sm:$0xff]
        %v1195 = vld [vmem:[%s1184 + $0x50] sm:$0xff]
        %v1196 = vld [vmem:[%s1184 + $0x58] sm:$0xff]
        %v1197 = vld [vmem:[%s1184 + $0x60] sm:$0xff]
        %v1198 = vld [vmem:[%s1184 + $0x68] sm:$0xff]
        %v1199 = vld [vmem:[%s1184 + $0x70] sm:$0xff]
        %v1200 = vld [vmem:[%s1184 + $0x78] sm:$0xff]
        %v1201 = vld [vmem:[%s1184 + $0x80] sm:$0xff]
        %v1202 = vld [vmem:[%s1184 + $0x88] sm:$0xff]
        %v1203 = vld [vmem:[%s1184 + $0x90] sm:$0xff]
        %v1204 = vld [vmem:[%s1184 + $0x98] sm:$0xff]
        %v1205 = vld [vmem:[%s1184 + $0xa0] sm:$0xff]
        %v1206 = vld [vmem:[%s1184 + $0xa8] sm:$0xff]
        %v1207 = vld [vmem:[%s1184 + $0xb0] sm:$0xff]
        %v1208 = vld [vmem:[%s1184 + $0xb8] sm:$0xff]
        %v1209 = vld [vmem:[%s1184 + $0xc0] sm:$0xff]
        %v1210 = vld [vmem:[%s1184 + $0xc8] sm:$0xff]
        %v1211 = vld [vmem:[%s1184 + $0xd0] sm:$0xff]
        %v1212 = vld [vmem:[%s1184 + $0xd8] sm:$0xff]
        %v1213 = vld [vmem:[%s1184 + $0xe0] sm:$0xff]
        %v1214 = vld [vmem:[%s1184 + $0xe8] sm:$0xff]
        %v1215 = vld [vmem:[%s1184 + $0xf0] sm:$0xff]
        %v1216 = vld [vmem:[%s1184 + $0xf8] sm:$0xff]
        %v1217 = vld [vmem:[%s1184 + $0x100] sm:$0xff]
        %v1218 = vld [vmem:[%s1184 + $0x108] sm:$0xff]
        %v1219 = vld [vmem:[%s1184 + $0x110] sm:$0xff]
        %v1220 = vld [vmem:[%s1184 + $0x118] sm:$0xff]
        %v1221 = vld [vmem:[%s1184 + $0x120] sm:$0xff]
        %v1222 = vld [vmem:[%s1184 + $0x128] sm:$0xff]
        %v1223 = vld [vmem:[%s1184 + $0x130] sm:$0xff]
        %v1224 = vld [vmem:[%s1184 + $0x138] sm:$0xff]
        %v1225 = vld [vmem:[%s1184 + $0x140] sm:$0xff]
        %v1226 = vld [vmem:[%s1184 + $0x148] sm:$0xff]
        %v1227 = vld [vmem:[%s1184 + $0x150] sm:$0xff]
        %v1228 = vld [vmem:[%s1184 + $0x158] sm:$0xff]
        %v1229 = vld [vmem:[%s1184 + $0x160] sm:$0xff]
        %v1230 = vld [vmem:[%s1184 + $0x168] sm:$0xff]
        %v1231 = vld [vmem:[%s1184 + $0x170] sm:$0xff]
        %v1232 = vld [vmem:[%s1184 + $0x178] sm:$0xff]
        %v1233 = vld [vmem:[%s1184 + $0x180] sm:$0xff]
        %v1234 = vld [vmem:[%s1184 + $0x188] sm:$0xff]
        %v1235 = vld [vmem:[%s1184 + $0x190] sm:$0xff]
        %v1236 = vld [vmem:[%s1184 + $0x198] sm:$0xff]
        %v1237 = vld [vmem:[%s1184 + $0x1a0] sm:$0xff]
        %v1238 = vld [vmem:[%s1184 + $0x1a8] sm:$0xff]
        %v1239 = vld [vmem:[%s1184 + $0x1b0] sm:$0xff]
        %v1240 = vld [vmem:[%s1184 + $0x1b8] sm:$0xff]
        %v1241 = vld [vmem:[%s1184 + $0x1c0] sm:$0xff]
        %v1242 = vld [vmem:[%s1184 + $0x1c8] sm:$0xff]
        %v1243 = vld [vmem:[%s1184 + $0x1d0] sm:$0xff]
        %v1244 = vld [vmem:[%s1184 + $0x1d8] sm:$0xff]
        %v1245 = vld [vmem:[%s1184 + $0x1e0] sm:$0xff]
        %v1246 = vld [vmem:[%s1184 + $0x1e8] sm:$0xff]
        %v1247 = vld [vmem:[%s1184 + $0x1f0] sm:$0xff]
        %v1248 = vld [vmem:[%s1184 + $0x1f8] sm:$0xff]
        %v1249 = vld [vmem:[%s1184 + $0x200] sm:$0xff]
        %v1250 = vld [vmem:[%s1184 + $0x208] sm:$0xff]
        %v1251 = vld [vmem:[%s1184 + $0x210] sm:$0xff]
        %v1252 = vld [vmem:[%s1184 + $0x218] sm:$0xff]
        %v1253 = vld [vmem:[%s1184 + $0x220] sm:$0xff]
        %v1254 = vld [vmem:[%s1184 + $0x228] sm:$0xff]
        %v1255 = vld [vmem:[%s1184 + $0x230] sm:$0xff]
        %v1256 = vld [vmem:[%s1184 + $0x238] sm:$0xff]
        %v1257 = vld [vmem:[%s1184 + $0x240] sm:$0xff]
        %v1258 = vld [vmem:[%s1184 + $0x248] sm:$0xff]
        %v1259 = vld [vmem:[%s1184 + $0x250] sm:$0xff]
        %v1260 = vld [vmem:[%s1184 + $0x258] sm:$0xff]
        %v1261 = vld [vmem:[%s1184 + $0x260] sm:$0xff]
        %v1262 = vld [vmem:[%s1184 + $0x268] sm:$0xff]
        %v1263 = vld [vmem:[%s1184 + $0x270] sm:$0xff]
        %v1264 = vld [vmem:[%s1184 + $0x278] sm:$0xff]
        %v1265 = vld [vmem:[%s1184 + $0x280] sm:$0xff]
        %v1266 = vld [vmem:[%s1184 + $0x288] sm:$0xff]
        %v1267 = vld [vmem:[%s1184 + $0x290] sm:$0xff]
        %v1268 = vld [vmem:[%s1184 + $0x298] sm:$0xff]
        %v1269 = vld [vmem:[%s1184 + $0x2a0] sm:$0xff]
        %v1270 = vld [vmem:[%s1184 + $0x2a8] sm:$0xff]
        %v1271 = vld [vmem:[%s1184 + $0x2b0] sm:$0xff]
        %v1272 = vld [vmem:[%s1184 + $0x2b8] sm:$0xff]
        %v1273 = vld [vmem:[%s1184 + $0x2c0] sm:$0xff]
        %v1274 = vld [vmem:[%s1184 + $0x2c8] sm:$0xff]
        %v1275 = vld [vmem:[%s1184 + $0x2d0] sm:$0xff]
        %v1276 = vld [vmem:[%s1184 + $0x2d8] sm:$0xff]
        %v1277 = vld [vmem:[%s1184 + $0x2e0] sm:$0xff]
        %v1278 = vld [vmem:[%s1184 + $0x2e8] sm:$0xff]
        %v1279 = vld [vmem:[%s1184 + $0x2f0] sm:$0xff]
        %v1280 = vld [vmem:[%s1184 + $0x2f8] sm:$0xff]
        %v1281 = vld [vmem:[%s1184 + $0x300] sm:$0xff]
        %v1282 = vld [vmem:[%s1184 + $0x308] sm:$0xff]
        %v1283 = vld [vmem:[%s1184 + $0x310] sm:$0xff]
        %v1284 = vld [vmem:[%s1184 + $0x318] sm:$0xff]
        %v1285 = vld [vmem:[%s1184 + $0x320] sm:$0xff]
        %v1286 = vld [vmem:[%s1184 + $0x328] sm:$0xff]
        %v1287 = vld [vmem:[%s1184 + $0x330] sm:$0xff]
        %v1288 = vld [vmem:[%s1184 + $0x338] sm:$0xff]
        %v1289 = vld [vmem:[%s1184 + $0x340] sm:$0xff]
        %v1290 = vld [vmem:[%s1184 + $0x348] sm:$0xff]
        %v1291 = vld [vmem:[%s1184 + $0x350] sm:$0xff]
        %v1292 = vld [vmem:[%s1184 + $0x358] sm:$0xff]
        %v1293 = vld [vmem:[%s1184 + $0x360] sm:$0xff]
        %v1294 = vld [vmem:[%s1184 + $0x368] sm:$0xff]
        %v1295 = vld [vmem:[%s1184 + $0x370] sm:$0xff]
        %v1296 = vld [vmem:[%s1184 + $0x378] sm:$0xff]
        %v1297 = vld [vmem:[%s1184 + $0x380] sm:$0xff]
        %v1298 = vld [vmem:[%s1184 + $0x388] sm:$0xff]
        %v1299 = vld [vmem:[%s1184 + $0x390] sm:$0xff]
        %v1300 = vld [vmem:[%s1184 + $0x398] sm:$0xff]
        %v1301 = vld [vmem:[%s1184 + $0x3a0] sm:$0xff]
        %v1302 = vld [vmem:[%s1184 + $0x3a8] sm:$0xff]
        %v1303 = vld [vmem:[%s1184 + $0x3b0] sm:$0xff]
        %v1304 = vld [vmem:[%s1184 + $0x3b8] sm:$0xff]
        %v1305 = vld [vmem:[%s1184 + $0x3c0] sm:$0xff]
        %v1306 = vld [vmem:[%s1184 + $0x3c8] sm:$0xff]
        %v1307 = vld [vmem:[%s1184 + $0x3d0] sm:$0xff]
        %v1308 = vld [vmem:[%s1184 + $0x3d8] sm:$0xff]
        %v1309 = vld [vmem:[%s1184 + $0x3e0] sm:$0xff]
        %v1310 = vld [vmem:[%s1184 + $0x3e8] sm:$0xff]
        %v1311 = vld [vmem:[%s1184 + $0x3f0] sm:$0xff]
        %v1312 = vld [vmem:[%s1184 + $0x3f8] sm:$0xff]
        %v1313 = vld [vmem:[%s1184 + $0x400] sm:$0xff]
        %v1314 = vld [vmem:[%s1184 + $0x408] sm:$0xff]
        %v1315 = vld [vmem:[%s1184 + $0x410] sm:$0xff]
        %v1316 = vld [vmem:[%s1184 + $0x418] sm:$0xff]
        %v1317 = vld [vmem:[%s1184 + $0x420] sm:$0xff]
        %v1318 = vld [vmem:[%s1184 + $0x428] sm:$0xff]
        %v1319 = vld [vmem:[%s1184 + $0x430] sm:$0xff]
        %v1320 = vld [vmem:[%s1184 + $0x438] sm:$0xff]
        %v1321 = vld [vmem:[%s1184 + $0x440] sm:$0xff]
        %v1322 = vld [vmem:[%s1184 + $0x448] sm:$0xff]
        %v1323 = vld [vmem:[%s1184 + $0x450] sm:$0xff]
        %v1324 = vld [vmem:[%s1184 + $0x458] sm:$0xff]
        %v1325 = vld [vmem:[%s1184 + $0x460] sm:$0xff]
        %v1326 = vld [vmem:[%s1184 + $0x468] sm:$0xff]
        %v1327 = vld [vmem:[%s1184 + $0x470] sm:$0xff]
        %v1328 = vld [vmem:[%s1184 + $0x478] sm:$0xff]
        %v1329 = vld [vmem:[%s1184 + $0x480] sm:$0xff]
        %v1330 = vld [vmem:[%s1184 + $0x488] sm:$0xff]
        %v1331 = vld [vmem:[%s1184 + $0x490] sm:$0xff]
        %v1332 = vld [vmem:[%s1184 + $0x498] sm:$0xff]
        %v1333 = vld [vmem:[%s1184 + $0x4a0] sm:$0xff]
        %v1334 = vld [vmem:[%s1184 + $0x4a8] sm:$0xff]
        %v1335 = vld [vmem:[%s1184 + $0x4b0] sm:$0xff]
        %v1336 = vld [vmem:[%s1184 + $0x4b8] sm:$0xff]
        %v1337 = vld [vmem:[%s1184 + $0x4c0] sm:$0xff]
        %v1338 = vld [vmem:[%s1184 + $0x4c8] sm:$0xff]
        %v1339 = vld [vmem:[%s1184 + $0x4d0] sm:$0xff]
        %v1340 = vld [vmem:[%s1184 + $0x4d8] sm:$0xff]
        %v1341 = vld [vmem:[%s1184 + $0x4e0] sm:$0xff]
        %v1342 = vld [vmem:[%s1184 + $0x4e8] sm:$0xff]
        %v1343 = vld [vmem:[%s1184 + $0x4f0] sm:$0xff]
        %v1344 = vld [vmem:[%s1184 + $0x4f8] sm:$0xff]
        %v1345 = vld [vmem:[%s1184 + $0x500] sm:$0xff]
        %v1346 = vld [vmem:[%s1184 + $0x508] sm:$0xff]
        %v1347 = vld [vmem:[%s1184 + $0x510] sm:$0xff]
        %v1348 = vld [vmem:[%s1184 + $0x518] sm:$0xff]
        %v1349 = vld [vmem:[%s1184 + $0x520] sm:$0xff]
        %v1350 = vld [vmem:[%s1184 + $0x528] sm:$0xff]
        %v1351 = vld [vmem:[%s1184 + $0x530] sm:$0xff]
        %v1352 = vld [vmem:[%s1184 + $0x538] sm:$0xff]
        %v1353 = vld [vmem:[%s1184 + $0x540] sm:$0xff]
        %v1354 = vld [vmem:[%s1184 + $0x548] sm:$0xff]
        %v1355 = vld [vmem:[%s1184 + $0x550] sm:$0xff]
        %v1356 = vld [vmem:[%s1184 + $0x558] sm:$0xff]
        %v1357 = vld [vmem:[%s1184 + $0x560] sm:$0xff]
        %v1358 = vld [vmem:[%s1184 + $0x568] sm:$0xff]
        %v1359 = vld [vmem:[%s1184 + $0x570] sm:$0xff]
        %v1360 = vld [vmem:[%s1184 + $0x578] sm:$0xff]
        %v1361 = vld [vmem:[%s1184 + $0x580] sm:$0xff]
        %v1362 = vld [vmem:[%s1184 + $0x588] sm:$0xff]
        %v1363 = vld [vmem:[%s1184 + $0x590] sm:$0xff]
        %v1364 = vld [vmem:[%s1184 + $0x598] sm:$0xff]
        %v1365 = vld [vmem:[%s1184 + $0x5a0] sm:$0xff]
        %v1366 = vld [vmem:[%s1184 + $0x5a8] sm:$0xff]
        %v1367 = vld [vmem:[%s1184 + $0x5b0] sm:$0xff]
        %v1368 = vld [vmem:[%s1184 + $0x5b8] sm:$0xff]
        %v1369 = vld [vmem:[%s1184 + $0x5c0] sm:$0xff]
        %v1370 = vld [vmem:[%s1184 + $0x5c8] sm:$0xff]
        %v1371 = vld [vmem:[%s1184 + $0x5d0] sm:$0xff]
        %v1372 = vld [vmem:[%s1184 + $0x5d8] sm:$0xff]
        %v1373 = vld [vmem:[%s1184 + $0x5e0] sm:$0xff]
        %v1374 = vld [vmem:[%s1184 + $0x5e8] sm:$0xff]
        %v1375 = vld [vmem:[%s1184 + $0x5f0] sm:$0xff]
        %v1376 = vld [vmem:[%s1184 + $0x5f8] sm:$0xff]
        %v1377 = vld [vmem:[%s1184 + $0x600] sm:$0xff]
        %v1378 = vld [vmem:[%s1184 + $0x608] sm:$0xff]
        %v1379 = vld [vmem:[%s1184 + $0x610] sm:$0xff]
        %v1380 = vld [vmem:[%s1184 + $0x618] sm:$0xff]
        %v1381 = vld [vmem:[%s1184 + $0x620] sm:$0xff]
        %v1382 = vld [vmem:[%s1184 + $0x628] sm:$0xff]
        %v1383 = vld [vmem:[%s1184 + $0x630] sm:$0xff]
        %v1384 = vld [vmem:[%s1184 + $0x638] sm:$0xff]
        %v1385 = vld [vmem:[%s1184 + $0x640] sm:$0xff]
        %v1386 = vld [vmem:[%s1184 + $0x648] sm:$0xff]
        %v1387 = vld [vmem:[%s1184 + $0x650] sm:$0xff]
        %v1388 = vld [vmem:[%s1184 + $0x658] sm:$0xff]
        %v1389 = vld [vmem:[%s1184 + $0x660] sm:$0xff]
        %v1390 = vld [vmem:[%s1184 + $0x668] sm:$0xff]
        %v1391 = vld [vmem:[%s1184 + $0x670] sm:$0xff]
        %v1392 = vld [vmem:[%s1184 + $0x678] sm:$0xff]
        %v1393 = vld [vmem:[%s1184 + $0x680] sm:$0xff]
        %v1394 = vld [vmem:[%s1184 + $0x688] sm:$0xff]
        %v1395 = vld [vmem:[%s1184 + $0x690] sm:$0xff]
        %v1396 = vld [vmem:[%s1184 + $0x698] sm:$0xff]
        %v1397 = vld [vmem:[%s1184 + $0x6a0] sm:$0xff]
        %v1398 = vld [vmem:[%s1184 + $0x6a8] sm:$0xff]
        %v1399 = vld [vmem:[%s1184 + $0x6b0] sm:$0xff]
        %v1400 = vld [vmem:[%s1184 + $0x6b8] sm:$0xff]
        %v1401 = vld [vmem:[%s1184 + $0x6c0] sm:$0x1f]
        %v1402 = vld [vmem:[%s1184 + $0x6c8] sm:$0x1f]
        %v1403 = vld [vmem:[%s1184 + $0x6d0] sm:$0x1f]
        %v1404 = vld [vmem:[%s1184 + $0x6d8] sm:$0x1f]
        %v1405 = vld [vmem:[%s1184 + $0x6e0] sm:$0x1f]
        %v1406 = vld [vmem:[%s1184 + $0x6e8] sm:$0x1f]
        %v1407 = vld [vmem:[%s1184 + $0x6f0] sm:$0x1f]
        %v1408 = vld [vmem:[%s1184 + $0x6f8] sm:$0x1f]
        %v1409 = vld [vmem:[%s1184 + $0x700] sm:$0x1f]
        %v1410 = vld [vmem:[%s1184 + $0x708] sm:$0x1f]
        %v1411 = vld [vmem:[%s1184 + $0x710] sm:$0x1f]
        %v1412 = vld [vmem:[%s1184 + $0x718] sm:$0x1f]
        %v1414 = vsel %vm460, %v1183, 0
        %v1417 = vsel %vm464, %v1401, 0
        %v1420 = vsel %vm464, %v1402, 0
        %v1423 = vsel %vm464, %v1403, 0
        %v1426 = vsel %vm464, %v1404, 0
        %v1429 = vsel %vm464, %v1405, 0
        %v1432 = vsel %vm464, %v1406, 0
        %v1435 = vsel %vm464, %v1407, 0
        %v1438 = vsel %vm464, %v1408, 0
        %v1441 = vsel %vm464, %v1409, 0
        %v1444 = vsel %vm464, %v1410, 0
        %v1447 = vsel %vm464, %v1411, 0
        %v1450 = vsel %vm464, %v1412, 0
        %1452 = vmatpush.msra.mxu0 %v1365
        %1453 = vmatpush.msra.mxu0 %v1353
        %1454 = vmatpush.msra.mxu0 %v1341
        %1455 = vmatpush.msra.mxu0 %v1329
        %1456 = vmatpush.msra.mxu0 %v1317
        %1457 = vmatpush.msra.mxu0 %v1305
        %1458 = vmatpush.msra.mxu0 %v1293
        %1459 = vmatpush.msra.mxu0 %v1281
        %1460 = vmatpush.msra.mxu0 %v1269
        %1461 = vmatpush.msra.mxu0 %v1257
        %1462 = vmatpush.msra.mxu0 %v1245
        %1463 = vmatpush.msra.mxu0 %v1233
        %1464 = vmatpush.msra.mxu0 %v1221
        %1465 = vmatpush.msra.mxu0 %v1209
        %1466 = vmatpush.msra.mxu0 %v1197
        %1467 = vmatpush.msra.mxu0 %v1185
        %1468 = vmatmul.f32.gmra.mxu0 %v1182
        %v1469 = vpop.f32.mrf.mxu0
        %v1470 = vadd.f32 0.0, %v1469
        %1471 = vdwg.mxu0
        %1472 = vmatpush.msra.mxu0 0.0
        %1473 = vmatpush.msra.mxu0 0.0
        %1474 = vmatpush.msra.mxu0 0.0
        %1475 = vmatpush.msra.mxu0 0.0
        %1476 = vmatpush.msra.mxu0 0.0
        %1477 = vmatpush.msra.mxu0 0.0
        %1478 = vmatpush.msra.mxu0 0.0
        %1479 = vmatpush.msra.mxu0 0.0
        %1480 = vmatpush.msra.mxu0 0.0
        %1481 = vmatpush.msra.mxu0 0.0
        %1482 = vmatpush.msra.mxu0 0.0
        %1483 = vmatpush.msra.mxu0 0.0
        %1484 = vmatpush.msra.mxu0 0.0
        %1485 = vmatpush.msra.mxu0 %v1417
        %1486 = vmatpush.msra.mxu0 %v1389
        %1487 = vmatpush.msra.mxu0 %v1377
        %1488 = vmatmul.f32.gmra.mxu0 %v1414
        %v1489 = vpop.f32.mrf.mxu0
        %v1490 = vadd.f32 %v1470, %v1489
        %1491 = vdwg.mxu0
        %1492 = vmatpush.msra.mxu0 %v1366
        %1493 = vmatpush.msra.mxu0 %v1354
        %1494 = vmatpush.msra.mxu0 %v1342
        %1495 = vmatpush.msra.mxu0 %v1330
        %1496 = vmatpush.msra.mxu0 %v1318
        %1497 = vmatpush.msra.mxu0 %v1306
        %1498 = vmatpush.msra.mxu0 %v1294
        %1499 = vmatpush.msra.mxu0 %v1282
        %1500 = vmatpush.msra.mxu0 %v1270
        %1501 = vmatpush.msra.mxu0 %v1258
        %1502 = vmatpush.msra.mxu0 %v1246
        %1503 = vmatpush.msra.mxu0 %v1234
        %1504 = vmatpush.msra.mxu0 %v1222
        %1505 = vmatpush.msra.mxu0 %v1210
        %1506 = vmatpush.msra.mxu0 %v1198
        %1507 = vmatpush.msra.mxu0 %v1186
        %1508 = vmatmul.f32.gmra.mxu0 %v1182
        %v1509 = vpop.f32.mrf.mxu0
        %v1510 = vadd.f32 0.0, %v1509
        %1511 = vdwg.mxu0
        %1512 = vmatpush.msra.mxu0 0.0
        %1513 = vmatpush.msra.mxu0 0.0
        %1514 = vmatpush.msra.mxu0 0.0
        %1515 = vmatpush.msra.mxu0 0.0
        %1516 = vmatpush.msra.mxu0 0.0
        %1517 = vmatpush.msra.mxu0 0.0
        %1518 = vmatpush.msra.mxu0 0.0
        %1519 = vmatpush.msra.mxu0 0.0
        %1520 = vmatpush.msra.mxu0 0.0
        %1521 = vmatpush.msra.mxu0 0.0
        %1522 = vmatpush.msra.mxu0 0.0
        %1523 = vmatpush.msra.mxu0 0.0
        %1524 = vmatpush.msra.mxu0 0.0
        %1525 = vmatpush.msra.mxu0 %v1420
        %1526 = vmatpush.msra.mxu0 %v1390
        %1527 = vmatpush.msra.mxu0 %v1378
        %1528 = vmatmul.f32.gmra.mxu0 %v1414
        %v1529 = vpop.f32.mrf.mxu0
        %v1530 = vadd.f32 %v1510, %v1529
        %1531 = vdwg.mxu0
        %1532 = vmatpush.msra.mxu0 %v1367
        %1533 = vmatpush.msra.mxu0 %v1355
        %1534 = vmatpush.msra.mxu0 %v1343
        %1535 = vmatpush.msra.mxu0 %v1331
        %1536 = vmatpush.msra.mxu0 %v1319
        %1537 = vmatpush.msra.mxu0 %v1307
        %1538 = vmatpush.msra.mxu0 %v1295
        %1539 = vmatpush.msra.mxu0 %v1283
        %1540 = vmatpush.msra.mxu0 %v1271
        %1541 = vmatpush.msra.mxu0 %v1259
        %1542 = vmatpush.msra.mxu0 %v1247
        %1543 = vmatpush.msra.mxu0 %v1235
        %1544 = vmatpush.msra.mxu0 %v1223
        %1545 = vmatpush.msra.mxu0 %v1211
        %1546 = vmatpush.msra.mxu0 %v1199
        %1547 = vmatpush.msra.mxu0 %v1187
        %1548 = vmatmul.f32.gmra.mxu0 %v1182
        %v1549 = vpop.f32.mrf.mxu0
        %v1550 = vadd.f32 0.0, %v1549
        %1551 = vdwg.mxu0
        %1552 = vmatpush.msra.mxu0 0.0
        %1553 = vmatpush.msra.mxu0 0.0
        %1554 = vmatpush.msra.mxu0 0.0
        %1555 = vmatpush.msra.mxu0 0.0
        %1556 = vmatpush.msra.mxu0 0.0
        %1557 = vmatpush.msra.mxu0 0.0
        %1558 = vmatpush.msra.mxu0 0.0
        %1559 = vmatpush.msra.mxu0 0.0
        %1560 = vmatpush.msra.mxu0 0.0
        %1561 = vmatpush.msra.mxu0 0.0
        %1562 = vmatpush.msra.mxu0 0.0
        %1563 = vmatpush.msra.mxu0 0.0
        %1564 = vmatpush.msra.mxu0 0.0
        %1565 = vmatpush.msra.mxu0 %v1423
        %1566 = vmatpush.msra.mxu0 %v1391
        %1567 = vmatpush.msra.mxu0 %v1379
        %1568 = vmatmul.f32.gmra.mxu0 %v1414
        %v1569 = vpop.f32.mrf.mxu0
        %v1570 = vadd.f32 %v1550, %v1569
        %1571 = vdwg.mxu0
        %1572 = vmatpush.msra.mxu0 %v1368
        %1573 = vmatpush.msra.mxu0 %v1356
        %1574 = vmatpush.msra.mxu0 %v1344
        %1575 = vmatpush.msra.mxu0 %v1332
        %1576 = vmatpush.msra.mxu0 %v1320
        %1577 = vmatpush.msra.mxu0 %v1308
        %1578 = vmatpush.msra.mxu0 %v1296
        %1579 = vmatpush.msra.mxu0 %v1284
        %1580 = vmatpush.msra.mxu0 %v1272
        %1581 = vmatpush.msra.mxu0 %v1260
        %1582 = vmatpush.msra.mxu0 %v1248
        %1583 = vmatpush.msra.mxu0 %v1236
        %1584 = vmatpush.msra.mxu0 %v1224
        %1585 = vmatpush.msra.mxu0 %v1212
        %1586 = vmatpush.msra.mxu0 %v1200
        %1587 = vmatpush.msra.mxu0 %v1188
        %1588 = vmatmul.f32.gmra.mxu0 %v1182
        %v1589 = vpop.f32.mrf.mxu0
        %v1590 = vadd.f32 0.0, %v1589
        %1591 = vdwg.mxu0
        %1592 = vmatpush.msra.mxu0 0.0
        %1593 = vmatpush.msra.mxu0 0.0
        %1594 = vmatpush.msra.mxu0 0.0
        %1595 = vmatpush.msra.mxu0 0.0
        %1596 = vmatpush.msra.mxu0 0.0
        %1597 = vmatpush.msra.mxu0 0.0
        %1598 = vmatpush.msra.mxu0 0.0
        %1599 = vmatpush.msra.mxu0 0.0
        %1600 = vmatpush.msra.mxu0 0.0
        %1601 = vmatpush.msra.mxu0 0.0
        %1602 = vmatpush.msra.mxu0 0.0
        %1603 = vmatpush.msra.mxu0 0.0
        %1604 = vmatpush.msra.mxu0 0.0
        %1605 = vmatpush.msra.mxu0 %v1426
        %1606 = vmatpush.msra.mxu0 %v1392
        %1607 = vmatpush.msra.mxu0 %v1380
        %1608 = vmatmul.f32.gmra.mxu0 %v1414
        %v1609 = vpop.f32.mrf.mxu0
        %v1610 = vadd.f32 %v1590, %v1609
        %1611 = vdwg.mxu0
        %1612 = vmatpush.msra.mxu0 %v1369
        %1613 = vmatpush.msra.mxu0 %v1357
        %1614 = vmatpush.msra.mxu0 %v1345
        %1615 = vmatpush.msra.mxu0 %v1333
        %1616 = vmatpush.msra.mxu0 %v1321
        %1617 = vmatpush.msra.mxu0 %v1309
        %1618 = vmatpush.msra.mxu0 %v1297
        %1619 = vmatpush.msra.mxu0 %v1285
        %1620 = vmatpush.msra.mxu0 %v1273
        %1621 = vmatpush.msra.mxu0 %v1261
        %1622 = vmatpush.msra.mxu0 %v1249
        %1623 = vmatpush.msra.mxu0 %v1237
        %1624 = vmatpush.msra.mxu0 %v1225
        %1625 = vmatpush.msra.mxu0 %v1213
        %1626 = vmatpush.msra.mxu0 %v1201
        %1627 = vmatpush.msra.mxu0 %v1189
        %1628 = vmatmul.f32.gmra.mxu0 %v1182
        %v1629 = vpop.f32.mrf.mxu0
        %v1630 = vadd.f32 0.0, %v1629
        %1631 = vdwg.mxu0
        %1632 = vmatpush.msra.mxu0 0.0
        %1633 = vmatpush.msra.mxu0 0.0
        %1634 = vmatpush.msra.mxu0 0.0
        %1635 = vmatpush.msra.mxu0 0.0
        %1636 = vmatpush.msra.mxu0 0.0
        %1637 = vmatpush.msra.mxu0 0.0
        %1638 = vmatpush.msra.mxu0 0.0
        %1639 = vmatpush.msra.mxu0 0.0
        %1640 = vmatpush.msra.mxu0 0.0
        %1641 = vmatpush.msra.mxu0 0.0
        %1642 = vmatpush.msra.mxu0 0.0
        %1643 = vmatpush.msra.mxu0 0.0
        %1644 = vmatpush.msra.mxu0 0.0
        %1645 = vmatpush.msra.mxu0 %v1429
        %1646 = vmatpush.msra.mxu0 %v1393
        %1647 = vmatpush.msra.mxu0 %v1381
        %1648 = vmatmul.f32.gmra.mxu0 %v1414
        %v1649 = vpop.f32.mrf.mxu0
        %v1650 = vadd.f32 %v1630, %v1649
        %1651 = vdwg.mxu0
        %1652 = vmatpush.msra.mxu0 %v1370
        %1653 = vmatpush.msra.mxu0 %v1358
        %1654 = vmatpush.msra.mxu0 %v1346
        %1655 = vmatpush.msra.mxu0 %v1334
        %1656 = vmatpush.msra.mxu0 %v1322
        %1657 = vmatpush.msra.mxu0 %v1310
        %1658 = vmatpush.msra.mxu0 %v1298
        %1659 = vmatpush.msra.mxu0 %v1286
        %1660 = vmatpush.msra.mxu0 %v1274
        %1661 = vmatpush.msra.mxu0 %v1262
        %1662 = vmatpush.msra.mxu0 %v1250
        %1663 = vmatpush.msra.mxu0 %v1238
        %1664 = vmatpush.msra.mxu0 %v1226
        %1665 = vmatpush.msra.mxu0 %v1214
        %1666 = vmatpush.msra.mxu0 %v1202
        %1667 = vmatpush.msra.mxu0 %v1190
        %1668 = vmatmul.f32.gmra.mxu0 %v1182
        %v1669 = vpop.f32.mrf.mxu0
        %v1670 = vadd.f32 0.0, %v1669
        %1671 = vdwg.mxu0
        %1672 = vmatpush.msra.mxu0 0.0
        %1673 = vmatpush.msra.mxu0 0.0
        %1674 = vmatpush.msra.mxu0 0.0
        %1675 = vmatpush.msra.mxu0 0.0
        %1676 = vmatpush.msra.mxu0 0.0
        %1677 = vmatpush.msra.mxu0 0.0
        %1678 = vmatpush.msra.mxu0 0.0
        %1679 = vmatpush.msra.mxu0 0.0
        %1680 = vmatpush.msra.mxu0 0.0
        %1681 = vmatpush.msra.mxu0 0.0
        %1682 = vmatpush.msra.mxu0 0.0
        %1683 = vmatpush.msra.mxu0 0.0
        %1684 = vmatpush.msra.mxu0 0.0
        %1685 = vmatpush.msra.mxu0 %v1432
        %1686 = vmatpush.msra.mxu0 %v1394
        %1687 = vmatpush.msra.mxu0 %v1382
        %1688 = vmatmul.f32.gmra.mxu0 %v1414
        %v1689 = vpop.f32.mrf.mxu0
        %v1690 = vadd.f32 %v1670, %v1689
        %1691 = vdwg.mxu0
        %1692 = vmatpush.msra.mxu0 %v1371
        %1693 = vmatpush.msra.mxu0 %v1359
        %1694 = vmatpush.msra.mxu0 %v1347
        %1695 = vmatpush.msra.mxu0 %v1335
        %1696 = vmatpush.msra.mxu0 %v1323
        %1697 = vmatpush.msra.mxu0 %v1311
        %1698 = vmatpush.msra.mxu0 %v1299
        %1699 = vmatpush.msra.mxu0 %v1287
        %1700 = vmatpush.msra.mxu0 %v1275
        %1701 = vmatpush.msra.mxu0 %v1263
        %1702 = vmatpush.msra.mxu0 %v1251
        %1703 = vmatpush.msra.mxu0 %v1239
        %1704 = vmatpush.msra.mxu0 %v1227
        %1705 = vmatpush.msra.mxu0 %v1215
        %1706 = vmatpush.msra.mxu0 %v1203
        %1707 = vmatpush.msra.mxu0 %v1191
        %1708 = vmatmul.f32.gmra.mxu0 %v1182
        %v1709 = vpop.f32.mrf.mxu0
        %v1710 = vadd.f32 0.0, %v1709
        %1711 = vdwg.mxu0
        %1712 = vmatpush.msra.mxu0 0.0
        %1713 = vmatpush.msra.mxu0 0.0
        %1714 = vmatpush.msra.mxu0 0.0
        %1715 = vmatpush.msra.mxu0 0.0
        %1716 = vmatpush.msra.mxu0 0.0
        %1717 = vmatpush.msra.mxu0 0.0
        %1718 = vmatpush.msra.mxu0 0.0
        %1719 = vmatpush.msra.mxu0 0.0
        %1720 = vmatpush.msra.mxu0 0.0
        %1721 = vmatpush.msra.mxu0 0.0
        %1722 = vmatpush.msra.mxu0 0.0
        %1723 = vmatpush.msra.mxu0 0.0
        %1724 = vmatpush.msra.mxu0 0.0
        %1725 = vmatpush.msra.mxu0 %v1435
        %1726 = vmatpush.msra.mxu0 %v1395
        %1727 = vmatpush.msra.mxu0 %v1383
        %1728 = vmatmul.f32.gmra.mxu0 %v1414
        %v1729 = vpop.f32.mrf.mxu0
        %v1730 = vadd.f32 %v1710, %v1729
        %1731 = vdwg.mxu0
        %1732 = vmatpush.msra.mxu0 %v1372
        %1733 = vmatpush.msra.mxu0 %v1360
        %1734 = vmatpush.msra.mxu0 %v1348
        %1735 = vmatpush.msra.mxu0 %v1336
        %1736 = vmatpush.msra.mxu0 %v1324
        %1737 = vmatpush.msra.mxu0 %v1312
        %1738 = vmatpush.msra.mxu0 %v1300
        %1739 = vmatpush.msra.mxu0 %v1288
        %1740 = vmatpush.msra.mxu0 %v1276
        %1741 = vmatpush.msra.mxu0 %v1264
        %1742 = vmatpush.msra.mxu0 %v1252
        %1743 = vmatpush.msra.mxu0 %v1240
        %1744 = vmatpush.msra.mxu0 %v1228
        %1745 = vmatpush.msra.mxu0 %v1216
        %1746 = vmatpush.msra.mxu0 %v1204
        %1747 = vmatpush.msra.mxu0 %v1192
        %1748 = vmatmul.f32.gmra.mxu0 %v1182
        %v1749 = vpop.f32.mrf.mxu0
        %v1750 = vadd.f32 0.0, %v1749
        %1751 = vdwg.mxu0
        %1752 = vmatpush.msra.mxu0 0.0
        %1753 = vmatpush.msra.mxu0 0.0
        %1754 = vmatpush.msra.mxu0 0.0
        %1755 = vmatpush.msra.mxu0 0.0
        %1756 = vmatpush.msra.mxu0 0.0
        %1757 = vmatpush.msra.mxu0 0.0
        %1758 = vmatpush.msra.mxu0 0.0
        %1759 = vmatpush.msra.mxu0 0.0
        %1760 = vmatpush.msra.mxu0 0.0
        %1761 = vmatpush.msra.mxu0 0.0
        %1762 = vmatpush.msra.mxu0 0.0
        %1763 = vmatpush.msra.mxu0 0.0
        %1764 = vmatpush.msra.mxu0 0.0
        %1765 = vmatpush.msra.mxu0 %v1438
        %1766 = vmatpush.msra.mxu0 %v1396
        %1767 = vmatpush.msra.mxu0 %v1384
        %1768 = vmatmul.f32.gmra.mxu0 %v1414
        %v1769 = vpop.f32.mrf.mxu0
        %v1770 = vadd.f32 %v1750, %v1769
        %1771 = vdwg.mxu0
        %1772 = vmatpush.msra.mxu0 %v1373
        %1773 = vmatpush.msra.mxu0 %v1361
        %1774 = vmatpush.msra.mxu0 %v1349
        %1775 = vmatpush.msra.mxu0 %v1337
        %1776 = vmatpush.msra.mxu0 %v1325
        %1777 = vmatpush.msra.mxu0 %v1313
        %1778 = vmatpush.msra.mxu0 %v1301
        %1779 = vmatpush.msra.mxu0 %v1289
        %1780 = vmatpush.msra.mxu0 %v1277
        %1781 = vmatpush.msra.mxu0 %v1265
        %1782 = vmatpush.msra.mxu0 %v1253
        %1783 = vmatpush.msra.mxu0 %v1241
        %1784 = vmatpush.msra.mxu0 %v1229
        %1785 = vmatpush.msra.mxu0 %v1217
        %1786 = vmatpush.msra.mxu0 %v1205
        %1787 = vmatpush.msra.mxu0 %v1193
        %1788 = vmatmul.f32.gmra.mxu0 %v1182
        %v1789 = vpop.f32.mrf.mxu0
        %v1790 = vadd.f32 0.0, %v1789
        %1791 = vdwg.mxu0
        %1792 = vmatpush.msra.mxu0 0.0
        %1793 = vmatpush.msra.mxu0 0.0
        %1794 = vmatpush.msra.mxu0 0.0
        %1795 = vmatpush.msra.mxu0 0.0
        %1796 = vmatpush.msra.mxu0 0.0
        %1797 = vmatpush.msra.mxu0 0.0
        %1798 = vmatpush.msra.mxu0 0.0
        %1799 = vmatpush.msra.mxu0 0.0
        %1800 = vmatpush.msra.mxu0 0.0
        %1801 = vmatpush.msra.mxu0 0.0
        %1802 = vmatpush.msra.mxu0 0.0
        %1803 = vmatpush.msra.mxu0 0.0
        %1804 = vmatpush.msra.mxu0 0.0
        %1805 = vmatpush.msra.mxu0 %v1441
        %1806 = vmatpush.msra.mxu0 %v1397
        %1807 = vmatpush.msra.mxu0 %v1385
        %1808 = vmatmul.f32.gmra.mxu0 %v1414
        %v1809 = vpop.f32.mrf.mxu0
        %v1810 = vadd.f32 %v1790, %v1809
        %1811 = vdwg.mxu0
        %1812 = vmatpush.msra.mxu0 %v1374
        %1813 = vmatpush.msra.mxu0 %v1362
        %1814 = vmatpush.msra.mxu0 %v1350
        %1815 = vmatpush.msra.mxu0 %v1338
        %1816 = vmatpush.msra.mxu0 %v1326
        %1817 = vmatpush.msra.mxu0 %v1314
        %1818 = vmatpush.msra.mxu0 %v1302
        %1819 = vmatpush.msra.mxu0 %v1290
        %1820 = vmatpush.msra.mxu0 %v1278
        %1821 = vmatpush.msra.mxu0 %v1266
        %1822 = vmatpush.msra.mxu0 %v1254
        %1823 = vmatpush.msra.mxu0 %v1242
        %1824 = vmatpush.msra.mxu0 %v1230
        %1825 = vmatpush.msra.mxu0 %v1218
        %1826 = vmatpush.msra.mxu0 %v1206
        %1827 = vmatpush.msra.mxu0 %v1194
        %1828 = vmatmul.f32.gmra.mxu0 %v1182
        %v1829 = vpop.f32.mrf.mxu0
        %v1830 = vadd.f32 0.0, %v1829
        %1831 = vdwg.mxu0
        %1832 = vmatpush.msra.mxu0 0.0
        %1833 = vmatpush.msra.mxu0 0.0
        %1834 = vmatpush.msra.mxu0 0.0
        %1835 = vmatpush.msra.mxu0 0.0
        %1836 = vmatpush.msra.mxu0 0.0
        %1837 = vmatpush.msra.mxu0 0.0
        %1838 = vmatpush.msra.mxu0 0.0
        %1839 = vmatpush.msra.mxu0 0.0
        %1840 = vmatpush.msra.mxu0 0.0
        %1841 = vmatpush.msra.mxu0 0.0
        %1842 = vmatpush.msra.mxu0 0.0
        %1843 = vmatpush.msra.mxu0 0.0
        %1844 = vmatpush.msra.mxu0 0.0
        %1845 = vmatpush.msra.mxu0 %v1444
        %1846 = vmatpush.msra.mxu0 %v1398
        %1847 = vmatpush.msra.mxu0 %v1386
        %1848 = vmatmul.f32.gmra.mxu0 %v1414
        %v1849 = vpop.f32.mrf.mxu0
        %v1850 = vadd.f32 %v1830, %v1849
        %1851 = vdwg.mxu0
        %1852 = vmatpush.msra.mxu0 %v1375
        %1853 = vmatpush.msra.mxu0 %v1363
        %1854 = vmatpush.msra.mxu0 %v1351
        %1855 = vmatpush.msra.mxu0 %v1339
        %1856 = vmatpush.msra.mxu0 %v1327
        %1857 = vmatpush.msra.mxu0 %v1315
        %1858 = vmatpush.msra.mxu0 %v1303
        %1859 = vmatpush.msra.mxu0 %v1291
        %1860 = vmatpush.msra.mxu0 %v1279
        %1861 = vmatpush.msra.mxu0 %v1267
        %1862 = vmatpush.msra.mxu0 %v1255
        %1863 = vmatpush.msra.mxu0 %v1243
        %1864 = vmatpush.msra.mxu0 %v1231
        %1865 = vmatpush.msra.mxu0 %v1219
        %1866 = vmatpush.msra.mxu0 %v1207
        %1867 = vmatpush.msra.mxu0 %v1195
        %1868 = vmatmul.f32.gmra.mxu0 %v1182
        %v1869 = vpop.f32.mrf.mxu0
        %v1870 = vadd.f32 0.0, %v1869
        %1871 = vdwg.mxu0
        %1872 = vmatpush.msra.mxu0 0.0
        %1873 = vmatpush.msra.mxu0 0.0
        %1874 = vmatpush.msra.mxu0 0.0
        %1875 = vmatpush.msra.mxu0 0.0
        %1876 = vmatpush.msra.mxu0 0.0
        %1877 = vmatpush.msra.mxu0 0.0
        %1878 = vmatpush.msra.mxu0 0.0
        %1879 = vmatpush.msra.mxu0 0.0
        %1880 = vmatpush.msra.mxu0 0.0
        %1881 = vmatpush.msra.mxu0 0.0
        %1882 = vmatpush.msra.mxu0 0.0
        %1883 = vmatpush.msra.mxu0 0.0
        %1884 = vmatpush.msra.mxu0 0.0
        %1885 = vmatpush.msra.mxu0 %v1447
        %1886 = vmatpush.msra.mxu0 %v1399
        %1887 = vmatpush.msra.mxu0 %v1387
        %1888 = vmatmul.f32.gmra.mxu0 %v1414
        %v1889 = vpop.f32.mrf.mxu0
        %v1890 = vadd.f32 %v1870, %v1889
        %1891 = vdwg.mxu0
        %1892 = vmatpush.msra.mxu0 %v1376
        %1893 = vmatpush.msra.mxu0 %v1364
        %1894 = vmatpush.msra.mxu0 %v1352
        %1895 = vmatpush.msra.mxu0 %v1340
        %1896 = vmatpush.msra.mxu0 %v1328
        %1897 = vmatpush.msra.mxu0 %v1316
        %1898 = vmatpush.msra.mxu0 %v1304
        %1899 = vmatpush.msra.mxu0 %v1292
        %1900 = vmatpush.msra.mxu0 %v1280
        %1901 = vmatpush.msra.mxu0 %v1268
        %1902 = vmatpush.msra.mxu0 %v1256
        %1903 = vmatpush.msra.mxu0 %v1244
        %1904 = vmatpush.msra.mxu0 %v1232
        %1905 = vmatpush.msra.mxu0 %v1220
        %1906 = vmatpush.msra.mxu0 %v1208
        %1907 = vmatpush.msra.mxu0 %v1196
        %1908 = vmatmul.f32.gmra.mxu0 %v1182
        %v1909 = vpop.f32.mrf.mxu0
        %v1910 = vadd.f32 0.0, %v1909
        %1911 = vdwg.mxu0
        %1912 = vmatpush.msra.mxu0 0.0
        %1913 = vmatpush.msra.mxu0 0.0
        %1914 = vmatpush.msra.mxu0 0.0
        %1915 = vmatpush.msra.mxu0 0.0
        %1916 = vmatpush.msra.mxu0 0.0
        %1917 = vmatpush.msra.mxu0 0.0
        %1918 = vmatpush.msra.mxu0 0.0
        %1919 = vmatpush.msra.mxu0 0.0
        %1920 = vmatpush.msra.mxu0 0.0
        %1921 = vmatpush.msra.mxu0 0.0
        %1922 = vmatpush.msra.mxu0 0.0
        %1923 = vmatpush.msra.mxu0 0.0
        %1924 = vmatpush.msra.mxu0 0.0
        %1925 = vmatpush.msra.mxu0 %v1450
        %1926 = vmatpush.msra.mxu0 %v1400
        %1927 = vmatpush.msra.mxu0 %v1388
        %1928 = vmatmul.f32.gmra.mxu0 %v1414
        %v1929 = vpop.f32.mrf.mxu0
        %v1930 = vadd.f32 %v1910, %v1929
        %1931 = vdwg.mxu0
        %v1932 = vand.u32 2147483647, %v1490
        %v1933 = vand.u32 2147483647, %v1530
        %v1934 = vand.u32 2147483647, %v1570
        %v1935 = vand.u32 2147483647, %v1610
        %v1936 = vand.u32 2147483647, %v1650
        %v1937 = vand.u32 2147483647, %v1690
        %v1938 = vand.u32 2147483647, %v1730
        %v1939 = vand.u32 2147483647, %v1770
        %v1940 = vand.u32 2147483647, %v1810
        %v1941 = vand.u32 2147483647, %v1850
        %v1942 = vand.u32 2147483647, %v1890
        %v1943 = vand.u32 2147483647, %v1930
        %s1944 = scalar_lea.vmem %s2, 1504
        %v1945 = vld [vmem:[%s1944] sm:$0xff]
        %v1946 = vld [vmem:[%s1944 + $0x8] sm:$0xff]
        %v1947 = vld [vmem:[%s1944 + $0x10] sm:$0xff]
        %v1948 = vld [vmem:[%s1944 + $0x18] sm:$0xff]
        %v1949 = vld [vmem:[%s1944 + $0x20] sm:$0xff]
        %v1950 = vld [vmem:[%s1944 + $0x28] sm:$0xff]
        %v1951 = vld [vmem:[%s1944 + $0x30] sm:$0xff]
        %v1952 = vld [vmem:[%s1944 + $0x38] sm:$0xff]
        %v1953 = vld [vmem:[%s1944 + $0x40] sm:$0xff]
        %v1954 = vld [vmem:[%s1944 + $0x48] sm:$0xff]
        %v1955 = vld [vmem:[%s1944 + $0x50] sm:$0xff]
        %v1956 = vld [vmem:[%s1944 + $0x58] sm:$0xff]
        %v1957 = vld [vmem:[%s1944 + $0x60] sm:$0xff]
        %v1958 = vld [vmem:[%s1944 + $0x68] sm:$0xff]
        %v1959 = vld [vmem:[%s1944 + $0x70] sm:$0xff]
        %v1960 = vld [vmem:[%s1944 + $0x78] sm:$0xff]
        %v1961 = vld [vmem:[%s1944 + $0x80] sm:$0xff]
        %v1962 = vld [vmem:[%s1944 + $0x88] sm:$0xff]
        %v1963 = vld [vmem:[%s1944 + $0x90] sm:$0xff]
        %v1964 = vld [vmem:[%s1944 + $0x98] sm:$0xff]
        %v1965 = vld [vmem:[%s1944 + $0xa0] sm:$0xff]
        %v1966 = vld [vmem:[%s1944 + $0xa8] sm:$0xff]
        %v1967 = vld [vmem:[%s1944 + $0xb0] sm:$0xff]
        %v1968 = vld [vmem:[%s1944 + $0xb8] sm:$0xff]
        %v1969 = vld [vmem:[%s1944 + $0xc0] sm:$0xff]
        %v1970 = vld [vmem:[%s1944 + $0xc8] sm:$0xff]
        %v1971 = vld [vmem:[%s1944 + $0xd0] sm:$0xff]
        %v1972 = vld [vmem:[%s1944 + $0xd8] sm:$0xff]
        %v1973 = vld [vmem:[%s1944 + $0xe0] sm:$0xff]
        %v1974 = vld [vmem:[%s1944 + $0xe8] sm:$0xff]
        %v1975 = vld [vmem:[%s1944 + $0xf0] sm:$0xff]
        %v1976 = vld [vmem:[%s1944 + $0xf8] sm:$0xff]
        %v1977 = vld [vmem:[%s1944 + $0x100] sm:$0xff]
        %v1978 = vld [vmem:[%s1944 + $0x108] sm:$0xff]
        %v1979 = vld [vmem:[%s1944 + $0x110] sm:$0xff]
        %v1980 = vld [vmem:[%s1944 + $0x118] sm:$0xff]
        %v1981 = vld [vmem:[%s1944 + $0x120] sm:$0xff]
        %v1982 = vld [vmem:[%s1944 + $0x128] sm:$0xff]
        %v1983 = vld [vmem:[%s1944 + $0x130] sm:$0xff]
        %v1984 = vld [vmem:[%s1944 + $0x138] sm:$0xff]
        %v1985 = vld [vmem:[%s1944 + $0x140] sm:$0xff]
        %v1986 = vld [vmem:[%s1944 + $0x148] sm:$0xff]
        %v1987 = vld [vmem:[%s1944 + $0x150] sm:$0xff]
        %v1988 = vld [vmem:[%s1944 + $0x158] sm:$0xff]
        %v1989 = vld [vmem:[%s1944 + $0x160] sm:$0xff]
        %v1990 = vld [vmem:[%s1944 + $0x168] sm:$0xff]
        %v1991 = vld [vmem:[%s1944 + $0x170] sm:$0xff]
        %v1992 = vld [vmem:[%s1944 + $0x178] sm:$0xff]
        %v1993 = vld [vmem:[%s1944 + $0x180] sm:$0xff]
        %v1994 = vld [vmem:[%s1944 + $0x188] sm:$0xff]
        %v1995 = vld [vmem:[%s1944 + $0x190] sm:$0xff]
        %v1996 = vld [vmem:[%s1944 + $0x198] sm:$0xff]
        %v1997 = vld [vmem:[%s1944 + $0x1a0] sm:$0xff]
        %v1998 = vld [vmem:[%s1944 + $0x1a8] sm:$0xff]
        %v1999 = vld [vmem:[%s1944 + $0x1b0] sm:$0xff]
        %v2000 = vld [vmem:[%s1944 + $0x1b8] sm:$0xff]
        %v2001 = vld [vmem:[%s1944 + $0x1c0] sm:$0xff]
        %v2002 = vld [vmem:[%s1944 + $0x1c8] sm:$0xff]
        %v2003 = vld [vmem:[%s1944 + $0x1d0] sm:$0xff]
        %v2004 = vld [vmem:[%s1944 + $0x1d8] sm:$0xff]
        %v2005 = vld [vmem:[%s1944 + $0x1e0] sm:$0xff]
        %v2006 = vld [vmem:[%s1944 + $0x1e8] sm:$0xff]
        %v2007 = vld [vmem:[%s1944 + $0x1f0] sm:$0xff]
        %v2008 = vld [vmem:[%s1944 + $0x1f8] sm:$0xff]
        %v2009 = vld [vmem:[%s1944 + $0x200] sm:$0xff]
        %v2010 = vld [vmem:[%s1944 + $0x208] sm:$0xff]
        %v2011 = vld [vmem:[%s1944 + $0x210] sm:$0xff]
        %v2012 = vld [vmem:[%s1944 + $0x218] sm:$0xff]
        %v2013 = vld [vmem:[%s1944 + $0x220] sm:$0xff]
        %v2014 = vld [vmem:[%s1944 + $0x228] sm:$0xff]
        %v2015 = vld [vmem:[%s1944 + $0x230] sm:$0xff]
        %v2016 = vld [vmem:[%s1944 + $0x238] sm:$0xff]
        %v2017 = vld [vmem:[%s1944 + $0x240] sm:$0xff]
        %v2018 = vld [vmem:[%s1944 + $0x248] sm:$0xff]
        %v2019 = vld [vmem:[%s1944 + $0x250] sm:$0xff]
        %v2020 = vld [vmem:[%s1944 + $0x258] sm:$0xff]
        %v2021 = vld [vmem:[%s1944 + $0x260] sm:$0xff]
        %v2022 = vld [vmem:[%s1944 + $0x268] sm:$0xff]
        %v2023 = vld [vmem:[%s1944 + $0x270] sm:$0xff]
        %v2024 = vld [vmem:[%s1944 + $0x278] sm:$0xff]
        %v2025 = vld [vmem:[%s1944 + $0x280] sm:$0xff]
        %v2026 = vld [vmem:[%s1944 + $0x288] sm:$0xff]
        %v2027 = vld [vmem:[%s1944 + $0x290] sm:$0xff]
        %v2028 = vld [vmem:[%s1944 + $0x298] sm:$0xff]
        %v2029 = vld [vmem:[%s1944 + $0x2a0] sm:$0xff]
        %v2030 = vld [vmem:[%s1944 + $0x2a8] sm:$0xff]
        %v2031 = vld [vmem:[%s1944 + $0x2b0] sm:$0xff]
        %v2032 = vld [vmem:[%s1944 + $0x2b8] sm:$0xff]
        %v2033 = vld [vmem:[%s1944 + $0x2c0] sm:$0xff]
        %v2034 = vld [vmem:[%s1944 + $0x2c8] sm:$0xff]
        %v2035 = vld [vmem:[%s1944 + $0x2d0] sm:$0xff]
        %v2036 = vld [vmem:[%s1944 + $0x2d8] sm:$0xff]
        %v2037 = vld [vmem:[%s1944 + $0x2e0] sm:$0xff]
        %v2038 = vld [vmem:[%s1944 + $0x2e8] sm:$0xff]
        %v2039 = vld [vmem:[%s1944 + $0x2f0] sm:$0xff]
        %v2040 = vld [vmem:[%s1944 + $0x2f8] sm:$0xff]
        %v2041 = vld [vmem:[%s1944 + $0x300] sm:$0xff]
        %v2042 = vld [vmem:[%s1944 + $0x308] sm:$0xff]
        %v2043 = vld [vmem:[%s1944 + $0x310] sm:$0xff]
        %v2044 = vld [vmem:[%s1944 + $0x318] sm:$0xff]
        %v2045 = vld [vmem:[%s1944 + $0x320] sm:$0xff]
        %v2046 = vld [vmem:[%s1944 + $0x328] sm:$0xff]
        %v2047 = vld [vmem:[%s1944 + $0x330] sm:$0xff]
        %v2048 = vld [vmem:[%s1944 + $0x338] sm:$0xff]
        %v2049 = vld [vmem:[%s1944 + $0x340] sm:$0xff]
        %v2050 = vld [vmem:[%s1944 + $0x348] sm:$0xff]
        %v2051 = vld [vmem:[%s1944 + $0x350] sm:$0xff]
        %v2052 = vld [vmem:[%s1944 + $0x358] sm:$0xff]
        %v2053 = vld [vmem:[%s1944 + $0x360] sm:$0xff]
        %v2054 = vld [vmem:[%s1944 + $0x368] sm:$0xff]
        %v2055 = vld [vmem:[%s1944 + $0x370] sm:$0xff]
        %v2056 = vld [vmem:[%s1944 + $0x378] sm:$0xff]
        %v2057 = vld [vmem:[%s1944 + $0x380] sm:$0xff]
        %v2058 = vld [vmem:[%s1944 + $0x388] sm:$0xff]
        %v2059 = vld [vmem:[%s1944 + $0x390] sm:$0xff]
        %v2060 = vld [vmem:[%s1944 + $0x398] sm:$0xff]
        %v2061 = vld [vmem:[%s1944 + $0x3a0] sm:$0xff]
        %v2062 = vld [vmem:[%s1944 + $0x3a8] sm:$0xff]
        %v2063 = vld [vmem:[%s1944 + $0x3b0] sm:$0xff]
        %v2064 = vld [vmem:[%s1944 + $0x3b8] sm:$0xff]
        %v2065 = vld [vmem:[%s1944 + $0x3c0] sm:$0xff]
        %v2066 = vld [vmem:[%s1944 + $0x3c8] sm:$0xff]
        %v2067 = vld [vmem:[%s1944 + $0x3d0] sm:$0xff]
        %v2068 = vld [vmem:[%s1944 + $0x3d8] sm:$0xff]
        %v2069 = vld [vmem:[%s1944 + $0x3e0] sm:$0xff]
        %v2070 = vld [vmem:[%s1944 + $0x3e8] sm:$0xff]
        %v2071 = vld [vmem:[%s1944 + $0x3f0] sm:$0xff]
        %v2072 = vld [vmem:[%s1944 + $0x3f8] sm:$0xff]
        %v2073 = vld [vmem:[%s1944 + $0x400] sm:$0xff]
        %v2074 = vld [vmem:[%s1944 + $0x408] sm:$0xff]
        %v2075 = vld [vmem:[%s1944 + $0x410] sm:$0xff]
        %v2076 = vld [vmem:[%s1944 + $0x418] sm:$0xff]
        %v2077 = vld [vmem:[%s1944 + $0x420] sm:$0xff]
        %v2078 = vld [vmem:[%s1944 + $0x428] sm:$0xff]
        %v2079 = vld [vmem:[%s1944 + $0x430] sm:$0xff]
        %v2080 = vld [vmem:[%s1944 + $0x438] sm:$0xff]
        %v2081 = vld [vmem:[%s1944 + $0x440] sm:$0xff]
        %v2082 = vld [vmem:[%s1944 + $0x448] sm:$0xff]
        %v2083 = vld [vmem:[%s1944 + $0x450] sm:$0xff]
        %v2084 = vld [vmem:[%s1944 + $0x458] sm:$0xff]
        %v2085 = vld [vmem:[%s1944 + $0x460] sm:$0xff]
        %v2086 = vld [vmem:[%s1944 + $0x468] sm:$0xff]
        %v2087 = vld [vmem:[%s1944 + $0x470] sm:$0xff]
        %v2088 = vld [vmem:[%s1944 + $0x478] sm:$0xff]
        %v2089 = vld [vmem:[%s1944 + $0x480] sm:$0xff]
        %v2090 = vld [vmem:[%s1944 + $0x488] sm:$0xff]
        %v2091 = vld [vmem:[%s1944 + $0x490] sm:$0xff]
        %v2092 = vld [vmem:[%s1944 + $0x498] sm:$0xff]
        %v2093 = vld [vmem:[%s1944 + $0x4a0] sm:$0xff]
        %v2094 = vld [vmem:[%s1944 + $0x4a8] sm:$0xff]
        %v2095 = vld [vmem:[%s1944 + $0x4b0] sm:$0xff]
        %v2096 = vld [vmem:[%s1944 + $0x4b8] sm:$0xff]
        %v2097 = vld [vmem:[%s1944 + $0x4c0] sm:$0xff]
        %v2098 = vld [vmem:[%s1944 + $0x4c8] sm:$0xff]
        %v2099 = vld [vmem:[%s1944 + $0x4d0] sm:$0xff]
        %v2100 = vld [vmem:[%s1944 + $0x4d8] sm:$0xff]
        %v2101 = vld [vmem:[%s1944 + $0x4e0] sm:$0xff]
        %v2102 = vld [vmem:[%s1944 + $0x4e8] sm:$0xff]
        %v2103 = vld [vmem:[%s1944 + $0x4f0] sm:$0xff]
        %v2104 = vld [vmem:[%s1944 + $0x4f8] sm:$0xff]
        %v2105 = vld [vmem:[%s1944 + $0x500] sm:$0xff]
        %v2106 = vld [vmem:[%s1944 + $0x508] sm:$0xff]
        %v2107 = vld [vmem:[%s1944 + $0x510] sm:$0xff]
        %v2108 = vld [vmem:[%s1944 + $0x518] sm:$0xff]
        %v2109 = vld [vmem:[%s1944 + $0x520] sm:$0xff]
        %v2110 = vld [vmem:[%s1944 + $0x528] sm:$0xff]
        %v2111 = vld [vmem:[%s1944 + $0x530] sm:$0xff]
        %v2112 = vld [vmem:[%s1944 + $0x538] sm:$0xff]
        %v2113 = vld [vmem:[%s1944 + $0x540] sm:$0xff]
        %v2114 = vld [vmem:[%s1944 + $0x548] sm:$0xff]
        %v2115 = vld [vmem:[%s1944 + $0x550] sm:$0xff]
        %v2116 = vld [vmem:[%s1944 + $0x558] sm:$0xff]
        %v2117 = vld [vmem:[%s1944 + $0x560] sm:$0xff]
        %v2118 = vld [vmem:[%s1944 + $0x568] sm:$0xff]
        %v2119 = vld [vmem:[%s1944 + $0x570] sm:$0xff]
        %v2120 = vld [vmem:[%s1944 + $0x578] sm:$0xff]
        %v2121 = vld [vmem:[%s1944 + $0x580] sm:$0xff]
        %v2122 = vld [vmem:[%s1944 + $0x588] sm:$0xff]
        %v2123 = vld [vmem:[%s1944 + $0x590] sm:$0xff]
        %v2124 = vld [vmem:[%s1944 + $0x598] sm:$0xff]
        %v2125 = vld [vmem:[%s1944 + $0x5a0] sm:$0xff]
        %v2126 = vld [vmem:[%s1944 + $0x5a8] sm:$0xff]
        %v2127 = vld [vmem:[%s1944 + $0x5b0] sm:$0xff]
        %v2128 = vld [vmem:[%s1944 + $0x5b8] sm:$0xff]
        %v2129 = vld [vmem:[%s1944 + $0x5c0] sm:$0xff]
        %v2130 = vld [vmem:[%s1944 + $0x5c8] sm:$0xff]
        %v2131 = vld [vmem:[%s1944 + $0x5d0] sm:$0xff]
        %v2132 = vld [vmem:[%s1944 + $0x5d8] sm:$0xf]
        %vm2133 = vcmask 752640
        %v2135 = vsel %vm2133, %v1943, 0
        %vm2137 = vcmask 1043456
        %v2139 = vsel %vm2137, %v2132, 0
        %2141 = vmatpush.msra.mxu0 %v1960
        %2142 = vmatpush.msra.mxu0 %v1959
        %2143 = vmatpush.msra.mxu0 %v1958
        %2144 = vmatpush.msra.mxu0 %v1957
        %2145 = vmatpush.msra.mxu0 %v1956
        %2146 = vmatpush.msra.mxu0 %v1955
        %2147 = vmatpush.msra.mxu0 %v1954
        %2148 = vmatpush.msra.mxu0 %v1953
        %2149 = vmatpush.msra.mxu0 %v1952
        %2150 = vmatpush.msra.mxu0 %v1951
        %2151 = vmatpush.msra.mxu0 %v1950
        %2152 = vmatpush.msra.mxu0 %v1949
        %2153 = vmatpush.msra.mxu0 %v1948
        %2154 = vmatpush.msra.mxu0 %v1947
        %2155 = vmatpush.msra.mxu0 %v1946
        %2156 = vmatpush.msra.mxu0 %v1945
        %2157 = vmatmul.f32.gmra.mxu0 %v1932
        %v2158 = vpop.f32.mrf.mxu0
        %v2159 = vadd.f32 0.0, %v2158
        %2160 = vdwg.mxu0
        %2161 = vmatpush.msra.mxu0 %v1976
        %2162 = vmatpush.msra.mxu0 %v1975
        %2163 = vmatpush.msra.mxu0 %v1974
        %2164 = vmatpush.msra.mxu0 %v1973
        %2165 = vmatpush.msra.mxu0 %v1972
        %2166 = vmatpush.msra.mxu0 %v1971
        %2167 = vmatpush.msra.mxu0 %v1970
        %2168 = vmatpush.msra.mxu0 %v1969
        %2169 = vmatpush.msra.mxu0 %v1968
        %2170 = vmatpush.msra.mxu0 %v1967
        %2171 = vmatpush.msra.mxu0 %v1966
        %2172 = vmatpush.msra.mxu0 %v1965
        %2173 = vmatpush.msra.mxu0 %v1964
        %2174 = vmatpush.msra.mxu0 %v1963
        %2175 = vmatpush.msra.mxu0 %v1962
        %2176 = vmatpush.msra.mxu0 %v1961
        %2177 = vmatmul.f32.gmra.mxu0 %v1933
        %v2178 = vpop.f32.mrf.mxu0
        %v2179 = vadd.f32 %v2159, %v2178
        %2180 = vdwg.mxu0
        %2181 = vmatpush.msra.mxu0 %v1992
        %2182 = vmatpush.msra.mxu0 %v1991
        %2183 = vmatpush.msra.mxu0 %v1990
        %2184 = vmatpush.msra.mxu0 %v1989
        %2185 = vmatpush.msra.mxu0 %v1988
        %2186 = vmatpush.msra.mxu0 %v1987
        %2187 = vmatpush.msra.mxu0 %v1986
        %2188 = vmatpush.msra.mxu0 %v1985
        %2189 = vmatpush.msra.mxu0 %v1984
        %2190 = vmatpush.msra.mxu0 %v1983
        %2191 = vmatpush.msra.mxu0 %v1982
        %2192 = vmatpush.msra.mxu0 %v1981
        %2193 = vmatpush.msra.mxu0 %v1980
        %2194 = vmatpush.msra.mxu0 %v1979
        %2195 = vmatpush.msra.mxu0 %v1978
        %2196 = vmatpush.msra.mxu0 %v1977
        %2197 = vmatmul.f32.gmra.mxu0 %v1934
        %v2198 = vpop.f32.mrf.mxu0
        %v2199 = vadd.f32 %v2179, %v2198
        %2200 = vdwg.mxu0
        %2201 = vmatpush.msra.mxu0 %v2008
        %2202 = vmatpush.msra.mxu0 %v2007
        %2203 = vmatpush.msra.mxu0 %v2006
        %2204 = vmatpush.msra.mxu0 %v2005
        %2205 = vmatpush.msra.mxu0 %v2004
        %2206 = vmatpush.msra.mxu0 %v2003
        %2207 = vmatpush.msra.mxu0 %v2002
        %2208 = vmatpush.msra.mxu0 %v2001
        %2209 = vmatpush.msra.mxu0 %v2000
        %2210 = vmatpush.msra.mxu0 %v1999
        %2211 = vmatpush.msra.mxu0 %v1998
        %2212 = vmatpush.msra.mxu0 %v1997
        %2213 = vmatpush.msra.mxu0 %v1996
        %2214 = vmatpush.msra.mxu0 %v1995
        %2215 = vmatpush.msra.mxu0 %v1994
        %2216 = vmatpush.msra.mxu0 %v1993
        %2217 = vmatmul.f32.gmra.mxu0 %v1935
        %v2218 = vpop.f32.mrf.mxu0
        %v2219 = vadd.f32 %v2199, %v2218
        %2220 = vdwg.mxu0
        %2221 = vmatpush.msra.mxu0 %v2024
        %2222 = vmatpush.msra.mxu0 %v2023
        %2223 = vmatpush.msra.mxu0 %v2022
        %2224 = vmatpush.msra.mxu0 %v2021
        %2225 = vmatpush.msra.mxu0 %v2020
        %2226 = vmatpush.msra.mxu0 %v2019
        %2227 = vmatpush.msra.mxu0 %v2018
        %2228 = vmatpush.msra.mxu0 %v2017
        %2229 = vmatpush.msra.mxu0 %v2016
        %2230 = vmatpush.msra.mxu0 %v2015
        %2231 = vmatpush.msra.mxu0 %v2014
        %2232 = vmatpush.msra.mxu0 %v2013
        %2233 = vmatpush.msra.mxu0 %v2012
        %2234 = vmatpush.msra.mxu0 %v2011
        %2235 = vmatpush.msra.mxu0 %v2010
        %2236 = vmatpush.msra.mxu0 %v2009
        %2237 = vmatmul.f32.gmra.mxu0 %v1936
        %v2238 = vpop.f32.mrf.mxu0
        %v2239 = vadd.f32 %v2219, %v2238
        %2240 = vdwg.mxu0
        %2241 = vmatpush.msra.mxu0 %v2040
        %2242 = vmatpush.msra.mxu0 %v2039
        %2243 = vmatpush.msra.mxu0 %v2038
        %2244 = vmatpush.msra.mxu0 %v2037
        %2245 = vmatpush.msra.mxu0 %v2036
        %2246 = vmatpush.msra.mxu0 %v2035
        %2247 = vmatpush.msra.mxu0 %v2034
        %2248 = vmatpush.msra.mxu0 %v2033
        %2249 = vmatpush.msra.mxu0 %v2032
        %2250 = vmatpush.msra.mxu0 %v2031
        %2251 = vmatpush.msra.mxu0 %v2030
        %2252 = vmatpush.msra.mxu0 %v2029
        %2253 = vmatpush.msra.mxu0 %v2028
        %2254 = vmatpush.msra.mxu0 %v2027
        %2255 = vmatpush.msra.mxu0 %v2026
        %2256 = vmatpush.msra.mxu0 %v2025
        %2257 = vmatmul.f32.gmra.mxu0 %v1937
        %v2258 = vpop.f32.mrf.mxu0
        %v2259 = vadd.f32 %v2239, %v2258
        %2260 = vdwg.mxu0
        %2261 = vmatpush.msra.mxu0 %v2056
        %2262 = vmatpush.msra.mxu0 %v2055
        %2263 = vmatpush.msra.mxu0 %v2054
        %2264 = vmatpush.msra.mxu0 %v2053
        %2265 = vmatpush.msra.mxu0 %v2052
        %2266 = vmatpush.msra.mxu0 %v2051
        %2267 = vmatpush.msra.mxu0 %v2050
        %2268 = vmatpush.msra.mxu0 %v2049
        %2269 = vmatpush.msra.mxu0 %v2048
        %2270 = vmatpush.msra.mxu0 %v2047
        %2271 = vmatpush.msra.mxu0 %v2046
        %2272 = vmatpush.msra.mxu0 %v2045
        %2273 = vmatpush.msra.mxu0 %v2044
        %2274 = vmatpush.msra.mxu0 %v2043
        %2275 = vmatpush.msra.mxu0 %v2042
        %2276 = vmatpush.msra.mxu0 %v2041
        %2277 = vmatmul.f32.gmra.mxu0 %v1938
        %v2278 = vpop.f32.mrf.mxu0
        %v2279 = vadd.f32 %v2259, %v2278
        %2280 = vdwg.mxu0
        %2281 = vmatpush.msra.mxu0 %v2072
        %2282 = vmatpush.msra.mxu0 %v2071
        %2283 = vmatpush.msra.mxu0 %v2070
        %2284 = vmatpush.msra.mxu0 %v2069
        %2285 = vmatpush.msra.mxu0 %v2068
        %2286 = vmatpush.msra.mxu0 %v2067
        %2287 = vmatpush.msra.mxu0 %v2066
        %2288 = vmatpush.msra.mxu0 %v2065
        %2289 = vmatpush.msra.mxu0 %v2064
        %2290 = vmatpush.msra.mxu0 %v2063
        %2291 = vmatpush.msra.mxu0 %v2062
        %2292 = vmatpush.msra.mxu0 %v2061
        %2293 = vmatpush.msra.mxu0 %v2060
        %2294 = vmatpush.msra.mxu0 %v2059
        %2295 = vmatpush.msra.mxu0 %v2058
        %2296 = vmatpush.msra.mxu0 %v2057
        %2297 = vmatmul.f32.gmra.mxu0 %v1939
        %v2298 = vpop.f32.mrf.mxu0
        %v2299 = vadd.f32 %v2279, %v2298
        %2300 = vdwg.mxu0
        %2301 = vmatpush.msra.mxu0 %v2088
        %2302 = vmatpush.msra.mxu0 %v2087
        %2303 = vmatpush.msra.mxu0 %v2086
        %2304 = vmatpush.msra.mxu0 %v2085
        %2305 = vmatpush.msra.mxu0 %v2084
        %2306 = vmatpush.msra.mxu0 %v2083
        %2307 = vmatpush.msra.mxu0 %v2082
        %2308 = vmatpush.msra.mxu0 %v2081
        %2309 = vmatpush.msra.mxu0 %v2080
        %2310 = vmatpush.msra.mxu0 %v2079
        %2311 = vmatpush.msra.mxu0 %v2078
        %2312 = vmatpush.msra.mxu0 %v2077
        %2313 = vmatpush.msra.mxu0 %v2076
        %2314 = vmatpush.msra.mxu0 %v2075
        %2315 = vmatpush.msra.mxu0 %v2074
        %2316 = vmatpush.msra.mxu0 %v2073
        %2317 = vmatmul.f32.gmra.mxu0 %v1940
        %v2318 = vpop.f32.mrf.mxu0
        %v2319 = vadd.f32 %v2299, %v2318
        %2320 = vdwg.mxu0
        %2321 = vmatpush.msra.mxu0 %v2104
        %2322 = vmatpush.msra.mxu0 %v2103
        %2323 = vmatpush.msra.mxu0 %v2102
        %2324 = vmatpush.msra.mxu0 %v2101
        %2325 = vmatpush.msra.mxu0 %v2100
        %2326 = vmatpush.msra.mxu0 %v2099
        %2327 = vmatpush.msra.mxu0 %v2098
        %2328 = vmatpush.msra.mxu0 %v2097
        %2329 = vmatpush.msra.mxu0 %v2096
        %2330 = vmatpush.msra.mxu0 %v2095
        %2331 = vmatpush.msra.mxu0 %v2094
        %2332 = vmatpush.msra.mxu0 %v2093
        %2333 = vmatpush.msra.mxu0 %v2092
        %2334 = vmatpush.msra.mxu0 %v2091
        %2335 = vmatpush.msra.mxu0 %v2090
        %2336 = vmatpush.msra.mxu0 %v2089
        %2337 = vmatmul.f32.gmra.mxu0 %v1941
        %v2338 = vpop.f32.mrf.mxu0
        %v2339 = vadd.f32 %v2319, %v2338
        %2340 = vdwg.mxu0
        %2341 = vmatpush.msra.mxu0 %v2120
        %2342 = vmatpush.msra.mxu0 %v2119
        %2343 = vmatpush.msra.mxu0 %v2118
        %2344 = vmatpush.msra.mxu0 %v2117
        %2345 = vmatpush.msra.mxu0 %v2116
        %2346 = vmatpush.msra.mxu0 %v2115
        %2347 = vmatpush.msra.mxu0 %v2114
        %2348 = vmatpush.msra.mxu0 %v2113
        %2349 = vmatpush.msra.mxu0 %v2112
        %2350 = vmatpush.msra.mxu0 %v2111
        %2351 = vmatpush.msra.mxu0 %v2110
        %2352 = vmatpush.msra.mxu0 %v2109
        %2353 = vmatpush.msra.mxu0 %v2108
        %2354 = vmatpush.msra.mxu0 %v2107
        %2355 = vmatpush.msra.mxu0 %v2106
        %2356 = vmatpush.msra.mxu0 %v2105
        %2357 = vmatmul.f32.gmra.mxu0 %v1942
        %v2358 = vpop.f32.mrf.mxu0
        %v2359 = vadd.f32 %v2339, %v2358
        %2360 = vdwg.mxu0
        %2361 = vmatpush.msra.mxu0 0.0
        %2362 = vmatpush.msra.mxu0 0.0
        %2363 = vmatpush.msra.mxu0 0.0
        %2364 = vmatpush.msra.mxu0 0.0
        %2365 = vmatpush.msra.mxu0 %v2139
        %2366 = vmatpush.msra.mxu0 %v2131
        %2367 = vmatpush.msra.mxu0 %v2130
        %2368 = vmatpush.msra.mxu0 %v2129
        %2369 = vmatpush.msra.mxu0 %v2128
        %2370 = vmatpush.msra.mxu0 %v2127
        %2371 = vmatpush.msra.mxu0 %v2126
        %2372 = vmatpush.msra.mxu0 %v2125
        %2373 = vmatpush.msra.mxu0 %v2124
        %2374 = vmatpush.msra.mxu0 %v2123
        %2375 = vmatpush.msra.mxu0 %v2122
        %2376 = vmatpush.msra.mxu0 %v2121
        %2377 = vmatmul.f32.gmra.mxu0 %v2135
        %v2378 = vpop.f32.mrf.mxu0
        %v2379 = vadd.f32 %v2359, %v2378
        %2380 = vdwg.mxu0
        %v2382 = vsel %vm2133, %v992, 0
        %v2385 = vsel %vm2137, %v1180, 0
        %2387 = vmatpush.msra.mxu0 %v1008
        %2388 = vmatpush.msra.mxu0 %v1007
        %2389 = vmatpush.msra.mxu0 %v1006
        %2390 = vmatpush.msra.mxu0 %v1005
        %2391 = vmatpush.msra.mxu0 %v1004
        %2392 = vmatpush.msra.mxu0 %v1003
        %2393 = vmatpush.msra.mxu0 %v1002
        %2394 = vmatpush.msra.mxu0 %v1001
        %2395 = vmatpush.msra.mxu0 %v1000
        %2396 = vmatpush.msra.mxu0 %v999
        %2397 = vmatpush.msra.mxu0 %v998
        %2398 = vmatpush.msra.mxu0 %v997
        %2399 = vmatpush.msra.mxu0 %v996
        %2400 = vmatpush.msra.mxu0 %v995
        %2401 = vmatpush.msra.mxu0 %v994
        %2402 = vmatpush.msra.mxu0 %v993
        %2403 = vmatmul.f32.gmra.mxu0 %v981
        %v2404 = vpop.f32.mrf.mxu0
        %v2405 = vadd.f32 %v2379, %v2404
        %2406 = vdwg.mxu0
        %2407 = vmatpush.msra.mxu0 %v1024
        %2408 = vmatpush.msra.mxu0 %v1023
        %2409 = vmatpush.msra.mxu0 %v1022
        %2410 = vmatpush.msra.mxu0 %v1021
        %2411 = vmatpush.msra.mxu0 %v1020
        %2412 = vmatpush.msra.mxu0 %v1019
        %2413 = vmatpush.msra.mxu0 %v1018
        %2414 = vmatpush.msra.mxu0 %v1017
        %2415 = vmatpush.msra.mxu0 %v1016
        %2416 = vmatpush.msra.mxu0 %v1015
        %2417 = vmatpush.msra.mxu0 %v1014
        %2418 = vmatpush.msra.mxu0 %v1013
        %2419 = vmatpush.msra.mxu0 %v1012
        %2420 = vmatpush.msra.mxu0 %v1011
        %2421 = vmatpush.msra.mxu0 %v1010
        %2422 = vmatpush.msra.mxu0 %v1009
        %2423 = vmatmul.f32.gmra.mxu0 %v982
        %v2424 = vpop.f32.mrf.mxu0
        %v2425 = vadd.f32 %v2405, %v2424
        %2426 = vdwg.mxu0
        %2427 = vmatpush.msra.mxu0 %v1040
        %2428 = vmatpush.msra.mxu0 %v1039
        %2429 = vmatpush.msra.mxu0 %v1038
        %2430 = vmatpush.msra.mxu0 %v1037
        %2431 = vmatpush.msra.mxu0 %v1036
        %2432 = vmatpush.msra.mxu0 %v1035
        %2433 = vmatpush.msra.mxu0 %v1034
        %2434 = vmatpush.msra.mxu0 %v1033
        %2435 = vmatpush.msra.mxu0 %v1032
        %2436 = vmatpush.msra.mxu0 %v1031
        %2437 = vmatpush.msra.mxu0 %v1030
        %2438 = vmatpush.msra.mxu0 %v1029
        %2439 = vmatpush.msra.mxu0 %v1028
        %2440 = vmatpush.msra.mxu0 %v1027
        %2441 = vmatpush.msra.mxu0 %v1026
        %2442 = vmatpush.msra.mxu0 %v1025
        %2443 = vmatmul.f32.gmra.mxu0 %v983
        %v2444 = vpop.f32.mrf.mxu0
        %v2445 = vadd.f32 %v2425, %v2444
        %2446 = vdwg.mxu0
        %2447 = vmatpush.msra.mxu0 %v1056
        %2448 = vmatpush.msra.mxu0 %v1055
        %2449 = vmatpush.msra.mxu0 %v1054
        %2450 = vmatpush.msra.mxu0 %v1053
        %2451 = vmatpush.msra.mxu0 %v1052
        %2452 = vmatpush.msra.mxu0 %v1051
        %2453 = vmatpush.msra.mxu0 %v1050
        %2454 = vmatpush.msra.mxu0 %v1049
        %2455 = vmatpush.msra.mxu0 %v1048
        %2456 = vmatpush.msra.mxu0 %v1047
        %2457 = vmatpush.msra.mxu0 %v1046
        %2458 = vmatpush.msra.mxu0 %v1045
        %2459 = vmatpush.msra.mxu0 %v1044
        %2460 = vmatpush.msra.mxu0 %v1043
        %2461 = vmatpush.msra.mxu0 %v1042
        %2462 = vmatpush.msra.mxu0 %v1041
        %2463 = vmatmul.f32.gmra.mxu0 %v984
        %v2464 = vpop.f32.mrf.mxu0
        %v2465 = vadd.f32 %v2445, %v2464
        %2466 = vdwg.mxu0
        %2467 = vmatpush.msra.mxu0 %v1072
        %2468 = vmatpush.msra.mxu0 %v1071
        %2469 = vmatpush.msra.mxu0 %v1070
        %2470 = vmatpush.msra.mxu0 %v1069
        %2471 = vmatpush.msra.mxu0 %v1068
        %2472 = vmatpush.msra.mxu0 %v1067
        %2473 = vmatpush.msra.mxu0 %v1066
        %2474 = vmatpush.msra.mxu0 %v1065
        %2475 = vmatpush.msra.mxu0 %v1064
        %2476 = vmatpush.msra.mxu0 %v1063
        %2477 = vmatpush.msra.mxu0 %v1062
        %2478 = vmatpush.msra.mxu0 %v1061
        %2479 = vmatpush.msra.mxu0 %v1060
        %2480 = vmatpush.msra.mxu0 %v1059
        %2481 = vmatpush.msra.mxu0 %v1058
        %2482 = vmatpush.msra.mxu0 %v1057
        %2483 = vmatmul.f32.gmra.mxu0 %v985
        %v2484 = vpop.f32.mrf.mxu0
        %v2485 = vadd.f32 %v2465, %v2484
        %2486 = vdwg.mxu0
        %2487 = vmatpush.msra.mxu0 %v1088
        %2488 = vmatpush.msra.mxu0 %v1087
        %2489 = vmatpush.msra.mxu0 %v1086
        %2490 = vmatpush.msra.mxu0 %v1085
        %2491 = vmatpush.msra.mxu0 %v1084
        %2492 = vmatpush.msra.mxu0 %v1083
        %2493 = vmatpush.msra.mxu0 %v1082
        %2494 = vmatpush.msra.mxu0 %v1081
        %2495 = vmatpush.msra.mxu0 %v1080
        %2496 = vmatpush.msra.mxu0 %v1079
        %2497 = vmatpush.msra.mxu0 %v1078
        %2498 = vmatpush.msra.mxu0 %v1077
        %2499 = vmatpush.msra.mxu0 %v1076
        %2500 = vmatpush.msra.mxu0 %v1075
        %2501 = vmatpush.msra.mxu0 %v1074
        %2502 = vmatpush.msra.mxu0 %v1073
        %2503 = vmatmul.f32.gmra.mxu0 %v986
        %v2504 = vpop.f32.mrf.mxu0
        %v2505 = vadd.f32 %v2485, %v2504
        %2506 = vdwg.mxu0
        %2507 = vmatpush.msra.mxu0 %v1104
        %2508 = vmatpush.msra.mxu0 %v1103
        %2509 = vmatpush.msra.mxu0 %v1102
        %2510 = vmatpush.msra.mxu0 %v1101
        %2511 = vmatpush.msra.mxu0 %v1100
        %2512 = vmatpush.msra.mxu0 %v1099
        %2513 = vmatpush.msra.mxu0 %v1098
        %2514 = vmatpush.msra.mxu0 %v1097
        %2515 = vmatpush.msra.mxu0 %v1096
        %2516 = vmatpush.msra.mxu0 %v1095
        %2517 = vmatpush.msra.mxu0 %v1094
        %2518 = vmatpush.msra.mxu0 %v1093
        %2519 = vmatpush.msra.mxu0 %v1092
        %2520 = vmatpush.msra.mxu0 %v1091
        %2521 = vmatpush.msra.mxu0 %v1090
        %2522 = vmatpush.msra.mxu0 %v1089
        %2523 = vmatmul.f32.gmra.mxu0 %v987
        %v2524 = vpop.f32.mrf.mxu0
        %v2525 = vadd.f32 %v2505, %v2524
        %2526 = vdwg.mxu0
        %2527 = vmatpush.msra.mxu0 %v1120
        %2528 = vmatpush.msra.mxu0 %v1119
        %2529 = vmatpush.msra.mxu0 %v1118
        %2530 = vmatpush.msra.mxu0 %v1117
        %2531 = vmatpush.msra.mxu0 %v1116
        %2532 = vmatpush.msra.mxu0 %v1115
        %2533 = vmatpush.msra.mxu0 %v1114
        %2534 = vmatpush.msra.mxu0 %v1113
        %2535 = vmatpush.msra.mxu0 %v1112
        %2536 = vmatpush.msra.mxu0 %v1111
        %2537 = vmatpush.msra.mxu0 %v1110
        %2538 = vmatpush.msra.mxu0 %v1109
        %2539 = vmatpush.msra.mxu0 %v1108
        %2540 = vmatpush.msra.mxu0 %v1107
        %2541 = vmatpush.msra.mxu0 %v1106
        %2542 = vmatpush.msra.mxu0 %v1105
        %2543 = vmatmul.f32.gmra.mxu0 %v988
        %v2544 = vpop.f32.mrf.mxu0
        %v2545 = vadd.f32 %v2525, %v2544
        %2546 = vdwg.mxu0
        %2547 = vmatpush.msra.mxu0 %v1136
        %2548 = vmatpush.msra.mxu0 %v1135
        %2549 = vmatpush.msra.mxu0 %v1134
        %2550 = vmatpush.msra.mxu0 %v1133
        %2551 = vmatpush.msra.mxu0 %v1132
        %2552 = vmatpush.msra.mxu0 %v1131
        %2553 = vmatpush.msra.mxu0 %v1130
        %2554 = vmatpush.msra.mxu0 %v1129
        %2555 = vmatpush.msra.mxu0 %v1128
        %2556 = vmatpush.msra.mxu0 %v1127
        %2557 = vmatpush.msra.mxu0 %v1126
        %2558 = vmatpush.msra.mxu0 %v1125
        %2559 = vmatpush.msra.mxu0 %v1124
        %2560 = vmatpush.msra.mxu0 %v1123
        %2561 = vmatpush.msra.mxu0 %v1122
        %2562 = vmatpush.msra.mxu0 %v1121
        %2563 = vmatmul.f32.gmra.mxu0 %v989
        %v2564 = vpop.f32.mrf.mxu0
        %v2565 = vadd.f32 %v2545, %v2564
        %2566 = vdwg.mxu0
        %2567 = vmatpush.msra.mxu0 %v1152
        %2568 = vmatpush.msra.mxu0 %v1151
        %2569 = vmatpush.msra.mxu0 %v1150
        %2570 = vmatpush.msra.mxu0 %v1149
        %2571 = vmatpush.msra.mxu0 %v1148
        %2572 = vmatpush.msra.mxu0 %v1147
        %2573 = vmatpush.msra.mxu0 %v1146
        %2574 = vmatpush.msra.mxu0 %v1145
        %2575 = vmatpush.msra.mxu0 %v1144
        %2576 = vmatpush.msra.mxu0 %v1143
        %2577 = vmatpush.msra.mxu0 %v1142
        %2578 = vmatpush.msra.mxu0 %v1141
        %2579 = vmatpush.msra.mxu0 %v1140
        %2580 = vmatpush.msra.mxu0 %v1139
        %2581 = vmatpush.msra.mxu0 %v1138
        %2582 = vmatpush.msra.mxu0 %v1137
        %2583 = vmatmul.f32.gmra.mxu0 %v990
        %v2584 = vpop.f32.mrf.mxu0
        %v2585 = vadd.f32 %v2565, %v2584
        %2586 = vdwg.mxu0
        %2587 = vmatpush.msra.mxu0 %v1168
        %2588 = vmatpush.msra.mxu0 %v1167
        %2589 = vmatpush.msra.mxu0 %v1166
        %2590 = vmatpush.msra.mxu0 %v1165
        %2591 = vmatpush.msra.mxu0 %v1164
        %2592 = vmatpush.msra.mxu0 %v1163
        %2593 = vmatpush.msra.mxu0 %v1162
        %2594 = vmatpush.msra.mxu0 %v1161
        %2595 = vmatpush.msra.mxu0 %v1160
        %2596 = vmatpush.msra.mxu0 %v1159
        %2597 = vmatpush.msra.mxu0 %v1158
        %2598 = vmatpush.msra.mxu0 %v1157
        %2599 = vmatpush.msra.mxu0 %v1156
        %2600 = vmatpush.msra.mxu0 %v1155
        %2601 = vmatpush.msra.mxu0 %v1154
        %2602 = vmatpush.msra.mxu0 %v1153
        %2603 = vmatmul.f32.gmra.mxu0 %v991
        %v2604 = vpop.f32.mrf.mxu0
        %v2605 = vadd.f32 %v2585, %v2604
        %2606 = vdwg.mxu0
        %2607 = vmatpush.msra.mxu0 0.0
        %2608 = vmatpush.msra.mxu0 0.0
        %2609 = vmatpush.msra.mxu0 0.0
        %2610 = vmatpush.msra.mxu0 0.0
        %2611 = vmatpush.msra.mxu0 %v2385
        %2612 = vmatpush.msra.mxu0 %v1179
        %2613 = vmatpush.msra.mxu0 %v1178
        %2614 = vmatpush.msra.mxu0 %v1177
        %2615 = vmatpush.msra.mxu0 %v1176
        %2616 = vmatpush.msra.mxu0 %v1175
        %2617 = vmatpush.msra.mxu0 %v1174
        %2618 = vmatpush.msra.mxu0 %v1173
        %2619 = vmatpush.msra.mxu0 %v1172
        %2620 = vmatpush.msra.mxu0 %v1171
        %2621 = vmatpush.msra.mxu0 %v1170
        %2622 = vmatpush.msra.mxu0 %v1169
        %2623 = vmatmul.f32.gmra.mxu0 %v2382
        %v2624 = vpop.f32.mrf.mxu0
        %v2625 = vadd.f32 %v2605, %v2624
        %2626 = vdwg.mxu0
        %s2627 = scalar_lea.vmem %s204, 32 [#allocation2]
        %v2628 = vld [vmem:[%s2627] sm:$0xff]
        %v2629 = vld [vmem:[%s2627 + $0x8] sm:$0xff]
        %s2630 = scalar_lea.vmem %s1, 3648
        %v2631 = vld [vmem:[%s2630] sm:$0xff]
        %v2632 = vld [vmem:[%s2630 + $0x8] sm:$0xff]
        %v2633 = vld [vmem:[%s2630 + $0x10] sm:$0xff]
        %v2634 = vld [vmem:[%s2630 + $0x18] sm:$0xff]
        %v2635 = vld [vmem:[%s2630 + $0x20] sm:$0xff]
        %v2636 = vld [vmem:[%s2630 + $0x28] sm:$0xff]
        %v2637 = vld [vmem:[%s2630 + $0x30] sm:$0xff]
        %v2638 = vld [vmem:[%s2630 + $0x38] sm:$0xff]
        %v2639 = vld [vmem:[%s2630 + $0x40] sm:$0xff]
        %v2640 = vld [vmem:[%s2630 + $0x48] sm:$0xff]
        %v2641 = vld [vmem:[%s2630 + $0x50] sm:$0xff]
        %v2642 = vld [vmem:[%s2630 + $0x58] sm:$0xff]
        %v2643 = vld [vmem:[%s2630 + $0x60] sm:$0xff]
        %v2644 = vld [vmem:[%s2630 + $0x68] sm:$0xff]
        %v2645 = vld [vmem:[%s2630 + $0x70] sm:$0xff]
        %v2646 = vld [vmem:[%s2630 + $0x78] sm:$0xff]
        %v2647 = vld [vmem:[%s2630 + $0x80] sm:$0xff]
        %v2648 = vld [vmem:[%s2630 + $0x88] sm:$0xff]
        %v2649 = vld [vmem:[%s2630 + $0x90] sm:$0xff]
        %v2650 = vld [vmem:[%s2630 + $0x98] sm:$0xff]
        %v2651 = vld [vmem:[%s2630 + $0xa0] sm:$0xff]
        %v2652 = vld [vmem:[%s2630 + $0xa8] sm:$0xff]
        %v2653 = vld [vmem:[%s2630 + $0xb0] sm:$0xff]
        %v2654 = vld [vmem:[%s2630 + $0xb8] sm:$0xff]
        %v2655 = vld [vmem:[%s2630 + $0xc0] sm:$0xff]
        %v2656 = vld [vmem:[%s2630 + $0xc8] sm:$0xff]
        %v2657 = vld [vmem:[%s2630 + $0xd0] sm:$0xff]
        %v2658 = vld [vmem:[%s2630 + $0xd8] sm:$0xff]
        %v2659 = vld [vmem:[%s2630 + $0xe0] sm:$0xff]
        %v2660 = vld [vmem:[%s2630 + $0xe8] sm:$0xff]
        %v2661 = vld [vmem:[%s2630 + $0xf0] sm:$0xff]
        %v2662 = vld [vmem:[%s2630 + $0xf8] sm:$0xff]
        %v2663 = vld [vmem:[%s2630 + $0x100] sm:$0xff]
        %v2664 = vld [vmem:[%s2630 + $0x108] sm:$0xff]
        %v2665 = vld [vmem:[%s2630 + $0x110] sm:$0xff]
        %v2666 = vld [vmem:[%s2630 + $0x118] sm:$0xff]
        %v2667 = vld [vmem:[%s2630 + $0x120] sm:$0xff]
        %v2668 = vld [vmem:[%s2630 + $0x128] sm:$0xff]
        %v2669 = vld [vmem:[%s2630 + $0x130] sm:$0xff]
        %v2670 = vld [vmem:[%s2630 + $0x138] sm:$0xff]
        %v2671 = vld [vmem:[%s2630 + $0x140] sm:$0xff]
        %v2672 = vld [vmem:[%s2630 + $0x148] sm:$0xff]
        %v2673 = vld [vmem:[%s2630 + $0x150] sm:$0xff]
        %v2674 = vld [vmem:[%s2630 + $0x158] sm:$0xff]
        %v2675 = vld [vmem:[%s2630 + $0x160] sm:$0xff]
        %v2676 = vld [vmem:[%s2630 + $0x168] sm:$0xff]
        %v2677 = vld [vmem:[%s2630 + $0x170] sm:$0xff]
        %v2678 = vld [vmem:[%s2630 + $0x178] sm:$0xff]
        %v2679 = vld [vmem:[%s2630 + $0x180] sm:$0xff]
        %v2680 = vld [vmem:[%s2630 + $0x188] sm:$0xff]
        %v2681 = vld [vmem:[%s2630 + $0x190] sm:$0xff]
        %v2682 = vld [vmem:[%s2630 + $0x198] sm:$0xff]
        %v2683 = vld [vmem:[%s2630 + $0x1a0] sm:$0xff]
        %v2684 = vld [vmem:[%s2630 + $0x1a8] sm:$0xff]
        %v2685 = vld [vmem:[%s2630 + $0x1b0] sm:$0xff]
        %v2686 = vld [vmem:[%s2630 + $0x1b8] sm:$0xff]
        %v2687 = vld [vmem:[%s2630 + $0x1c0] sm:$0xff]
        %v2688 = vld [vmem:[%s2630 + $0x1c8] sm:$0xff]
        %v2689 = vld [vmem:[%s2630 + $0x1d0] sm:$0xff]
        %v2690 = vld [vmem:[%s2630 + $0x1d8] sm:$0xff]
        %v2691 = vld [vmem:[%s2630 + $0x1e0] sm:$0xff]
        %v2692 = vld [vmem:[%s2630 + $0x1e8] sm:$0xff]
        %v2693 = vld [vmem:[%s2630 + $0x1f0] sm:$0xff]
        %v2694 = vld [vmem:[%s2630 + $0x1f8] sm:$0xff]
        %v2695 = vld [vmem:[%s2630 + $0x200] sm:$0xff]
        %v2696 = vld [vmem:[%s2630 + $0x208] sm:$0xff]
        %v2697 = vld [vmem:[%s2630 + $0x210] sm:$0xff]
        %v2698 = vld [vmem:[%s2630 + $0x218] sm:$0xff]
        %v2699 = vld [vmem:[%s2630 + $0x220] sm:$0xff]
        %v2700 = vld [vmem:[%s2630 + $0x228] sm:$0xff]
        %v2701 = vld [vmem:[%s2630 + $0x230] sm:$0xff]
        %v2702 = vld [vmem:[%s2630 + $0x238] sm:$0xff]
        %v2703 = vld [vmem:[%s2630 + $0x240] sm:$0xff]
        %v2704 = vld [vmem:[%s2630 + $0x248] sm:$0xff]
        %v2705 = vld [vmem:[%s2630 + $0x250] sm:$0xff]
        %v2706 = vld [vmem:[%s2630 + $0x258] sm:$0xff]
        %v2707 = vld [vmem:[%s2630 + $0x260] sm:$0xff]
        %v2708 = vld [vmem:[%s2630 + $0x268] sm:$0xff]
        %v2709 = vld [vmem:[%s2630 + $0x270] sm:$0xff]
        %v2710 = vld [vmem:[%s2630 + $0x278] sm:$0xff]
        %v2711 = vld [vmem:[%s2630 + $0x280] sm:$0xff]
        %v2712 = vld [vmem:[%s2630 + $0x288] sm:$0xff]
        %v2713 = vld [vmem:[%s2630 + $0x290] sm:$0xff]
        %v2714 = vld [vmem:[%s2630 + $0x298] sm:$0xff]
        %v2715 = vld [vmem:[%s2630 + $0x2a0] sm:$0xff]
        %v2716 = vld [vmem:[%s2630 + $0x2a8] sm:$0xff]
        %v2717 = vld [vmem:[%s2630 + $0x2b0] sm:$0xff]
        %v2718 = vld [vmem:[%s2630 + $0x2b8] sm:$0xff]
        %v2719 = vld [vmem:[%s2630 + $0x2c0] sm:$0xff]
        %v2720 = vld [vmem:[%s2630 + $0x2c8] sm:$0xff]
        %v2721 = vld [vmem:[%s2630 + $0x2d0] sm:$0xff]
        %v2722 = vld [vmem:[%s2630 + $0x2d8] sm:$0xff]
        %v2723 = vld [vmem:[%s2630 + $0x2e0] sm:$0xff]
        %v2724 = vld [vmem:[%s2630 + $0x2e8] sm:$0xff]
        %v2725 = vld [vmem:[%s2630 + $0x2f0] sm:$0xff]
        %v2726 = vld [vmem:[%s2630 + $0x2f8] sm:$0xff]
        %v2727 = vld [vmem:[%s2630 + $0x300] sm:$0xff]
        %v2728 = vld [vmem:[%s2630 + $0x308] sm:$0xff]
        %v2729 = vld [vmem:[%s2630 + $0x310] sm:$0xff]
        %v2730 = vld [vmem:[%s2630 + $0x318] sm:$0xff]
        %v2731 = vld [vmem:[%s2630 + $0x320] sm:$0xff]
        %v2732 = vld [vmem:[%s2630 + $0x328] sm:$0xff]
        %v2733 = vld [vmem:[%s2630 + $0x330] sm:$0xff]
        %v2734 = vld [vmem:[%s2630 + $0x338] sm:$0xff]
        %v2735 = vld [vmem:[%s2630 + $0x340] sm:$0xff]
        %v2736 = vld [vmem:[%s2630 + $0x348] sm:$0xff]
        %v2737 = vld [vmem:[%s2630 + $0x350] sm:$0xff]
        %v2738 = vld [vmem:[%s2630 + $0x358] sm:$0xff]
        %v2739 = vld [vmem:[%s2630 + $0x360] sm:$0xff]
        %v2740 = vld [vmem:[%s2630 + $0x368] sm:$0xff]
        %v2741 = vld [vmem:[%s2630 + $0x370] sm:$0xff]
        %v2742 = vld [vmem:[%s2630 + $0x378] sm:$0xff]
        %v2743 = vld [vmem:[%s2630 + $0x380] sm:$0xff]
        %v2744 = vld [vmem:[%s2630 + $0x388] sm:$0xff]
        %v2745 = vld [vmem:[%s2630 + $0x390] sm:$0xff]
        %v2746 = vld [vmem:[%s2630 + $0x398] sm:$0xff]
        %v2747 = vld [vmem:[%s2630 + $0x3a0] sm:$0xff]
        %v2748 = vld [vmem:[%s2630 + $0x3a8] sm:$0xff]
        %v2749 = vld [vmem:[%s2630 + $0x3b0] sm:$0xff]
        %v2750 = vld [vmem:[%s2630 + $0x3b8] sm:$0xff]
        %v2751 = vld [vmem:[%s2630 + $0x3c0] sm:$0xff]
        %v2752 = vld [vmem:[%s2630 + $0x3c8] sm:$0xff]
        %v2753 = vld [vmem:[%s2630 + $0x3d0] sm:$0xff]
        %v2754 = vld [vmem:[%s2630 + $0x3d8] sm:$0xff]
        %v2755 = vld [vmem:[%s2630 + $0x3e0] sm:$0xff]
        %v2756 = vld [vmem:[%s2630 + $0x3e8] sm:$0xff]
        %v2757 = vld [vmem:[%s2630 + $0x3f0] sm:$0xff]
        %v2758 = vld [vmem:[%s2630 + $0x3f8] sm:$0xff]
        %v2759 = vld [vmem:[%s2630 + $0x400] sm:$0xff]
        %v2760 = vld [vmem:[%s2630 + $0x408] sm:$0xff]
        %v2761 = vld [vmem:[%s2630 + $0x410] sm:$0xff]
        %v2762 = vld [vmem:[%s2630 + $0x418] sm:$0xff]
        %v2763 = vld [vmem:[%s2630 + $0x420] sm:$0xff]
        %v2764 = vld [vmem:[%s2630 + $0x428] sm:$0xff]
        %v2765 = vld [vmem:[%s2630 + $0x430] sm:$0xff]
        %v2766 = vld [vmem:[%s2630 + $0x438] sm:$0xff]
        %v2767 = vld [vmem:[%s2630 + $0x440] sm:$0xff]
        %v2768 = vld [vmem:[%s2630 + $0x448] sm:$0xff]
        %v2769 = vld [vmem:[%s2630 + $0x450] sm:$0xff]
        %v2770 = vld [vmem:[%s2630 + $0x458] sm:$0xff]
        %v2771 = vld [vmem:[%s2630 + $0x460] sm:$0xff]
        %v2772 = vld [vmem:[%s2630 + $0x468] sm:$0xff]
        %v2773 = vld [vmem:[%s2630 + $0x470] sm:$0xff]
        %v2774 = vld [vmem:[%s2630 + $0x478] sm:$0xff]
        %v2775 = vld [vmem:[%s2630 + $0x480] sm:$0xff]
        %v2776 = vld [vmem:[%s2630 + $0x488] sm:$0xff]
        %v2777 = vld [vmem:[%s2630 + $0x490] sm:$0xff]
        %v2778 = vld [vmem:[%s2630 + $0x498] sm:$0xff]
        %v2779 = vld [vmem:[%s2630 + $0x4a0] sm:$0xff]
        %v2780 = vld [vmem:[%s2630 + $0x4a8] sm:$0xff]
        %v2781 = vld [vmem:[%s2630 + $0x4b0] sm:$0xff]
        %v2782 = vld [vmem:[%s2630 + $0x4b8] sm:$0xff]
        %v2783 = vld [vmem:[%s2630 + $0x4c0] sm:$0xff]
        %v2784 = vld [vmem:[%s2630 + $0x4c8] sm:$0xff]
        %v2785 = vld [vmem:[%s2630 + $0x4d0] sm:$0xff]
        %v2786 = vld [vmem:[%s2630 + $0x4d8] sm:$0xff]
        %v2787 = vld [vmem:[%s2630 + $0x4e0] sm:$0xff]
        %v2788 = vld [vmem:[%s2630 + $0x4e8] sm:$0xff]
        %v2789 = vld [vmem:[%s2630 + $0x4f0] sm:$0xff]
        %v2790 = vld [vmem:[%s2630 + $0x4f8] sm:$0xff]
        %v2791 = vld [vmem:[%s2630 + $0x500] sm:$0xff]
        %v2792 = vld [vmem:[%s2630 + $0x508] sm:$0xff]
        %v2793 = vld [vmem:[%s2630 + $0x510] sm:$0xff]
        %v2794 = vld [vmem:[%s2630 + $0x518] sm:$0xff]
        %v2795 = vld [vmem:[%s2630 + $0x520] sm:$0xff]
        %v2796 = vld [vmem:[%s2630 + $0x528] sm:$0xff]
        %v2797 = vld [vmem:[%s2630 + $0x530] sm:$0xff]
        %v2798 = vld [vmem:[%s2630 + $0x538] sm:$0xff]
        %v2799 = vld [vmem:[%s2630 + $0x540] sm:$0xff]
        %v2800 = vld [vmem:[%s2630 + $0x548] sm:$0xff]
        %v2801 = vld [vmem:[%s2630 + $0x550] sm:$0xff]
        %v2802 = vld [vmem:[%s2630 + $0x558] sm:$0xff]
        %v2803 = vld [vmem:[%s2630 + $0x560] sm:$0xff]
        %v2804 = vld [vmem:[%s2630 + $0x568] sm:$0xff]
        %v2805 = vld [vmem:[%s2630 + $0x570] sm:$0xff]
        %v2806 = vld [vmem:[%s2630 + $0x578] sm:$0xff]
        %v2807 = vld [vmem:[%s2630 + $0x580] sm:$0xff]
        %v2808 = vld [vmem:[%s2630 + $0x588] sm:$0xff]
        %v2809 = vld [vmem:[%s2630 + $0x590] sm:$0xff]
        %v2810 = vld [vmem:[%s2630 + $0x598] sm:$0xff]
        %v2811 = vld [vmem:[%s2630 + $0x5a0] sm:$0xff]
        %v2812 = vld [vmem:[%s2630 + $0x5a8] sm:$0xff]
        %v2813 = vld [vmem:[%s2630 + $0x5b0] sm:$0xff]
        %v2814 = vld [vmem:[%s2630 + $0x5b8] sm:$0xff]
        %v2815 = vld [vmem:[%s2630 + $0x5c0] sm:$0xff]
        %v2816 = vld [vmem:[%s2630 + $0x5c8] sm:$0xff]
        %v2817 = vld [vmem:[%s2630 + $0x5d0] sm:$0xff]
        %v2818 = vld [vmem:[%s2630 + $0x5d8] sm:$0xff]
        %v2819 = vld [vmem:[%s2630 + $0x5e0] sm:$0xff]
        %v2820 = vld [vmem:[%s2630 + $0x5e8] sm:$0xff]
        %v2821 = vld [vmem:[%s2630 + $0x5f0] sm:$0xff]
        %v2822 = vld [vmem:[%s2630 + $0x5f8] sm:$0xff]
        %v2823 = vld [vmem:[%s2630 + $0x600] sm:$0xff]
        %v2824 = vld [vmem:[%s2630 + $0x608] sm:$0xff]
        %v2825 = vld [vmem:[%s2630 + $0x610] sm:$0xff]
        %v2826 = vld [vmem:[%s2630 + $0x618] sm:$0xff]
        %v2827 = vld [vmem:[%s2630 + $0x620] sm:$0xff]
        %v2828 = vld [vmem:[%s2630 + $0x628] sm:$0xff]
        %v2829 = vld [vmem:[%s2630 + $0x630] sm:$0xff]
        %v2830 = vld [vmem:[%s2630 + $0x638] sm:$0xff]
        %v2831 = vld [vmem:[%s2630 + $0x640] sm:$0xff]
        %v2832 = vld [vmem:[%s2630 + $0x648] sm:$0xff]
        %v2833 = vld [vmem:[%s2630 + $0x650] sm:$0xff]
        %v2834 = vld [vmem:[%s2630 + $0x658] sm:$0xff]
        %v2835 = vld [vmem:[%s2630 + $0x660] sm:$0xff]
        %v2836 = vld [vmem:[%s2630 + $0x668] sm:$0xff]
        %v2837 = vld [vmem:[%s2630 + $0x670] sm:$0xff]
        %v2838 = vld [vmem:[%s2630 + $0x678] sm:$0xff]
        %v2839 = vld [vmem:[%s2630 + $0x680] sm:$0xff]
        %v2840 = vld [vmem:[%s2630 + $0x688] sm:$0xff]
        %v2841 = vld [vmem:[%s2630 + $0x690] sm:$0xff]
        %v2842 = vld [vmem:[%s2630 + $0x698] sm:$0xff]
        %v2843 = vld [vmem:[%s2630 + $0x6a0] sm:$0xff]
        %v2844 = vld [vmem:[%s2630 + $0x6a8] sm:$0xff]
        %v2845 = vld [vmem:[%s2630 + $0x6b0] sm:$0xff]
        %v2846 = vld [vmem:[%s2630 + $0x6b8] sm:$0xff]
        %v2847 = vld [vmem:[%s2630 + $0x6c0] sm:$0x1f]
        %v2848 = vld [vmem:[%s2630 + $0x6c8] sm:$0x1f]
        %v2849 = vld [vmem:[%s2630 + $0x6d0] sm:$0x1f]
        %v2850 = vld [vmem:[%s2630 + $0x6d8] sm:$0x1f]
        %v2851 = vld [vmem:[%s2630 + $0x6e0] sm:$0x1f]
        %v2852 = vld [vmem:[%s2630 + $0x6e8] sm:$0x1f]
        %v2853 = vld [vmem:[%s2630 + $0x6f0] sm:$0x1f]
        %v2854 = vld [vmem:[%s2630 + $0x6f8] sm:$0x1f]
        %v2855 = vld [vmem:[%s2630 + $0x700] sm:$0x1f]
        %v2856 = vld [vmem:[%s2630 + $0x708] sm:$0x1f]
        %v2857 = vld [vmem:[%s2630 + $0x710] sm:$0x1f]
        %v2858 = vld [vmem:[%s2630 + $0x718] sm:$0x1f]
        %v2860 = vsel %vm460, %v2629, 0
        %v2863 = vsel %vm464, %v2847, 0
        %v2866 = vsel %vm464, %v2848, 0
        %v2869 = vsel %vm464, %v2849, 0
        %v2872 = vsel %vm464, %v2850, 0
        %v2875 = vsel %vm464, %v2851, 0
        %v2878 = vsel %vm464, %v2852, 0
        %v2881 = vsel %vm464, %v2853, 0
        %v2884 = vsel %vm464, %v2854, 0
        %v2887 = vsel %vm464, %v2855, 0
        %v2890 = vsel %vm464, %v2856, 0
        %v2893 = vsel %vm464, %v2857, 0
        %v2896 = vsel %vm464, %v2858, 0
        %2898 = vmatpush.msra.mxu0 %v2811
        %2899 = vmatpush.msra.mxu0 %v2799
        %2900 = vmatpush.msra.mxu0 %v2787
        %2901 = vmatpush.msra.mxu0 %v2775
        %2902 = vmatpush.msra.mxu0 %v2763
        %2903 = vmatpush.msra.mxu0 %v2751
        %2904 = vmatpush.msra.mxu0 %v2739
        %2905 = vmatpush.msra.mxu0 %v2727
        %2906 = vmatpush.msra.mxu0 %v2715
        %2907 = vmatpush.msra.mxu0 %v2703
        %2908 = vmatpush.msra.mxu0 %v2691
        %2909 = vmatpush.msra.mxu0 %v2679
        %2910 = vmatpush.msra.mxu0 %v2667
        %2911 = vmatpush.msra.mxu0 %v2655
        %2912 = vmatpush.msra.mxu0 %v2643
        %2913 = vmatpush.msra.mxu0 %v2631
        %2914 = vmatmul.f32.gmra.mxu0 %v2628
        %v2915 = vpop.f32.mrf.mxu0
        %v2916 = vadd.f32 0.0, %v2915
        %2917 = vdwg.mxu0
        %2918 = vmatpush.msra.mxu0 0.0
        %2919 = vmatpush.msra.mxu0 0.0
        %2920 = vmatpush.msra.mxu0 0.0
        %2921 = vmatpush.msra.mxu0 0.0
        %2922 = vmatpush.msra.mxu0 0.0
        %2923 = vmatpush.msra.mxu0 0.0
        %2924 = vmatpush.msra.mxu0 0.0
        %2925 = vmatpush.msra.mxu0 0.0
        %2926 = vmatpush.msra.mxu0 0.0
        %2927 = vmatpush.msra.mxu0 0.0
        %2928 = vmatpush.msra.mxu0 0.0
        %2929 = vmatpush.msra.mxu0 0.0
        %2930 = vmatpush.msra.mxu0 0.0
        %2931 = vmatpush.msra.mxu0 %v2863
        %2932 = vmatpush.msra.mxu0 %v2835
        %2933 = vmatpush.msra.mxu0 %v2823
        %2934 = vmatmul.f32.gmra.mxu0 %v2860
        %v2935 = vpop.f32.mrf.mxu0
        %v2936 = vadd.f32 %v2916, %v2935
        %2937 = vdwg.mxu0
        %2938 = vmatpush.msra.mxu0 %v2812
        %2939 = vmatpush.msra.mxu0 %v2800
        %2940 = vmatpush.msra.mxu0 %v2788
        %2941 = vmatpush.msra.mxu0 %v2776
        %2942 = vmatpush.msra.mxu0 %v2764
        %2943 = vmatpush.msra.mxu0 %v2752
        %2944 = vmatpush.msra.mxu0 %v2740
        %2945 = vmatpush.msra.mxu0 %v2728
        %2946 = vmatpush.msra.mxu0 %v2716
        %2947 = vmatpush.msra.mxu0 %v2704
        %2948 = vmatpush.msra.mxu0 %v2692
        %2949 = vmatpush.msra.mxu0 %v2680
        %2950 = vmatpush.msra.mxu0 %v2668
        %2951 = vmatpush.msra.mxu0 %v2656
        %2952 = vmatpush.msra.mxu0 %v2644
        %2953 = vmatpush.msra.mxu0 %v2632
        %2954 = vmatmul.f32.gmra.mxu0 %v2628
        %v2955 = vpop.f32.mrf.mxu0
        %v2956 = vadd.f32 0.0, %v2955
        %2957 = vdwg.mxu0
        %2958 = vmatpush.msra.mxu0 0.0
        %2959 = vmatpush.msra.mxu0 0.0
        %2960 = vmatpush.msra.mxu0 0.0
        %2961 = vmatpush.msra.mxu0 0.0
        %2962 = vmatpush.msra.mxu0 0.0
        %2963 = vmatpush.msra.mxu0 0.0
        %2964 = vmatpush.msra.mxu0 0.0
        %2965 = vmatpush.msra.mxu0 0.0
        %2966 = vmatpush.msra.mxu0 0.0
        %2967 = vmatpush.msra.mxu0 0.0
        %2968 = vmatpush.msra.mxu0 0.0
        %2969 = vmatpush.msra.mxu0 0.0
        %2970 = vmatpush.msra.mxu0 0.0
        %2971 = vmatpush.msra.mxu0 %v2866
        %2972 = vmatpush.msra.mxu0 %v2836
        %2973 = vmatpush.msra.mxu0 %v2824
        %2974 = vmatmul.f32.gmra.mxu0 %v2860
        %v2975 = vpop.f32.mrf.mxu0
        %v2976 = vadd.f32 %v2956, %v2975
        %2977 = vdwg.mxu0
        %2978 = vmatpush.msra.mxu0 %v2813
        %2979 = vmatpush.msra.mxu0 %v2801
        %2980 = vmatpush.msra.mxu0 %v2789
        %2981 = vmatpush.msra.mxu0 %v2777
        %2982 = vmatpush.msra.mxu0 %v2765
        %2983 = vmatpush.msra.mxu0 %v2753
        %2984 = vmatpush.msra.mxu0 %v2741
        %2985 = vmatpush.msra.mxu0 %v2729
        %2986 = vmatpush.msra.mxu0 %v2717
        %2987 = vmatpush.msra.mxu0 %v2705
        %2988 = vmatpush.msra.mxu0 %v2693
        %2989 = vmatpush.msra.mxu0 %v2681
        %2990 = vmatpush.msra.mxu0 %v2669
        %2991 = vmatpush.msra.mxu0 %v2657
        %2992 = vmatpush.msra.mxu0 %v2645
        %2993 = vmatpush.msra.mxu0 %v2633
        %2994 = vmatmul.f32.gmra.mxu0 %v2628
        %v2995 = vpop.f32.mrf.mxu0
        %v2996 = vadd.f32 0.0, %v2995
        %2997 = vdwg.mxu0
        %2998 = vmatpush.msra.mxu0 0.0
        %2999 = vmatpush.msra.mxu0 0.0
        %3000 = vmatpush.msra.mxu0 0.0
        %3001 = vmatpush.msra.mxu0 0.0
        %3002 = vmatpush.msra.mxu0 0.0
        %3003 = vmatpush.msra.mxu0 0.0
        %3004 = vmatpush.msra.mxu0 0.0
        %3005 = vmatpush.msra.mxu0 0.0
        %3006 = vmatpush.msra.mxu0 0.0
        %3007 = vmatpush.msra.mxu0 0.0
        %3008 = vmatpush.msra.mxu0 0.0
        %3009 = vmatpush.msra.mxu0 0.0
        %3010 = vmatpush.msra.mxu0 0.0
        %3011 = vmatpush.msra.mxu0 %v2869
        %3012 = vmatpush.msra.mxu0 %v2837
        %3013 = vmatpush.msra.mxu0 %v2825
        %3014 = vmatmul.f32.gmra.mxu0 %v2860
        %v3015 = vpop.f32.mrf.mxu0
        %v3016 = vadd.f32 %v2996, %v3015
        %3017 = vdwg.mxu0
        %3018 = vmatpush.msra.mxu0 %v2814
        %3019 = vmatpush.msra.mxu0 %v2802
        %3020 = vmatpush.msra.mxu0 %v2790
        %3021 = vmatpush.msra.mxu0 %v2778
        %3022 = vmatpush.msra.mxu0 %v2766
        %3023 = vmatpush.msra.mxu0 %v2754
        %3024 = vmatpush.msra.mxu0 %v2742
        %3025 = vmatpush.msra.mxu0 %v2730
        %3026 = vmatpush.msra.mxu0 %v2718
        %3027 = vmatpush.msra.mxu0 %v2706
        %3028 = vmatpush.msra.mxu0 %v2694
        %3029 = vmatpush.msra.mxu0 %v2682
        %3030 = vmatpush.msra.mxu0 %v2670
        %3031 = vmatpush.msra.mxu0 %v2658
        %3032 = vmatpush.msra.mxu0 %v2646
        %3033 = vmatpush.msra.mxu0 %v2634
        %3034 = vmatmul.f32.gmra.mxu0 %v2628
        %v3035 = vpop.f32.mrf.mxu0
        %v3036 = vadd.f32 0.0, %v3035
        %3037 = vdwg.mxu0
        %3038 = vmatpush.msra.mxu0 0.0
        %3039 = vmatpush.msra.mxu0 0.0
        %3040 = vmatpush.msra.mxu0 0.0
        %3041 = vmatpush.msra.mxu0 0.0
        %3042 = vmatpush.msra.mxu0 0.0
        %3043 = vmatpush.msra.mxu0 0.0
        %3044 = vmatpush.msra.mxu0 0.0
        %3045 = vmatpush.msra.mxu0 0.0
        %3046 = vmatpush.msra.mxu0 0.0
        %3047 = vmatpush.msra.mxu0 0.0
        %3048 = vmatpush.msra.mxu0 0.0
        %3049 = vmatpush.msra.mxu0 0.0
        %3050 = vmatpush.msra.mxu0 0.0
        %3051 = vmatpush.msra.mxu0 %v2872
        %3052 = vmatpush.msra.mxu0 %v2838
        %3053 = vmatpush.msra.mxu0 %v2826
        %3054 = vmatmul.f32.gmra.mxu0 %v2860
        %v3055 = vpop.f32.mrf.mxu0
        %v3056 = vadd.f32 %v3036, %v3055
        %3057 = vdwg.mxu0
        %3058 = vmatpush.msra.mxu0 %v2815
        %3059 = vmatpush.msra.mxu0 %v2803
        %3060 = vmatpush.msra.mxu0 %v2791
        %3061 = vmatpush.msra.mxu0 %v2779
        %3062 = vmatpush.msra.mxu0 %v2767
        %3063 = vmatpush.msra.mxu0 %v2755
        %3064 = vmatpush.msra.mxu0 %v2743
        %3065 = vmatpush.msra.mxu0 %v2731
        %3066 = vmatpush.msra.mxu0 %v2719
        %3067 = vmatpush.msra.mxu0 %v2707
        %3068 = vmatpush.msra.mxu0 %v2695
        %3069 = vmatpush.msra.mxu0 %v2683
        %3070 = vmatpush.msra.mxu0 %v2671
        %3071 = vmatpush.msra.mxu0 %v2659
        %3072 = vmatpush.msra.mxu0 %v2647
        %3073 = vmatpush.msra.mxu0 %v2635
        %3074 = vmatmul.f32.gmra.mxu0 %v2628
        %v3075 = vpop.f32.mrf.mxu0
        %v3076 = vadd.f32 0.0, %v3075
        %3077 = vdwg.mxu0
        %3078 = vmatpush.msra.mxu0 0.0
        %3079 = vmatpush.msra.mxu0 0.0
        %3080 = vmatpush.msra.mxu0 0.0
        %3081 = vmatpush.msra.mxu0 0.0
        %3082 = vmatpush.msra.mxu0 0.0
        %3083 = vmatpush.msra.mxu0 0.0
        %3084 = vmatpush.msra.mxu0 0.0
        %3085 = vmatpush.msra.mxu0 0.0
        %3086 = vmatpush.msra.mxu0 0.0
        %3087 = vmatpush.msra.mxu0 0.0
        %3088 = vmatpush.msra.mxu0 0.0
        %3089 = vmatpush.msra.mxu0 0.0
        %3090 = vmatpush.msra.mxu0 0.0
        %3091 = vmatpush.msra.mxu0 %v2875
        %3092 = vmatpush.msra.mxu0 %v2839
        %3093 = vmatpush.msra.mxu0 %v2827
        %3094 = vmatmul.f32.gmra.mxu0 %v2860
        %v3095 = vpop.f32.mrf.mxu0
        %v3096 = vadd.f32 %v3076, %v3095
        %3097 = vdwg.mxu0
        %3098 = vmatpush.msra.mxu0 %v2816
        %3099 = vmatpush.msra.mxu0 %v2804
        %3100 = vmatpush.msra.mxu0 %v2792
        %3101 = vmatpush.msra.mxu0 %v2780
        %3102 = vmatpush.msra.mxu0 %v2768
        %3103 = vmatpush.msra.mxu0 %v2756
        %3104 = vmatpush.msra.mxu0 %v2744
        %3105 = vmatpush.msra.mxu0 %v2732
        %3106 = vmatpush.msra.mxu0 %v2720
        %3107 = vmatpush.msra.mxu0 %v2708
        %3108 = vmatpush.msra.mxu0 %v2696
        %3109 = vmatpush.msra.mxu0 %v2684
        %3110 = vmatpush.msra.mxu0 %v2672
        %3111 = vmatpush.msra.mxu0 %v2660
        %3112 = vmatpush.msra.mxu0 %v2648
        %3113 = vmatpush.msra.mxu0 %v2636
        %3114 = vmatmul.f32.gmra.mxu0 %v2628
        %v3115 = vpop.f32.mrf.mxu0
        %v3116 = vadd.f32 0.0, %v3115
        %3117 = vdwg.mxu0
        %3118 = vmatpush.msra.mxu0 0.0
        %3119 = vmatpush.msra.mxu0 0.0
        %3120 = vmatpush.msra.mxu0 0.0
        %3121 = vmatpush.msra.mxu0 0.0
        %3122 = vmatpush.msra.mxu0 0.0
        %3123 = vmatpush.msra.mxu0 0.0
        %3124 = vmatpush.msra.mxu0 0.0
        %3125 = vmatpush.msra.mxu0 0.0
        %3126 = vmatpush.msra.mxu0 0.0
        %3127 = vmatpush.msra.mxu0 0.0
        %3128 = vmatpush.msra.mxu0 0.0
        %3129 = vmatpush.msra.mxu0 0.0
        %3130 = vmatpush.msra.mxu0 0.0
        %3131 = vmatpush.msra.mxu0 %v2878
        %3132 = vmatpush.msra.mxu0 %v2840
        %3133 = vmatpush.msra.mxu0 %v2828
        %3134 = vmatmul.f32.gmra.mxu0 %v2860
        %v3135 = vpop.f32.mrf.mxu0
        %v3136 = vadd.f32 %v3116, %v3135
        %3137 = vdwg.mxu0
        %3138 = vmatpush.msra.mxu0 %v2817
        %3139 = vmatpush.msra.mxu0 %v2805
        %3140 = vmatpush.msra.mxu0 %v2793
        %3141 = vmatpush.msra.mxu0 %v2781
        %3142 = vmatpush.msra.mxu0 %v2769
        %3143 = vmatpush.msra.mxu0 %v2757
        %3144 = vmatpush.msra.mxu0 %v2745
        %3145 = vmatpush.msra.mxu0 %v2733
        %3146 = vmatpush.msra.mxu0 %v2721
        %3147 = vmatpush.msra.mxu0 %v2709
        %3148 = vmatpush.msra.mxu0 %v2697
        %3149 = vmatpush.msra.mxu0 %v2685
        %3150 = vmatpush.msra.mxu0 %v2673
        %3151 = vmatpush.msra.mxu0 %v2661
        %3152 = vmatpush.msra.mxu0 %v2649
        %3153 = vmatpush.msra.mxu0 %v2637
        %3154 = vmatmul.f32.gmra.mxu0 %v2628
        %v3155 = vpop.f32.mrf.mxu0
        %v3156 = vadd.f32 0.0, %v3155
        %3157 = vdwg.mxu0
        %3158 = vmatpush.msra.mxu0 0.0
        %3159 = vmatpush.msra.mxu0 0.0
        %3160 = vmatpush.msra.mxu0 0.0
        %3161 = vmatpush.msra.mxu0 0.0
        %3162 = vmatpush.msra.mxu0 0.0
        %3163 = vmatpush.msra.mxu0 0.0
        %3164 = vmatpush.msra.mxu0 0.0
        %3165 = vmatpush.msra.mxu0 0.0
        %3166 = vmatpush.msra.mxu0 0.0
        %3167 = vmatpush.msra.mxu0 0.0
        %3168 = vmatpush.msra.mxu0 0.0
        %3169 = vmatpush.msra.mxu0 0.0
        %3170 = vmatpush.msra.mxu0 0.0
        %3171 = vmatpush.msra.mxu0 %v2881
        %3172 = vmatpush.msra.mxu0 %v2841
        %3173 = vmatpush.msra.mxu0 %v2829
        %3174 = vmatmul.f32.gmra.mxu0 %v2860
        %v3175 = vpop.f32.mrf.mxu0
        %v3176 = vadd.f32 %v3156, %v3175
        %3177 = vdwg.mxu0
        %3178 = vmatpush.msra.mxu0 %v2818
        %3179 = vmatpush.msra.mxu0 %v2806
        %3180 = vmatpush.msra.mxu0 %v2794
        %3181 = vmatpush.msra.mxu0 %v2782
        %3182 = vmatpush.msra.mxu0 %v2770
        %3183 = vmatpush.msra.mxu0 %v2758
        %3184 = vmatpush.msra.mxu0 %v2746
        %3185 = vmatpush.msra.mxu0 %v2734
        %3186 = vmatpush.msra.mxu0 %v2722
        %3187 = vmatpush.msra.mxu0 %v2710
        %3188 = vmatpush.msra.mxu0 %v2698
        %3189 = vmatpush.msra.mxu0 %v2686
        %3190 = vmatpush.msra.mxu0 %v2674
        %3191 = vmatpush.msra.mxu0 %v2662
        %3192 = vmatpush.msra.mxu0 %v2650
        %3193 = vmatpush.msra.mxu0 %v2638
        %3194 = vmatmul.f32.gmra.mxu0 %v2628
        %v3195 = vpop.f32.mrf.mxu0
        %v3196 = vadd.f32 0.0, %v3195
        %3197 = vdwg.mxu0
        %3198 = vmatpush.msra.mxu0 0.0
        %3199 = vmatpush.msra.mxu0 0.0
        %3200 = vmatpush.msra.mxu0 0.0
        %3201 = vmatpush.msra.mxu0 0.0
        %3202 = vmatpush.msra.mxu0 0.0
        %3203 = vmatpush.msra.mxu0 0.0
        %3204 = vmatpush.msra.mxu0 0.0
        %3205 = vmatpush.msra.mxu0 0.0
        %3206 = vmatpush.msra.mxu0 0.0
        %3207 = vmatpush.msra.mxu0 0.0
        %3208 = vmatpush.msra.mxu0 0.0
        %3209 = vmatpush.msra.mxu0 0.0
        %3210 = vmatpush.msra.mxu0 0.0
        %3211 = vmatpush.msra.mxu0 %v2884
        %3212 = vmatpush.msra.mxu0 %v2842
        %3213 = vmatpush.msra.mxu0 %v2830
        %3214 = vmatmul.f32.gmra.mxu0 %v2860
        %v3215 = vpop.f32.mrf.mxu0
        %v3216 = vadd.f32 %v3196, %v3215
        %3217 = vdwg.mxu0
        %3218 = vmatpush.msra.mxu0 %v2819
        %3219 = vmatpush.msra.mxu0 %v2807
        %3220 = vmatpush.msra.mxu0 %v2795
        %3221 = vmatpush.msra.mxu0 %v2783
        %3222 = vmatpush.msra.mxu0 %v2771
        %3223 = vmatpush.msra.mxu0 %v2759
        %3224 = vmatpush.msra.mxu0 %v2747
        %3225 = vmatpush.msra.mxu0 %v2735
        %3226 = vmatpush.msra.mxu0 %v2723
        %3227 = vmatpush.msra.mxu0 %v2711
        %3228 = vmatpush.msra.mxu0 %v2699
        %3229 = vmatpush.msra.mxu0 %v2687
        %3230 = vmatpush.msra.mxu0 %v2675
        %3231 = vmatpush.msra.mxu0 %v2663
        %3232 = vmatpush.msra.mxu0 %v2651
        %3233 = vmatpush.msra.mxu0 %v2639
        %3234 = vmatmul.f32.gmra.mxu0 %v2628
        %v3235 = vpop.f32.mrf.mxu0
        %v3236 = vadd.f32 0.0, %v3235
        %3237 = vdwg.mxu0
        %3238 = vmatpush.msra.mxu0 0.0
        %3239 = vmatpush.msra.mxu0 0.0
        %3240 = vmatpush.msra.mxu0 0.0
        %3241 = vmatpush.msra.mxu0 0.0
        %3242 = vmatpush.msra.mxu0 0.0
        %3243 = vmatpush.msra.mxu0 0.0
        %3244 = vmatpush.msra.mxu0 0.0
        %3245 = vmatpush.msra.mxu0 0.0
        %3246 = vmatpush.msra.mxu0 0.0
        %3247 = vmatpush.msra.mxu0 0.0
        %3248 = vmatpush.msra.mxu0 0.0
        %3249 = vmatpush.msra.mxu0 0.0
        %3250 = vmatpush.msra.mxu0 0.0
        %3251 = vmatpush.msra.mxu0 %v2887
        %3252 = vmatpush.msra.mxu0 %v2843
        %3253 = vmatpush.msra.mxu0 %v2831
        %3254 = vmatmul.f32.gmra.mxu0 %v2860
        %v3255 = vpop.f32.mrf.mxu0
        %v3256 = vadd.f32 %v3236, %v3255
        %3257 = vdwg.mxu0
        %3258 = vmatpush.msra.mxu0 %v2820
        %3259 = vmatpush.msra.mxu0 %v2808
        %3260 = vmatpush.msra.mxu0 %v2796
        %3261 = vmatpush.msra.mxu0 %v2784
        %3262 = vmatpush.msra.mxu0 %v2772
        %3263 = vmatpush.msra.mxu0 %v2760
        %3264 = vmatpush.msra.mxu0 %v2748
        %3265 = vmatpush.msra.mxu0 %v2736
        %3266 = vmatpush.msra.mxu0 %v2724
        %3267 = vmatpush.msra.mxu0 %v2712
        %3268 = vmatpush.msra.mxu0 %v2700
        %3269 = vmatpush.msra.mxu0 %v2688
        %3270 = vmatpush.msra.mxu0 %v2676
        %3271 = vmatpush.msra.mxu0 %v2664
        %3272 = vmatpush.msra.mxu0 %v2652
        %3273 = vmatpush.msra.mxu0 %v2640
        %3274 = vmatmul.f32.gmra.mxu0 %v2628
        %v3275 = vpop.f32.mrf.mxu0
        %v3276 = vadd.f32 0.0, %v3275
        %3277 = vdwg.mxu0
        %3278 = vmatpush.msra.mxu0 0.0
        %3279 = vmatpush.msra.mxu0 0.0
        %3280 = vmatpush.msra.mxu0 0.0
        %3281 = vmatpush.msra.mxu0 0.0
        %3282 = vmatpush.msra.mxu0 0.0
        %3283 = vmatpush.msra.mxu0 0.0
        %3284 = vmatpush.msra.mxu0 0.0
        %3285 = vmatpush.msra.mxu0 0.0
        %3286 = vmatpush.msra.mxu0 0.0
        %3287 = vmatpush.msra.mxu0 0.0
        %3288 = vmatpush.msra.mxu0 0.0
        %3289 = vmatpush.msra.mxu0 0.0
        %3290 = vmatpush.msra.mxu0 0.0
        %3291 = vmatpush.msra.mxu0 %v2890
        %3292 = vmatpush.msra.mxu0 %v2844
        %3293 = vmatpush.msra.mxu0 %v2832
        %3294 = vmatmul.f32.gmra.mxu0 %v2860
        %v3295 = vpop.f32.mrf.mxu0
        %v3296 = vadd.f32 %v3276, %v3295
        %3297 = vdwg.mxu0
        %3298 = vmatpush.msra.mxu0 %v2821
        %3299 = vmatpush.msra.mxu0 %v2809
        %3300 = vmatpush.msra.mxu0 %v2797
        %3301 = vmatpush.msra.mxu0 %v2785
        %3302 = vmatpush.msra.mxu0 %v2773
        %3303 = vmatpush.msra.mxu0 %v2761
        %3304 = vmatpush.msra.mxu0 %v2749
        %3305 = vmatpush.msra.mxu0 %v2737
        %3306 = vmatpush.msra.mxu0 %v2725
        %3307 = vmatpush.msra.mxu0 %v2713
        %3308 = vmatpush.msra.mxu0 %v2701
        %3309 = vmatpush.msra.mxu0 %v2689
        %3310 = vmatpush.msra.mxu0 %v2677
        %3311 = vmatpush.msra.mxu0 %v2665
        %3312 = vmatpush.msra.mxu0 %v2653
        %3313 = vmatpush.msra.mxu0 %v2641
        %3314 = vmatmul.f32.gmra.mxu0 %v2628
        %v3315 = vpop.f32.mrf.mxu0
        %v3316 = vadd.f32 0.0, %v3315
        %3317 = vdwg.mxu0
        %3318 = vmatpush.msra.mxu0 0.0
        %3319 = vmatpush.msra.mxu0 0.0
        %3320 = vmatpush.msra.mxu0 0.0
        %3321 = vmatpush.msra.mxu0 0.0
        %3322 = vmatpush.msra.mxu0 0.0
        %3323 = vmatpush.msra.mxu0 0.0
        %3324 = vmatpush.msra.mxu0 0.0
        %3325 = vmatpush.msra.mxu0 0.0
        %3326 = vmatpush.msra.mxu0 0.0
        %3327 = vmatpush.msra.mxu0 0.0
        %3328 = vmatpush.msra.mxu0 0.0
        %3329 = vmatpush.msra.mxu0 0.0
        %3330 = vmatpush.msra.mxu0 0.0
        %3331 = vmatpush.msra.mxu0 %v2893
        %3332 = vmatpush.msra.mxu0 %v2845
        %3333 = vmatpush.msra.mxu0 %v2833
        %3334 = vmatmul.f32.gmra.mxu0 %v2860
        %v3335 = vpop.f32.mrf.mxu0
        %v3336 = vadd.f32 %v3316, %v3335
        %3337 = vdwg.mxu0
        %3338 = vmatpush.msra.mxu0 %v2822
        %3339 = vmatpush.msra.mxu0 %v2810
        %3340 = vmatpush.msra.mxu0 %v2798
        %3341 = vmatpush.msra.mxu0 %v2786
        %3342 = vmatpush.msra.mxu0 %v2774
        %3343 = vmatpush.msra.mxu0 %v2762
        %3344 = vmatpush.msra.mxu0 %v2750
        %3345 = vmatpush.msra.mxu0 %v2738
        %3346 = vmatpush.msra.mxu0 %v2726
        %3347 = vmatpush.msra.mxu0 %v2714
        %3348 = vmatpush.msra.mxu0 %v2702
        %3349 = vmatpush.msra.mxu0 %v2690
        %3350 = vmatpush.msra.mxu0 %v2678
        %3351 = vmatpush.msra.mxu0 %v2666
        %3352 = vmatpush.msra.mxu0 %v2654
        %3353 = vmatpush.msra.mxu0 %v2642
        %3354 = vmatmul.f32.gmra.mxu0 %v2628
        %v3355 = vpop.f32.mrf.mxu0
        %v3356 = vadd.f32 0.0, %v3355
        %3357 = vdwg.mxu0
        %3358 = vmatpush.msra.mxu0 0.0
        %3359 = vmatpush.msra.mxu0 0.0
        %3360 = vmatpush.msra.mxu0 0.0
        %3361 = vmatpush.msra.mxu0 0.0
        %3362 = vmatpush.msra.mxu0 0.0
        %3363 = vmatpush.msra.mxu0 0.0
        %3364 = vmatpush.msra.mxu0 0.0
        %3365 = vmatpush.msra.mxu0 0.0
        %3366 = vmatpush.msra.mxu0 0.0
        %3367 = vmatpush.msra.mxu0 0.0
        %3368 = vmatpush.msra.mxu0 0.0
        %3369 = vmatpush.msra.mxu0 0.0
        %3370 = vmatpush.msra.mxu0 0.0
        %3371 = vmatpush.msra.mxu0 %v2896
        %3372 = vmatpush.msra.mxu0 %v2846
        %3373 = vmatpush.msra.mxu0 %v2834
        %3374 = vmatmul.f32.gmra.mxu0 %v2860
        %v3375 = vpop.f32.mrf.mxu0
        %v3376 = vadd.f32 %v3356, %v3375
        %3377 = vdwg.mxu0
        %v3378 = vand.u32 2147483647, %v2936
        %v3379 = vand.u32 2147483647, %v2976
        %v3380 = vand.u32 2147483647, %v3016
        %v3381 = vand.u32 2147483647, %v3056
        %v3382 = vand.u32 2147483647, %v3096
        %v3383 = vand.u32 2147483647, %v3136
        %v3384 = vand.u32 2147483647, %v3176
        %v3385 = vand.u32 2147483647, %v3216
        %v3386 = vand.u32 2147483647, %v3256
        %v3387 = vand.u32 2147483647, %v3296
        %v3388 = vand.u32 2147483647, %v3336
        %v3389 = vand.u32 2147483647, %v3376
        %s3390 = scalar_lea.vmem %s2, 3008
        %v3391 = vld [vmem:[%s3390] sm:$0xff]
        %v3392 = vld [vmem:[%s3390 + $0x8] sm:$0xff]
        %v3393 = vld [vmem:[%s3390 + $0x10] sm:$0xff]
        %v3394 = vld [vmem:[%s3390 + $0x18] sm:$0xff]
        %v3395 = vld [vmem:[%s3390 + $0x20] sm:$0xff]
        %v3396 = vld [vmem:[%s3390 + $0x28] sm:$0xff]
        %v3397 = vld [vmem:[%s3390 + $0x30] sm:$0xff]
        %v3398 = vld [vmem:[%s3390 + $0x38] sm:$0xff]
        %v3399 = vld [vmem:[%s3390 + $0x40] sm:$0xff]
        %v3400 = vld [vmem:[%s3390 + $0x48] sm:$0xff]
        %v3401 = vld [vmem:[%s3390 + $0x50] sm:$0xff]
        %v3402 = vld [vmem:[%s3390 + $0x58] sm:$0xff]
        %v3403 = vld [vmem:[%s3390 + $0x60] sm:$0xff]
        %v3404 = vld [vmem:[%s3390 + $0x68] sm:$0xff]
        %v3405 = vld [vmem:[%s3390 + $0x70] sm:$0xff]
        %v3406 = vld [vmem:[%s3390 + $0x78] sm:$0xff]
        %v3407 = vld [vmem:[%s3390 + $0x80] sm:$0xff]
        %v3408 = vld [vmem:[%s3390 + $0x88] sm:$0xff]
        %v3409 = vld [vmem:[%s3390 + $0x90] sm:$0xff]
        %v3410 = vld [vmem:[%s3390 + $0x98] sm:$0xff]
        %v3411 = vld [vmem:[%s3390 + $0xa0] sm:$0xff]
        %v3412 = vld [vmem:[%s3390 + $0xa8] sm:$0xff]
        %v3413 = vld [vmem:[%s3390 + $0xb0] sm:$0xff]
        %v3414 = vld [vmem:[%s3390 + $0xb8] sm:$0xff]
        %v3415 = vld [vmem:[%s3390 + $0xc0] sm:$0xff]
        %v3416 = vld [vmem:[%s3390 + $0xc8] sm:$0xff]
        %v3417 = vld [vmem:[%s3390 + $0xd0] sm:$0xff]
        %v3418 = vld [vmem:[%s3390 + $0xd8] sm:$0xff]
        %v3419 = vld [vmem:[%s3390 + $0xe0] sm:$0xff]
        %v3420 = vld [vmem:[%s3390 + $0xe8] sm:$0xff]
        %v3421 = vld [vmem:[%s3390 + $0xf0] sm:$0xff]
        %v3422 = vld [vmem:[%s3390 + $0xf8] sm:$0xff]
        %v3423 = vld [vmem:[%s3390 + $0x100] sm:$0xff]
        %v3424 = vld [vmem:[%s3390 + $0x108] sm:$0xff]
        %v3425 = vld [vmem:[%s3390 + $0x110] sm:$0xff]
        %v3426 = vld [vmem:[%s3390 + $0x118] sm:$0xff]
        %v3427 = vld [vmem:[%s3390 + $0x120] sm:$0xff]
        %v3428 = vld [vmem:[%s3390 + $0x128] sm:$0xff]
        %v3429 = vld [vmem:[%s3390 + $0x130] sm:$0xff]
        %v3430 = vld [vmem:[%s3390 + $0x138] sm:$0xff]
        %v3431 = vld [vmem:[%s3390 + $0x140] sm:$0xff]
        %v3432 = vld [vmem:[%s3390 + $0x148] sm:$0xff]
        %v3433 = vld [vmem:[%s3390 + $0x150] sm:$0xff]
        %v3434 = vld [vmem:[%s3390 + $0x158] sm:$0xff]
        %v3435 = vld [vmem:[%s3390 + $0x160] sm:$0xff]
        %v3436 = vld [vmem:[%s3390 + $0x168] sm:$0xff]
        %v3437 = vld [vmem:[%s3390 + $0x170] sm:$0xff]
        %v3438 = vld [vmem:[%s3390 + $0x178] sm:$0xff]
        %v3439 = vld [vmem:[%s3390 + $0x180] sm:$0xff]
        %v3440 = vld [vmem:[%s3390 + $0x188] sm:$0xff]
        %v3441 = vld [vmem:[%s3390 + $0x190] sm:$0xff]
        %v3442 = vld [vmem:[%s3390 + $0x198] sm:$0xff]
        %v3443 = vld [vmem:[%s3390 + $0x1a0] sm:$0xff]
        %v3444 = vld [vmem:[%s3390 + $0x1a8] sm:$0xff]
        %v3445 = vld [vmem:[%s3390 + $0x1b0] sm:$0xff]
        %v3446 = vld [vmem:[%s3390 + $0x1b8] sm:$0xff]
        %v3447 = vld [vmem:[%s3390 + $0x1c0] sm:$0xff]
        %v3448 = vld [vmem:[%s3390 + $0x1c8] sm:$0xff]
        %v3449 = vld [vmem:[%s3390 + $0x1d0] sm:$0xff]
        %v3450 = vld [vmem:[%s3390 + $0x1d8] sm:$0xff]
        %v3451 = vld [vmem:[%s3390 + $0x1e0] sm:$0xff]
        %v3452 = vld [vmem:[%s3390 + $0x1e8] sm:$0xff]
        %v3453 = vld [vmem:[%s3390 + $0x1f0] sm:$0xff]
        %v3454 = vld [vmem:[%s3390 + $0x1f8] sm:$0xff]
        %v3455 = vld [vmem:[%s3390 + $0x200] sm:$0xff]
        %v3456 = vld [vmem:[%s3390 + $0x208] sm:$0xff]
        %v3457 = vld [vmem:[%s3390 + $0x210] sm:$0xff]
        %v3458 = vld [vmem:[%s3390 + $0x218] sm:$0xff]
        %v3459 = vld [vmem:[%s3390 + $0x220] sm:$0xff]
        %v3460 = vld [vmem:[%s3390 + $0x228] sm:$0xff]
        %v3461 = vld [vmem:[%s3390 + $0x230] sm:$0xff]
        %v3462 = vld [vmem:[%s3390 + $0x238] sm:$0xff]
        %v3463 = vld [vmem:[%s3390 + $0x240] sm:$0xff]
        %v3464 = vld [vmem:[%s3390 + $0x248] sm:$0xff]
        %v3465 = vld [vmem:[%s3390 + $0x250] sm:$0xff]
        %v3466 = vld [vmem:[%s3390 + $0x258] sm:$0xff]
        %v3467 = vld [vmem:[%s3390 + $0x260] sm:$0xff]
        %v3468 = vld [vmem:[%s3390 + $0x268] sm:$0xff]
        %v3469 = vld [vmem:[%s3390 + $0x270] sm:$0xff]
        %v3470 = vld [vmem:[%s3390 + $0x278] sm:$0xff]
        %v3471 = vld [vmem:[%s3390 + $0x280] sm:$0xff]
        %v3472 = vld [vmem:[%s3390 + $0x288] sm:$0xff]
        %v3473 = vld [vmem:[%s3390 + $0x290] sm:$0xff]
        %v3474 = vld [vmem:[%s3390 + $0x298] sm:$0xff]
        %v3475 = vld [vmem:[%s3390 + $0x2a0] sm:$0xff]
        %v3476 = vld [vmem:[%s3390 + $0x2a8] sm:$0xff]
        %v3477 = vld [vmem:[%s3390 + $0x2b0] sm:$0xff]
        %v3478 = vld [vmem:[%s3390 + $0x2b8] sm:$0xff]
        %v3479 = vld [vmem:[%s3390 + $0x2c0] sm:$0xff]
        %v3480 = vld [vmem:[%s3390 + $0x2c8] sm:$0xff]
        %v3481 = vld [vmem:[%s3390 + $0x2d0] sm:$0xff]
        %v3482 = vld [vmem:[%s3390 + $0x2d8] sm:$0xff]
        %v3483 = vld [vmem:[%s3390 + $0x2e0] sm:$0xff]
        %v3484 = vld [vmem:[%s3390 + $0x2e8] sm:$0xff]
        %v3485 = vld [vmem:[%s3390 + $0x2f0] sm:$0xff]
        %v3486 = vld [vmem:[%s3390 + $0x2f8] sm:$0xff]
        %v3487 = vld [vmem:[%s3390 + $0x300] sm:$0xff]
        %v3488 = vld [vmem:[%s3390 + $0x308] sm:$0xff]
        %v3489 = vld [vmem:[%s3390 + $0x310] sm:$0xff]
        %v3490 = vld [vmem:[%s3390 + $0x318] sm:$0xff]
        %v3491 = vld [vmem:[%s3390 + $0x320] sm:$0xff]
        %v3492 = vld [vmem:[%s3390 + $0x328] sm:$0xff]
        %v3493 = vld [vmem:[%s3390 + $0x330] sm:$0xff]
        %v3494 = vld [vmem:[%s3390 + $0x338] sm:$0xff]
        %v3495 = vld [vmem:[%s3390 + $0x340] sm:$0xff]
        %v3496 = vld [vmem:[%s3390 + $0x348] sm:$0xff]
        %v3497 = vld [vmem:[%s3390 + $0x350] sm:$0xff]
        %v3498 = vld [vmem:[%s3390 + $0x358] sm:$0xff]
        %v3499 = vld [vmem:[%s3390 + $0x360] sm:$0xff]
        %v3500 = vld [vmem:[%s3390 + $0x368] sm:$0xff]
        %v3501 = vld [vmem:[%s3390 + $0x370] sm:$0xff]
        %v3502 = vld [vmem:[%s3390 + $0x378] sm:$0xff]
        %v3503 = vld [vmem:[%s3390 + $0x380] sm:$0xff]
        %v3504 = vld [vmem:[%s3390 + $0x388] sm:$0xff]
        %v3505 = vld [vmem:[%s3390 + $0x390] sm:$0xff]
        %v3506 = vld [vmem:[%s3390 + $0x398] sm:$0xff]
        %v3507 = vld [vmem:[%s3390 + $0x3a0] sm:$0xff]
        %v3508 = vld [vmem:[%s3390 + $0x3a8] sm:$0xff]
        %v3509 = vld [vmem:[%s3390 + $0x3b0] sm:$0xff]
        %v3510 = vld [vmem:[%s3390 + $0x3b8] sm:$0xff]
        %v3511 = vld [vmem:[%s3390 + $0x3c0] sm:$0xff]
        %v3512 = vld [vmem:[%s3390 + $0x3c8] sm:$0xff]
        %v3513 = vld [vmem:[%s3390 + $0x3d0] sm:$0xff]
        %v3514 = vld [vmem:[%s3390 + $0x3d8] sm:$0xff]
        %v3515 = vld [vmem:[%s3390 + $0x3e0] sm:$0xff]
        %v3516 = vld [vmem:[%s3390 + $0x3e8] sm:$0xff]
        %v3517 = vld [vmem:[%s3390 + $0x3f0] sm:$0xff]
        %v3518 = vld [vmem:[%s3390 + $0x3f8] sm:$0xff]
        %v3519 = vld [vmem:[%s3390 + $0x400] sm:$0xff]
        %v3520 = vld [vmem:[%s3390 + $0x408] sm:$0xff]
        %v3521 = vld [vmem:[%s3390 + $0x410] sm:$0xff]
        %v3522 = vld [vmem:[%s3390 + $0x418] sm:$0xff]
        %v3523 = vld [vmem:[%s3390 + $0x420] sm:$0xff]
        %v3524 = vld [vmem:[%s3390 + $0x428] sm:$0xff]
        %v3525 = vld [vmem:[%s3390 + $0x430] sm:$0xff]
        %v3526 = vld [vmem:[%s3390 + $0x438] sm:$0xff]
        %v3527 = vld [vmem:[%s3390 + $0x440] sm:$0xff]
        %v3528 = vld [vmem:[%s3390 + $0x448] sm:$0xff]
        %v3529 = vld [vmem:[%s3390 + $0x450] sm:$0xff]
        %v3530 = vld [vmem:[%s3390 + $0x458] sm:$0xff]
        %v3531 = vld [vmem:[%s3390 + $0x460] sm:$0xff]
        %v3532 = vld [vmem:[%s3390 + $0x468] sm:$0xff]
        %v3533 = vld [vmem:[%s3390 + $0x470] sm:$0xff]
        %v3534 = vld [vmem:[%s3390 + $0x478] sm:$0xff]
        %v3535 = vld [vmem:[%s3390 + $0x480] sm:$0xff]
        %v3536 = vld [vmem:[%s3390 + $0x488] sm:$0xff]
        %v3537 = vld [vmem:[%s3390 + $0x490] sm:$0xff]
        %v3538 = vld [vmem:[%s3390 + $0x498] sm:$0xff]
        %v3539 = vld [vmem:[%s3390 + $0x4a0] sm:$0xff]
        %v3540 = vld [vmem:[%s3390 + $0x4a8] sm:$0xff]
        %v3541 = vld [vmem:[%s3390 + $0x4b0] sm:$0xff]
        %v3542 = vld [vmem:[%s3390 + $0x4b8] sm:$0xff]
        %v3543 = vld [vmem:[%s3390 + $0x4c0] sm:$0xff]
        %v3544 = vld [vmem:[%s3390 + $0x4c8] sm:$0xff]
        %v3545 = vld [vmem:[%s3390 + $0x4d0] sm:$0xff]
        %v3546 = vld [vmem:[%s3390 + $0x4d8] sm:$0xff]
        %v3547 = vld [vmem:[%s3390 + $0x4e0] sm:$0xff]
        %v3548 = vld [vmem:[%s3390 + $0x4e8] sm:$0xff]
        %v3549 = vld [vmem:[%s3390 + $0x4f0] sm:$0xff]
        %v3550 = vld [vmem:[%s3390 + $0x4f8] sm:$0xff]
        %v3551 = vld [vmem:[%s3390 + $0x500] sm:$0xff]
        %v3552 = vld [vmem:[%s3390 + $0x508] sm:$0xff]
        %v3553 = vld [vmem:[%s3390 + $0x510] sm:$0xff]
        %v3554 = vld [vmem:[%s3390 + $0x518] sm:$0xff]
        %v3555 = vld [vmem:[%s3390 + $0x520] sm:$0xff]
        %v3556 = vld [vmem:[%s3390 + $0x528] sm:$0xff]
        %v3557 = vld [vmem:[%s3390 + $0x530] sm:$0xff]
        %v3558 = vld [vmem:[%s3390 + $0x538] sm:$0xff]
        %v3559 = vld [vmem:[%s3390 + $0x540] sm:$0xff]
        %v3560 = vld [vmem:[%s3390 + $0x548] sm:$0xff]
        %v3561 = vld [vmem:[%s3390 + $0x550] sm:$0xff]
        %v3562 = vld [vmem:[%s3390 + $0x558] sm:$0xff]
        %v3563 = vld [vmem:[%s3390 + $0x560] sm:$0xff]
        %v3564 = vld [vmem:[%s3390 + $0x568] sm:$0xff]
        %v3565 = vld [vmem:[%s3390 + $0x570] sm:$0xff]
        %v3566 = vld [vmem:[%s3390 + $0x578] sm:$0xff]
        %v3567 = vld [vmem:[%s3390 + $0x580] sm:$0xff]
        %v3568 = vld [vmem:[%s3390 + $0x588] sm:$0xff]
        %v3569 = vld [vmem:[%s3390 + $0x590] sm:$0xff]
        %v3570 = vld [vmem:[%s3390 + $0x598] sm:$0xff]
        %v3571 = vld [vmem:[%s3390 + $0x5a0] sm:$0xff]
        %v3572 = vld [vmem:[%s3390 + $0x5a8] sm:$0xff]
        %v3573 = vld [vmem:[%s3390 + $0x5b0] sm:$0xff]
        %v3574 = vld [vmem:[%s3390 + $0x5b8] sm:$0xff]
        %v3575 = vld [vmem:[%s3390 + $0x5c0] sm:$0xff]
        %v3576 = vld [vmem:[%s3390 + $0x5c8] sm:$0xff]
        %v3577 = vld [vmem:[%s3390 + $0x5d0] sm:$0xff]
        %v3578 = vld [vmem:[%s3390 + $0x5d8] sm:$0xf]
        %v3580 = vsel %vm2133, %v3389, 0
        %v3583 = vsel %vm2137, %v3578, 0
        %3585 = vmatpush.msra.mxu0 %v3406
        %3586 = vmatpush.msra.mxu0 %v3405
        %3587 = vmatpush.msra.mxu0 %v3404
        %3588 = vmatpush.msra.mxu0 %v3403
        %3589 = vmatpush.msra.mxu0 %v3402
        %3590 = vmatpush.msra.mxu0 %v3401
        %3591 = vmatpush.msra.mxu0 %v3400
        %3592 = vmatpush.msra.mxu0 %v3399
        %3593 = vmatpush.msra.mxu0 %v3398
        %3594 = vmatpush.msra.mxu0 %v3397
        %3595 = vmatpush.msra.mxu0 %v3396
        %3596 = vmatpush.msra.mxu0 %v3395
        %3597 = vmatpush.msra.mxu0 %v3394
        %3598 = vmatpush.msra.mxu0 %v3393
        %3599 = vmatpush.msra.mxu0 %v3392
        %3600 = vmatpush.msra.mxu0 %v3391
        %3601 = vmatmul.f32.gmra.mxu0 %v3378
        %v3602 = vpop.f32.mrf.mxu0
        %v3603 = vadd.f32 0.0, %v3602
        %3604 = vdwg.mxu0
        %3605 = vmatpush.msra.mxu0 %v3422
        %3606 = vmatpush.msra.mxu0 %v3421
        %3607 = vmatpush.msra.mxu0 %v3420
        %3608 = vmatpush.msra.mxu0 %v3419
        %3609 = vmatpush.msra.mxu0 %v3418
        %3610 = vmatpush.msra.mxu0 %v3417
        %3611 = vmatpush.msra.mxu0 %v3416
        %3612 = vmatpush.msra.mxu0 %v3415
        %3613 = vmatpush.msra.mxu0 %v3414
        %3614 = vmatpush.msra.mxu0 %v3413
        %3615 = vmatpush.msra.mxu0 %v3412
        %3616 = vmatpush.msra.mxu0 %v3411
        %3617 = vmatpush.msra.mxu0 %v3410
        %3618 = vmatpush.msra.mxu0 %v3409
        %3619 = vmatpush.msra.mxu0 %v3408
        %3620 = vmatpush.msra.mxu0 %v3407
        %3621 = vmatmul.f32.gmra.mxu0 %v3379
        %v3622 = vpop.f32.mrf.mxu0
        %v3623 = vadd.f32 %v3603, %v3622
        %3624 = vdwg.mxu0
        %3625 = vmatpush.msra.mxu0 %v3438
        %3626 = vmatpush.msra.mxu0 %v3437
        %3627 = vmatpush.msra.mxu0 %v3436
        %3628 = vmatpush.msra.mxu0 %v3435
        %3629 = vmatpush.msra.mxu0 %v3434
        %3630 = vmatpush.msra.mxu0 %v3433
        %3631 = vmatpush.msra.mxu0 %v3432
        %3632 = vmatpush.msra.mxu0 %v3431
        %3633 = vmatpush.msra.mxu0 %v3430
        %3634 = vmatpush.msra.mxu0 %v3429
        %3635 = vmatpush.msra.mxu0 %v3428
        %3636 = vmatpush.msra.mxu0 %v3427
        %3637 = vmatpush.msra.mxu0 %v3426
        %3638 = vmatpush.msra.mxu0 %v3425
        %3639 = vmatpush.msra.mxu0 %v3424
        %3640 = vmatpush.msra.mxu0 %v3423
        %3641 = vmatmul.f32.gmra.mxu0 %v3380
        %v3642 = vpop.f32.mrf.mxu0
        %v3643 = vadd.f32 %v3623, %v3642
        %3644 = vdwg.mxu0
        %3645 = vmatpush.msra.mxu0 %v3454
        %3646 = vmatpush.msra.mxu0 %v3453
        %3647 = vmatpush.msra.mxu0 %v3452
        %3648 = vmatpush.msra.mxu0 %v3451
        %3649 = vmatpush.msra.mxu0 %v3450
        %3650 = vmatpush.msra.mxu0 %v3449
        %3651 = vmatpush.msra.mxu0 %v3448
        %3652 = vmatpush.msra.mxu0 %v3447
        %3653 = vmatpush.msra.mxu0 %v3446
        %3654 = vmatpush.msra.mxu0 %v3445
        %3655 = vmatpush.msra.mxu0 %v3444
        %3656 = vmatpush.msra.mxu0 %v3443
        %3657 = vmatpush.msra.mxu0 %v3442
        %3658 = vmatpush.msra.mxu0 %v3441
        %3659 = vmatpush.msra.mxu0 %v3440
        %3660 = vmatpush.msra.mxu0 %v3439
        %3661 = vmatmul.f32.gmra.mxu0 %v3381
        %v3662 = vpop.f32.mrf.mxu0
        %v3663 = vadd.f32 %v3643, %v3662
        %3664 = vdwg.mxu0
        %3665 = vmatpush.msra.mxu0 %v3470
        %3666 = vmatpush.msra.mxu0 %v3469
        %3667 = vmatpush.msra.mxu0 %v3468
        %3668 = vmatpush.msra.mxu0 %v3467
        %3669 = vmatpush.msra.mxu0 %v3466
        %3670 = vmatpush.msra.mxu0 %v3465
        %3671 = vmatpush.msra.mxu0 %v3464
        %3672 = vmatpush.msra.mxu0 %v3463
        %3673 = vmatpush.msra.mxu0 %v3462
        %3674 = vmatpush.msra.mxu0 %v3461
        %3675 = vmatpush.msra.mxu0 %v3460
        %3676 = vmatpush.msra.mxu0 %v3459
        %3677 = vmatpush.msra.mxu0 %v3458
        %3678 = vmatpush.msra.mxu0 %v3457
        %3679 = vmatpush.msra.mxu0 %v3456
        %3680 = vmatpush.msra.mxu0 %v3455
        %3681 = vmatmul.f32.gmra.mxu0 %v3382
        %v3682 = vpop.f32.mrf.mxu0
        %v3683 = vadd.f32 %v3663, %v3682
        %3684 = vdwg.mxu0
        %3685 = vmatpush.msra.mxu0 %v3486
        %3686 = vmatpush.msra.mxu0 %v3485
        %3687 = vmatpush.msra.mxu0 %v3484
        %3688 = vmatpush.msra.mxu0 %v3483
        %3689 = vmatpush.msra.mxu0 %v3482
        %3690 = vmatpush.msra.mxu0 %v3481
        %3691 = vmatpush.msra.mxu0 %v3480
        %3692 = vmatpush.msra.mxu0 %v3479
        %3693 = vmatpush.msra.mxu0 %v3478
        %3694 = vmatpush.msra.mxu0 %v3477
        %3695 = vmatpush.msra.mxu0 %v3476
        %3696 = vmatpush.msra.mxu0 %v3475
        %3697 = vmatpush.msra.mxu0 %v3474
        %3698 = vmatpush.msra.mxu0 %v3473
        %3699 = vmatpush.msra.mxu0 %v3472
        %3700 = vmatpush.msra.mxu0 %v3471
        %3701 = vmatmul.f32.gmra.mxu0 %v3383
        %v3702 = vpop.f32.mrf.mxu0
        %v3703 = vadd.f32 %v3683, %v3702
        %3704 = vdwg.mxu0
        %3705 = vmatpush.msra.mxu0 %v3502
        %3706 = vmatpush.msra.mxu0 %v3501
        %3707 = vmatpush.msra.mxu0 %v3500
        %3708 = vmatpush.msra.mxu0 %v3499
        %3709 = vmatpush.msra.mxu0 %v3498
        %3710 = vmatpush.msra.mxu0 %v3497
        %3711 = vmatpush.msra.mxu0 %v3496
        %3712 = vmatpush.msra.mxu0 %v3495
        %3713 = vmatpush.msra.mxu0 %v3494
        %3714 = vmatpush.msra.mxu0 %v3493
        %3715 = vmatpush.msra.mxu0 %v3492
        %3716 = vmatpush.msra.mxu0 %v3491
        %3717 = vmatpush.msra.mxu0 %v3490
        %3718 = vmatpush.msra.mxu0 %v3489
        %3719 = vmatpush.msra.mxu0 %v3488
        %3720 = vmatpush.msra.mxu0 %v3487
        %3721 = vmatmul.f32.gmra.mxu0 %v3384
        %v3722 = vpop.f32.mrf.mxu0
        %v3723 = vadd.f32 %v3703, %v3722
        %3724 = vdwg.mxu0
        %3725 = vmatpush.msra.mxu0 %v3518
        %3726 = vmatpush.msra.mxu0 %v3517
        %3727 = vmatpush.msra.mxu0 %v3516
        %3728 = vmatpush.msra.mxu0 %v3515
        %3729 = vmatpush.msra.mxu0 %v3514
        %3730 = vmatpush.msra.mxu0 %v3513
        %3731 = vmatpush.msra.mxu0 %v3512
        %3732 = vmatpush.msra.mxu0 %v3511
        %3733 = vmatpush.msra.mxu0 %v3510
        %3734 = vmatpush.msra.mxu0 %v3509
        %3735 = vmatpush.msra.mxu0 %v3508
        %3736 = vmatpush.msra.mxu0 %v3507
        %3737 = vmatpush.msra.mxu0 %v3506
        %3738 = vmatpush.msra.mxu0 %v3505
        %3739 = vmatpush.msra.mxu0 %v3504
        %3740 = vmatpush.msra.mxu0 %v3503
        %3741 = vmatmul.f32.gmra.mxu0 %v3385
        %v3742 = vpop.f32.mrf.mxu0
        %v3743 = vadd.f32 %v3723, %v3742
        %3744 = vdwg.mxu0
        %3745 = vmatpush.msra.mxu0 %v3534
        %3746 = vmatpush.msra.mxu0 %v3533
        %3747 = vmatpush.msra.mxu0 %v3532
        %3748 = vmatpush.msra.mxu0 %v3531
        %3749 = vmatpush.msra.mxu0 %v3530
        %3750 = vmatpush.msra.mxu0 %v3529
        %3751 = vmatpush.msra.mxu0 %v3528
        %3752 = vmatpush.msra.mxu0 %v3527
        %3753 = vmatpush.msra.mxu0 %v3526
        %3754 = vmatpush.msra.mxu0 %v3525
        %3755 = vmatpush.msra.mxu0 %v3524
        %3756 = vmatpush.msra.mxu0 %v3523
        %3757 = vmatpush.msra.mxu0 %v3522
        %3758 = vmatpush.msra.mxu0 %v3521
        %3759 = vmatpush.msra.mxu0 %v3520
        %3760 = vmatpush.msra.mxu0 %v3519
        %3761 = vmatmul.f32.gmra.mxu0 %v3386
        %v3762 = vpop.f32.mrf.mxu0
        %v3763 = vadd.f32 %v3743, %v3762
        %3764 = vdwg.mxu0
        %3765 = vmatpush.msra.mxu0 %v3550
        %3766 = vmatpush.msra.mxu0 %v3549
        %3767 = vmatpush.msra.mxu0 %v3548
        %3768 = vmatpush.msra.mxu0 %v3547
        %3769 = vmatpush.msra.mxu0 %v3546
        %3770 = vmatpush.msra.mxu0 %v3545
        %3771 = vmatpush.msra.mxu0 %v3544
        %3772 = vmatpush.msra.mxu0 %v3543
        %3773 = vmatpush.msra.mxu0 %v3542
        %3774 = vmatpush.msra.mxu0 %v3541
        %3775 = vmatpush.msra.mxu0 %v3540
        %3776 = vmatpush.msra.mxu0 %v3539
        %3777 = vmatpush.msra.mxu0 %v3538
        %3778 = vmatpush.msra.mxu0 %v3537
        %3779 = vmatpush.msra.mxu0 %v3536
        %3780 = vmatpush.msra.mxu0 %v3535
        %3781 = vmatmul.f32.gmra.mxu0 %v3387
        %v3782 = vpop.f32.mrf.mxu0
        %v3783 = vadd.f32 %v3763, %v3782
        %3784 = vdwg.mxu0
        %3785 = vmatpush.msra.mxu0 %v3566
        %3786 = vmatpush.msra.mxu0 %v3565
        %3787 = vmatpush.msra.mxu0 %v3564
        %3788 = vmatpush.msra.mxu0 %v3563
        %3789 = vmatpush.msra.mxu0 %v3562
        %3790 = vmatpush.msra.mxu0 %v3561
        %3791 = vmatpush.msra.mxu0 %v3560
        %3792 = vmatpush.msra.mxu0 %v3559
        %3793 = vmatpush.msra.mxu0 %v3558
        %3794 = vmatpush.msra.mxu0 %v3557
        %3795 = vmatpush.msra.mxu0 %v3556
        %3796 = vmatpush.msra.mxu0 %v3555
        %3797 = vmatpush.msra.mxu0 %v3554
        %3798 = vmatpush.msra.mxu0 %v3553
        %3799 = vmatpush.msra.mxu0 %v3552
        %3800 = vmatpush.msra.mxu0 %v3551
        %3801 = vmatmul.f32.gmra.mxu0 %v3388
        %v3802 = vpop.f32.mrf.mxu0
        %v3803 = vadd.f32 %v3783, %v3802
        %3804 = vdwg.mxu0
        %3805 = vmatpush.msra.mxu0 0.0
        %3806 = vmatpush.msra.mxu0 0.0
        %3807 = vmatpush.msra.mxu0 0.0
        %3808 = vmatpush.msra.mxu0 0.0
        %3809 = vmatpush.msra.mxu0 %v3583
        %3810 = vmatpush.msra.mxu0 %v3577
        %3811 = vmatpush.msra.mxu0 %v3576
        %3812 = vmatpush.msra.mxu0 %v3575
        %3813 = vmatpush.msra.mxu0 %v3574
        %3814 = vmatpush.msra.mxu0 %v3573
        %3815 = vmatpush.msra.mxu0 %v3572
        %3816 = vmatpush.msra.mxu0 %v3571
        %3817 = vmatpush.msra.mxu0 %v3570
        %3818 = vmatpush.msra.mxu0 %v3569
        %3819 = vmatpush.msra.mxu0 %v3568
        %3820 = vmatpush.msra.mxu0 %v3567
        %3821 = vmatmul.f32.gmra.mxu0 %v3580
        %v3822 = vpop.f32.mrf.mxu0
        %v3823 = vadd.f32 %v3803, %v3822
        %3824 = vdwg.mxu0
        %v3825 = vadd.f32 %v2625, %v3823
        %s3826 = scalar_lea.vmem %s204, 48 [#allocation2]
        %v3827 = vld [vmem:[%s3826] sm:$0xff]
        %v3828 = vld [vmem:[%s3826 + $0x8] sm:$0xff]
        %s3829 = scalar_lea.vmem %s1, 5472
        %v3830 = vld [vmem:[%s3829] sm:$0xff]
        %v3831 = vld [vmem:[%s3829 + $0x8] sm:$0xff]
        %v3832 = vld [vmem:[%s3829 + $0x10] sm:$0xff]
        %v3833 = vld [vmem:[%s3829 + $0x18] sm:$0xff]
        %v3834 = vld [vmem:[%s3829 + $0x20] sm:$0xff]
        %v3835 = vld [vmem:[%s3829 + $0x28] sm:$0xff]
        %v3836 = vld [vmem:[%s3829 + $0x30] sm:$0xff]
        %v3837 = vld [vmem:[%s3829 + $0x38] sm:$0xff]
        %v3838 = vld [vmem:[%s3829 + $0x40] sm:$0xff]
        %v3839 = vld [vmem:[%s3829 + $0x48] sm:$0xff]
        %v3840 = vld [vmem:[%s3829 + $0x50] sm:$0xff]
        %v3841 = vld [vmem:[%s3829 + $0x58] sm:$0xff]
        %v3842 = vld [vmem:[%s3829 + $0x60] sm:$0xff]
        %v3843 = vld [vmem:[%s3829 + $0x68] sm:$0xff]
        %v3844 = vld [vmem:[%s3829 + $0x70] sm:$0xff]
        %v3845 = vld [vmem:[%s3829 + $0x78] sm:$0xff]
        %v3846 = vld [vmem:[%s3829 + $0x80] sm:$0xff]
        %v3847 = vld [vmem:[%s3829 + $0x88] sm:$0xff]
        %v3848 = vld [vmem:[%s3829 + $0x90] sm:$0xff]
        %v3849 = vld [vmem:[%s3829 + $0x98] sm:$0xff]
        %v3850 = vld [vmem:[%s3829 + $0xa0] sm:$0xff]
        %v3851 = vld [vmem:[%s3829 + $0xa8] sm:$0xff]
        %v3852 = vld [vmem:[%s3829 + $0xb0] sm:$0xff]
        %v3853 = vld [vmem:[%s3829 + $0xb8] sm:$0xff]
        %v3854 = vld [vmem:[%s3829 + $0xc0] sm:$0xff]
        %v3855 = vld [vmem:[%s3829 + $0xc8] sm:$0xff]
        %v3856 = vld [vmem:[%s3829 + $0xd0] sm:$0xff]
        %v3857 = vld [vmem:[%s3829 + $0xd8] sm:$0xff]
        %v3858 = vld [vmem:[%s3829 + $0xe0] sm:$0xff]
        %v3859 = vld [vmem:[%s3829 + $0xe8] sm:$0xff]
        %v3860 = vld [vmem:[%s3829 + $0xf0] sm:$0xff]
        %v3861 = vld [vmem:[%s3829 + $0xf8] sm:$0xff]
        %v3862 = vld [vmem:[%s3829 + $0x100] sm:$0xff]
        %v3863 = vld [vmem:[%s3829 + $0x108] sm:$0xff]
        %v3864 = vld [vmem:[%s3829 + $0x110] sm:$0xff]
        %v3865 = vld [vmem:[%s3829 + $0x118] sm:$0xff]
        %v3866 = vld [vmem:[%s3829 + $0x120] sm:$0xff]
        %v3867 = vld [vmem:[%s3829 + $0x128] sm:$0xff]
        %v3868 = vld [vmem:[%s3829 + $0x130] sm:$0xff]
        %v3869 = vld [vmem:[%s3829 + $0x138] sm:$0xff]
        %v3870 = vld [vmem:[%s3829 + $0x140] sm:$0xff]
        %v3871 = vld [vmem:[%s3829 + $0x148] sm:$0xff]
        %v3872 = vld [vmem:[%s3829 + $0x150] sm:$0xff]
        %v3873 = vld [vmem:[%s3829 + $0x158] sm:$0xff]
        %v3874 = vld [vmem:[%s3829 + $0x160] sm:$0xff]
        %v3875 = vld [vmem:[%s3829 + $0x168] sm:$0xff]
        %v3876 = vld [vmem:[%s3829 + $0x170] sm:$0xff]
        %v3877 = vld [vmem:[%s3829 + $0x178] sm:$0xff]
        %v3878 = vld [vmem:[%s3829 + $0x180] sm:$0xff]
        %v3879 = vld [vmem:[%s3829 + $0x188] sm:$0xff]
        %v3880 = vld [vmem:[%s3829 + $0x190] sm:$0xff]
        %v3881 = vld [vmem:[%s3829 + $0x198] sm:$0xff]
        %v3882 = vld [vmem:[%s3829 + $0x1a0] sm:$0xff]
        %v3883 = vld [vmem:[%s3829 + $0x1a8] sm:$0xff]
        %v3884 = vld [vmem:[%s3829 + $0x1b0] sm:$0xff]
        %v3885 = vld [vmem:[%s3829 + $0x1b8] sm:$0xff]
        %v3886 = vld [vmem:[%s3829 + $0x1c0] sm:$0xff]
        %v3887 = vld [vmem:[%s3829 + $0x1c8] sm:$0xff]
        %v3888 = vld [vmem:[%s3829 + $0x1d0] sm:$0xff]
        %v3889 = vld [vmem:[%s3829 + $0x1d8] sm:$0xff]
        %v3890 = vld [vmem:[%s3829 + $0x1e0] sm:$0xff]
        %v3891 = vld [vmem:[%s3829 + $0x1e8] sm:$0xff]
        %v3892 = vld [vmem:[%s3829 + $0x1f0] sm:$0xff]
        %v3893 = vld [vmem:[%s3829 + $0x1f8] sm:$0xff]
        %v3894 = vld [vmem:[%s3829 + $0x200] sm:$0xff]
        %v3895 = vld [vmem:[%s3829 + $0x208] sm:$0xff]
        %v3896 = vld [vmem:[%s3829 + $0x210] sm:$0xff]
        %v3897 = vld [vmem:[%s3829 + $0x218] sm:$0xff]
        %v3898 = vld [vmem:[%s3829 + $0x220] sm:$0xff]
        %v3899 = vld [vmem:[%s3829 + $0x228] sm:$0xff]
        %v3900 = vld [vmem:[%s3829 + $0x230] sm:$0xff]
        %v3901 = vld [vmem:[%s3829 + $0x238] sm:$0xff]
        %v3902 = vld [vmem:[%s3829 + $0x240] sm:$0xff]
        %v3903 = vld [vmem:[%s3829 + $0x248] sm:$0xff]
        %v3904 = vld [vmem:[%s3829 + $0x250] sm:$0xff]
        %v3905 = vld [vmem:[%s3829 + $0x258] sm:$0xff]
        %v3906 = vld [vmem:[%s3829 + $0x260] sm:$0xff]
        %v3907 = vld [vmem:[%s3829 + $0x268] sm:$0xff]
        %v3908 = vld [vmem:[%s3829 + $0x270] sm:$0xff]
        %v3909 = vld [vmem:[%s3829 + $0x278] sm:$0xff]
        %v3910 = vld [vmem:[%s3829 + $0x280] sm:$0xff]
        %v3911 = vld [vmem:[%s3829 + $0x288] sm:$0xff]
        %v3912 = vld [vmem:[%s3829 + $0x290] sm:$0xff]
        %v3913 = vld [vmem:[%s3829 + $0x298] sm:$0xff]
        %v3914 = vld [vmem:[%s3829 + $0x2a0] sm:$0xff]
        %v3915 = vld [vmem:[%s3829 + $0x2a8] sm:$0xff]
        %v3916 = vld [vmem:[%s3829 + $0x2b0] sm:$0xff]
        %v3917 = vld [vmem:[%s3829 + $0x2b8] sm:$0xff]
        %v3918 = vld [vmem:[%s3829 + $0x2c0] sm:$0xff]
        %v3919 = vld [vmem:[%s3829 + $0x2c8] sm:$0xff]
        %v3920 = vld [vmem:[%s3829 + $0x2d0] sm:$0xff]
        %v3921 = vld [vmem:[%s3829 + $0x2d8] sm:$0xff]
        %v3922 = vld [vmem:[%s3829 + $0x2e0] sm:$0xff]
        %v3923 = vld [vmem:[%s3829 + $0x2e8] sm:$0xff]
        %v3924 = vld [vmem:[%s3829 + $0x2f0] sm:$0xff]
        %v3925 = vld [vmem:[%s3829 + $0x2f8] sm:$0xff]
        %v3926 = vld [vmem:[%s3829 + $0x300] sm:$0xff]
        %v3927 = vld [vmem:[%s3829 + $0x308] sm:$0xff]
        %v3928 = vld [vmem:[%s3829 + $0x310] sm:$0xff]
        %v3929 = vld [vmem:[%s3829 + $0x318] sm:$0xff]
        %v3930 = vld [vmem:[%s3829 + $0x320] sm:$0xff]
        %v3931 = vld [vmem:[%s3829 + $0x328] sm:$0xff]
        %v3932 = vld [vmem:[%s3829 + $0x330] sm:$0xff]
        %v3933 = vld [vmem:[%s3829 + $0x338] sm:$0xff]
        %v3934 = vld [vmem:[%s3829 + $0x340] sm:$0xff]
        %v3935 = vld [vmem:[%s3829 + $0x348] sm:$0xff]
        %v3936 = vld [vmem:[%s3829 + $0x350] sm:$0xff]
        %v3937 = vld [vmem:[%s3829 + $0x358] sm:$0xff]
        %v3938 = vld [vmem:[%s3829 + $0x360] sm:$0xff]
        %v3939 = vld [vmem:[%s3829 + $0x368] sm:$0xff]
        %v3940 = vld [vmem:[%s3829 + $0x370] sm:$0xff]
        %v3941 = vld [vmem:[%s3829 + $0x378] sm:$0xff]
        %v3942 = vld [vmem:[%s3829 + $0x380] sm:$0xff]
        %v3943 = vld [vmem:[%s3829 + $0x388] sm:$0xff]
        %v3944 = vld [vmem:[%s3829 + $0x390] sm:$0xff]
        %v3945 = vld [vmem:[%s3829 + $0x398] sm:$0xff]
        %v3946 = vld [vmem:[%s3829 + $0x3a0] sm:$0xff]
        %v3947 = vld [vmem:[%s3829 + $0x3a8] sm:$0xff]
        %v3948 = vld [vmem:[%s3829 + $0x3b0] sm:$0xff]
        %v3949 = vld [vmem:[%s3829 + $0x3b8] sm:$0xff]
        %v3950 = vld [vmem:[%s3829 + $0x3c0] sm:$0xff]
        %v3951 = vld [vmem:[%s3829 + $0x3c8] sm:$0xff]
        %v3952 = vld [vmem:[%s3829 + $0x3d0] sm:$0xff]
        %v3953 = vld [vmem:[%s3829 + $0x3d8] sm:$0xff]
        %v3954 = vld [vmem:[%s3829 + $0x3e0] sm:$0xff]
        %v3955 = vld [vmem:[%s3829 + $0x3e8] sm:$0xff]
        %v3956 = vld [vmem:[%s3829 + $0x3f0] sm:$0xff]
        %v3957 = vld [vmem:[%s3829 + $0x3f8] sm:$0xff]
        %v3958 = vld [vmem:[%s3829 + $0x400] sm:$0xff]
        %v3959 = vld [vmem:[%s3829 + $0x408] sm:$0xff]
        %v3960 = vld [vmem:[%s3829 + $0x410] sm:$0xff]
        %v3961 = vld [vmem:[%s3829 + $0x418] sm:$0xff]
        %v3962 = vld [vmem:[%s3829 + $0x420] sm:$0xff]
        %v3963 = vld [vmem:[%s3829 + $0x428] sm:$0xff]
        %v3964 = vld [vmem:[%s3829 + $0x430] sm:$0xff]
        %v3965 = vld [vmem:[%s3829 + $0x438] sm:$0xff]
        %v3966 = vld [vmem:[%s3829 + $0x440] sm:$0xff]
        %v3967 = vld [vmem:[%s3829 + $0x448] sm:$0xff]
        %v3968 = vld [vmem:[%s3829 + $0x450] sm:$0xff]
        %v3969 = vld [vmem:[%s3829 + $0x458] sm:$0xff]
        %v3970 = vld [vmem:[%s3829 + $0x460] sm:$0xff]
        %v3971 = vld [vmem:[%s3829 + $0x468] sm:$0xff]
        %v3972 = vld [vmem:[%s3829 + $0x470] sm:$0xff]
        %v3973 = vld [vmem:[%s3829 + $0x478] sm:$0xff]
        %v3974 = vld [vmem:[%s3829 + $0x480] sm:$0xff]
        %v3975 = vld [vmem:[%s3829 + $0x488] sm:$0xff]
        %v3976 = vld [vmem:[%s3829 + $0x490] sm:$0xff]
        %v3977 = vld [vmem:[%s3829 + $0x498] sm:$0xff]
        %v3978 = vld [vmem:[%s3829 + $0x4a0] sm:$0xff]
        %v3979 = vld [vmem:[%s3829 + $0x4a8] sm:$0xff]
        %v3980 = vld [vmem:[%s3829 + $0x4b0] sm:$0xff]
        %v3981 = vld [vmem:[%s3829 + $0x4b8] sm:$0xff]
        %v3982 = vld [vmem:[%s3829 + $0x4c0] sm:$0xff]
        %v3983 = vld [vmem:[%s3829 + $0x4c8] sm:$0xff]
        %v3984 = vld [vmem:[%s3829 + $0x4d0] sm:$0xff]
        %v3985 = vld [vmem:[%s3829 + $0x4d8] sm:$0xff]
        %v3986 = vld [vmem:[%s3829 + $0x4e0] sm:$0xff]
        %v3987 = vld [vmem:[%s3829 + $0x4e8] sm:$0xff]
        %v3988 = vld [vmem:[%s3829 + $0x4f0] sm:$0xff]
        %v3989 = vld [vmem:[%s3829 + $0x4f8] sm:$0xff]
        %v3990 = vld [vmem:[%s3829 + $0x500] sm:$0xff]
        %v3991 = vld [vmem:[%s3829 + $0x508] sm:$0xff]
        %v3992 = vld [vmem:[%s3829 + $0x510] sm:$0xff]
        %v3993 = vld [vmem:[%s3829 + $0x518] sm:$0xff]
        %v3994 = vld [vmem:[%s3829 + $0x520] sm:$0xff]
        %v3995 = vld [vmem:[%s3829 + $0x528] sm:$0xff]
        %v3996 = vld [vmem:[%s3829 + $0x530] sm:$0xff]
        %v3997 = vld [vmem:[%s3829 + $0x538] sm:$0xff]
        %v3998 = vld [vmem:[%s3829 + $0x540] sm:$0xff]
        %v3999 = vld [vmem:[%s3829 + $0x548] sm:$0xff]
        %v4000 = vld [vmem:[%s3829 + $0x550] sm:$0xff]
        %v4001 = vld [vmem:[%s3829 + $0x558] sm:$0xff]
        %v4002 = vld [vmem:[%s3829 + $0x560] sm:$0xff]
        %v4003 = vld [vmem:[%s3829 + $0x568] sm:$0xff]
        %v4004 = vld [vmem:[%s3829 + $0x570] sm:$0xff]
        %v4005 = vld [vmem:[%s3829 + $0x578] sm:$0xff]
        %v4006 = vld [vmem:[%s3829 + $0x580] sm:$0xff]
        %v4007 = vld [vmem:[%s3829 + $0x588] sm:$0xff]
        %v4008 = vld [vmem:[%s3829 + $0x590] sm:$0xff]
        %v4009 = vld [vmem:[%s3829 + $0x598] sm:$0xff]
        %v4010 = vld [vmem:[%s3829 + $0x5a0] sm:$0xff]
        %v4011 = vld [vmem:[%s3829 + $0x5a8] sm:$0xff]
        %v4012 = vld [vmem:[%s3829 + $0x5b0] sm:$0xff]
        %v4013 = vld [vmem:[%s3829 + $0x5b8] sm:$0xff]
        %v4014 = vld [vmem:[%s3829 + $0x5c0] sm:$0xff]
        %v4015 = vld [vmem:[%s3829 + $0x5c8] sm:$0xff]
        %v4016 = vld [vmem:[%s3829 + $0x5d0] sm:$0xff]
        %v4017 = vld [vmem:[%s3829 + $0x5d8] sm:$0xff]
        %v4018 = vld [vmem:[%s3829 + $0x5e0] sm:$0xff]
        %v4019 = vld [vmem:[%s3829 + $0x5e8] sm:$0xff]
        %v4020 = vld [vmem:[%s3829 + $0x5f0] sm:$0xff]
        %v4021 = vld [vmem:[%s3829 + $0x5f8] sm:$0xff]
        %v4022 = vld [vmem:[%s3829 + $0x600] sm:$0xff]
        %v4023 = vld [vmem:[%s3829 + $0x608] sm:$0xff]
        %v4024 = vld [vmem:[%s3829 + $0x610] sm:$0xff]
        %v4025 = vld [vmem:[%s3829 + $0x618] sm:$0xff]
        %v4026 = vld [vmem:[%s3829 + $0x620] sm:$0xff]
        %v4027 = vld [vmem:[%s3829 + $0x628] sm:$0xff]
        %v4028 = vld [vmem:[%s3829 + $0x630] sm:$0xff]
        %v4029 = vld [vmem:[%s3829 + $0x638] sm:$0xff]
        %v4030 = vld [vmem:[%s3829 + $0x640] sm:$0xff]
        %v4031 = vld [vmem:[%s3829 + $0x648] sm:$0xff]
        %v4032 = vld [vmem:[%s3829 + $0x650] sm:$0xff]
        %v4033 = vld [vmem:[%s3829 + $0x658] sm:$0xff]
        %v4034 = vld [vmem:[%s3829 + $0x660] sm:$0xff]
        %v4035 = vld [vmem:[%s3829 + $0x668] sm:$0xff]
        %v4036 = vld [vmem:[%s3829 + $0x670] sm:$0xff]
        %v4037 = vld [vmem:[%s3829 + $0x678] sm:$0xff]
        %v4038 = vld [vmem:[%s3829 + $0x680] sm:$0xff]
        %v4039 = vld [vmem:[%s3829 + $0x688] sm:$0xff]
        %v4040 = vld [vmem:[%s3829 + $0x690] sm:$0xff]
        %v4041 = vld [vmem:[%s3829 + $0x698] sm:$0xff]
        %v4042 = vld [vmem:[%s3829 + $0x6a0] sm:$0xff]
        %v4043 = vld [vmem:[%s3829 + $0x6a8] sm:$0xff]
        %v4044 = vld [vmem:[%s3829 + $0x6b0] sm:$0xff]
        %v4045 = vld [vmem:[%s3829 + $0x6b8] sm:$0xff]
        %v4046 = vld [vmem:[%s3829 + $0x6c0] sm:$0x1f]
        %v4047 = vld [vmem:[%s3829 + $0x6c8] sm:$0x1f]
        %v4048 = vld [vmem:[%s3829 + $0x6d0] sm:$0x1f]
        %v4049 = vld [vmem:[%s3829 + $0x6d8] sm:$0x1f]
        %v4050 = vld [vmem:[%s3829 + $0x6e0] sm:$0x1f]
        %v4051 = vld [vmem:[%s3829 + $0x6e8] sm:$0x1f]
        %v4052 = vld [vmem:[%s3829 + $0x6f0] sm:$0x1f]
        %v4053 = vld [vmem:[%s3829 + $0x6f8] sm:$0x1f]
        %v4054 = vld [vmem:[%s3829 + $0x700] sm:$0x1f]
        %v4055 = vld [vmem:[%s3829 + $0x708] sm:$0x1f]
        %v4056 = vld [vmem:[%s3829 + $0x710] sm:$0x1f]
        %v4057 = vld [vmem:[%s3829 + $0x718] sm:$0x1f]
        %v4059 = vsel %vm460, %v3828, 0
        %v4062 = vsel %vm464, %v4046, 0
        %v4065 = vsel %vm464, %v4047, 0
        %v4068 = vsel %vm464, %v4048, 0
        %v4071 = vsel %vm464, %v4049, 0
        %v4074 = vsel %vm464, %v4050, 0
        %v4077 = vsel %vm464, %v4051, 0
        %v4080 = vsel %vm464, %v4052, 0
        %v4083 = vsel %vm464, %v4053, 0
        %v4086 = vsel %vm464, %v4054, 0
        %v4089 = vsel %vm464, %v4055, 0
        %v4092 = vsel %vm464, %v4056, 0
        %v4095 = vsel %vm464, %v4057, 0
        %4097 = vmatpush.msra.mxu0 %v4010
        %4098 = vmatpush.msra.mxu0 %v3998
        %4099 = vmatpush.msra.mxu0 %v3986
        %4100 = vmatpush.msra.mxu0 %v3974
        %4101 = vmatpush.msra.mxu0 %v3962
        %4102 = vmatpush.msra.mxu0 %v3950
        %4103 = vmatpush.msra.mxu0 %v3938
        %4104 = vmatpush.msra.mxu0 %v3926
        %4105 = vmatpush.msra.mxu0 %v3914
        %4106 = vmatpush.msra.mxu0 %v3902
        %4107 = vmatpush.msra.mxu0 %v3890
        %4108 = vmatpush.msra.mxu0 %v3878
        %4109 = vmatpush.msra.mxu0 %v3866
        %4110 = vmatpush.msra.mxu0 %v3854
        %4111 = vmatpush.msra.mxu0 %v3842
        %4112 = vmatpush.msra.mxu0 %v3830
        %4113 = vmatmul.f32.gmra.mxu0 %v3827
        %v4114 = vpop.f32.mrf.mxu0
        %v4115 = vadd.f32 0.0, %v4114
        %4116 = vdwg.mxu0
        %4117 = vmatpush.msra.mxu0 0.0
        %4118 = vmatpush.msra.mxu0 0.0
        %4119 = vmatpush.msra.mxu0 0.0
        %4120 = vmatpush.msra.mxu0 0.0
        %4121 = vmatpush.msra.mxu0 0.0
        %4122 = vmatpush.msra.mxu0 0.0
        %4123 = vmatpush.msra.mxu0 0.0
        %4124 = vmatpush.msra.mxu0 0.0
        %4125 = vmatpush.msra.mxu0 0.0
        %4126 = vmatpush.msra.mxu0 0.0
        %4127 = vmatpush.msra.mxu0 0.0
        %4128 = vmatpush.msra.mxu0 0.0
        %4129 = vmatpush.msra.mxu0 0.0
        %4130 = vmatpush.msra.mxu0 %v4062
        %4131 = vmatpush.msra.mxu0 %v4034
        %4132 = vmatpush.msra.mxu0 %v4022
        %4133 = vmatmul.f32.gmra.mxu0 %v4059
        %v4134 = vpop.f32.mrf.mxu0
        %v4135 = vadd.f32 %v4115, %v4134
        %4136 = vdwg.mxu0
        %4137 = vmatpush.msra.mxu0 %v4011
        %4138 = vmatpush.msra.mxu0 %v3999
        %4139 = vmatpush.msra.mxu0 %v3987
        %4140 = vmatpush.msra.mxu0 %v3975
        %4141 = vmatpush.msra.mxu0 %v3963
        %4142 = vmatpush.msra.mxu0 %v3951
        %4143 = vmatpush.msra.mxu0 %v3939
        %4144 = vmatpush.msra.mxu0 %v3927
        %4145 = vmatpush.msra.mxu0 %v3915
        %4146 = vmatpush.msra.mxu0 %v3903
        %4147 = vmatpush.msra.mxu0 %v3891
        %4148 = vmatpush.msra.mxu0 %v3879
        %4149 = vmatpush.msra.mxu0 %v3867
        %4150 = vmatpush.msra.mxu0 %v3855
        %4151 = vmatpush.msra.mxu0 %v3843
        %4152 = vmatpush.msra.mxu0 %v3831
        %4153 = vmatmul.f32.gmra.mxu0 %v3827
        %v4154 = vpop.f32.mrf.mxu0
        %v4155 = vadd.f32 0.0, %v4154
        %4156 = vdwg.mxu0
        %4157 = vmatpush.msra.mxu0 0.0
        %4158 = vmatpush.msra.mxu0 0.0
        %4159 = vmatpush.msra.mxu0 0.0
        %4160 = vmatpush.msra.mxu0 0.0
        %4161 = vmatpush.msra.mxu0 0.0
        %4162 = vmatpush.msra.mxu0 0.0
        %4163 = vmatpush.msra.mxu0 0.0
        %4164 = vmatpush.msra.mxu0 0.0
        %4165 = vmatpush.msra.mxu0 0.0
        %4166 = vmatpush.msra.mxu0 0.0
        %4167 = vmatpush.msra.mxu0 0.0
        %4168 = vmatpush.msra.mxu0 0.0
        %4169 = vmatpush.msra.mxu0 0.0
        %4170 = vmatpush.msra.mxu0 %v4065
        %4171 = vmatpush.msra.mxu0 %v4035
        %4172 = vmatpush.msra.mxu0 %v4023
        %4173 = vmatmul.f32.gmra.mxu0 %v4059
        %v4174 = vpop.f32.mrf.mxu0
        %v4175 = vadd.f32 %v4155, %v4174
        %4176 = vdwg.mxu0
        %4177 = vmatpush.msra.mxu0 %v4012
        %4178 = vmatpush.msra.mxu0 %v4000
        %4179 = vmatpush.msra.mxu0 %v3988
        %4180 = vmatpush.msra.mxu0 %v3976
        %4181 = vmatpush.msra.mxu0 %v3964
        %4182 = vmatpush.msra.mxu0 %v3952
        %4183 = vmatpush.msra.mxu0 %v3940
        %4184 = vmatpush.msra.mxu0 %v3928
        %4185 = vmatpush.msra.mxu0 %v3916
        %4186 = vmatpush.msra.mxu0 %v3904
        %4187 = vmatpush.msra.mxu0 %v3892
        %4188 = vmatpush.msra.mxu0 %v3880
        %4189 = vmatpush.msra.mxu0 %v3868
        %4190 = vmatpush.msra.mxu0 %v3856
        %4191 = vmatpush.msra.mxu0 %v3844
        %4192 = vmatpush.msra.mxu0 %v3832
        %4193 = vmatmul.f32.gmra.mxu0 %v3827
        %v4194 = vpop.f32.mrf.mxu0
        %v4195 = vadd.f32 0.0, %v4194
        %4196 = vdwg.mxu0
        %4197 = vmatpush.msra.mxu0 0.0
        %4198 = vmatpush.msra.mxu0 0.0
        %4199 = vmatpush.msra.mxu0 0.0
        %4200 = vmatpush.msra.mxu0 0.0
        %4201 = vmatpush.msra.mxu0 0.0
        %4202 = vmatpush.msra.mxu0 0.0
        %4203 = vmatpush.msra.mxu0 0.0
        %4204 = vmatpush.msra.mxu0 0.0
        %4205 = vmatpush.msra.mxu0 0.0
        %4206 = vmatpush.msra.mxu0 0.0
        %4207 = vmatpush.msra.mxu0 0.0
        %4208 = vmatpush.msra.mxu0 0.0
        %4209 = vmatpush.msra.mxu0 0.0
        %4210 = vmatpush.msra.mxu0 %v4068
        %4211 = vmatpush.msra.mxu0 %v4036
        %4212 = vmatpush.msra.mxu0 %v4024
        %4213 = vmatmul.f32.gmra.mxu0 %v4059
        %v4214 = vpop.f32.mrf.mxu0
        %v4215 = vadd.f32 %v4195, %v4214
        %4216 = vdwg.mxu0
        %4217 = vmatpush.msra.mxu0 %v4013
        %4218 = vmatpush.msra.mxu0 %v4001
        %4219 = vmatpush.msra.mxu0 %v3989
        %4220 = vmatpush.msra.mxu0 %v3977
        %4221 = vmatpush.msra.mxu0 %v3965
        %4222 = vmatpush.msra.mxu0 %v3953
        %4223 = vmatpush.msra.mxu0 %v3941
        %4224 = vmatpush.msra.mxu0 %v3929
        %4225 = vmatpush.msra.mxu0 %v3917
        %4226 = vmatpush.msra.mxu0 %v3905
        %4227 = vmatpush.msra.mxu0 %v3893
        %4228 = vmatpush.msra.mxu0 %v3881
        %4229 = vmatpush.msra.mxu0 %v3869
        %4230 = vmatpush.msra.mxu0 %v3857
        %4231 = vmatpush.msra.mxu0 %v3845
        %4232 = vmatpush.msra.mxu0 %v3833
        %4233 = vmatmul.f32.gmra.mxu0 %v3827
        %v4234 = vpop.f32.mrf.mxu0
        %v4235 = vadd.f32 0.0, %v4234
        %4236 = vdwg.mxu0
        %4237 = vmatpush.msra.mxu0 0.0
        %4238 = vmatpush.msra.mxu0 0.0
        %4239 = vmatpush.msra.mxu0 0.0
        %4240 = vmatpush.msra.mxu0 0.0
        %4241 = vmatpush.msra.mxu0 0.0
        %4242 = vmatpush.msra.mxu0 0.0
        %4243 = vmatpush.msra.mxu0 0.0
        %4244 = vmatpush.msra.mxu0 0.0
        %4245 = vmatpush.msra.mxu0 0.0
        %4246 = vmatpush.msra.mxu0 0.0
        %4247 = vmatpush.msra.mxu0 0.0
        %4248 = vmatpush.msra.mxu0 0.0
        %4249 = vmatpush.msra.mxu0 0.0
        %4250 = vmatpush.msra.mxu0 %v4071
        %4251 = vmatpush.msra.mxu0 %v4037
        %4252 = vmatpush.msra.mxu0 %v4025
        %4253 = vmatmul.f32.gmra.mxu0 %v4059
        %v4254 = vpop.f32.mrf.mxu0
        %v4255 = vadd.f32 %v4235, %v4254
        %4256 = vdwg.mxu0
        %4257 = vmatpush.msra.mxu0 %v4014
        %4258 = vmatpush.msra.mxu0 %v4002
        %4259 = vmatpush.msra.mxu0 %v3990
        %4260 = vmatpush.msra.mxu0 %v3978
        %4261 = vmatpush.msra.mxu0 %v3966
        %4262 = vmatpush.msra.mxu0 %v3954
        %4263 = vmatpush.msra.mxu0 %v3942
        %4264 = vmatpush.msra.mxu0 %v3930
        %4265 = vmatpush.msra.mxu0 %v3918
        %4266 = vmatpush.msra.mxu0 %v3906
        %4267 = vmatpush.msra.mxu0 %v3894
        %4268 = vmatpush.msra.mxu0 %v3882
        %4269 = vmatpush.msra.mxu0 %v3870
        %4270 = vmatpush.msra.mxu0 %v3858
        %4271 = vmatpush.msra.mxu0 %v3846
        %4272 = vmatpush.msra.mxu0 %v3834
        %4273 = vmatmul.f32.gmra.mxu0 %v3827
        %v4274 = vpop.f32.mrf.mxu0
        %v4275 = vadd.f32 0.0, %v4274
        %4276 = vdwg.mxu0
        %4277 = vmatpush.msra.mxu0 0.0
        %4278 = vmatpush.msra.mxu0 0.0
        %4279 = vmatpush.msra.mxu0 0.0
        %4280 = vmatpush.msra.mxu0 0.0
        %4281 = vmatpush.msra.mxu0 0.0
        %4282 = vmatpush.msra.mxu0 0.0
        %4283 = vmatpush.msra.mxu0 0.0
        %4284 = vmatpush.msra.mxu0 0.0
        %4285 = vmatpush.msra.mxu0 0.0
        %4286 = vmatpush.msra.mxu0 0.0
        %4287 = vmatpush.msra.mxu0 0.0
        %4288 = vmatpush.msra.mxu0 0.0
        %4289 = vmatpush.msra.mxu0 0.0
        %4290 = vmatpush.msra.mxu0 %v4074
        %4291 = vmatpush.msra.mxu0 %v4038
        %4292 = vmatpush.msra.mxu0 %v4026
        %4293 = vmatmul.f32.gmra.mxu0 %v4059
        %v4294 = vpop.f32.mrf.mxu0
        %v4295 = vadd.f32 %v4275, %v4294
        %4296 = vdwg.mxu0
        %4297 = vmatpush.msra.mxu0 %v4015
        %4298 = vmatpush.msra.mxu0 %v4003
        %4299 = vmatpush.msra.mxu0 %v3991
        %4300 = vmatpush.msra.mxu0 %v3979
        %4301 = vmatpush.msra.mxu0 %v3967
        %4302 = vmatpush.msra.mxu0 %v3955
        %4303 = vmatpush.msra.mxu0 %v3943
        %4304 = vmatpush.msra.mxu0 %v3931
        %4305 = vmatpush.msra.mxu0 %v3919
        %4306 = vmatpush.msra.mxu0 %v3907
        %4307 = vmatpush.msra.mxu0 %v3895
        %4308 = vmatpush.msra.mxu0 %v3883
        %4309 = vmatpush.msra.mxu0 %v3871
        %4310 = vmatpush.msra.mxu0 %v3859
        %4311 = vmatpush.msra.mxu0 %v3847
        %4312 = vmatpush.msra.mxu0 %v3835
        %4313 = vmatmul.f32.gmra.mxu0 %v3827
        %v4314 = vpop.f32.mrf.mxu0
        %v4315 = vadd.f32 0.0, %v4314
        %4316 = vdwg.mxu0
        %4317 = vmatpush.msra.mxu0 0.0
        %4318 = vmatpush.msra.mxu0 0.0
        %4319 = vmatpush.msra.mxu0 0.0
        %4320 = vmatpush.msra.mxu0 0.0
        %4321 = vmatpush.msra.mxu0 0.0
        %4322 = vmatpush.msra.mxu0 0.0
        %4323 = vmatpush.msra.mxu0 0.0
        %4324 = vmatpush.msra.mxu0 0.0
        %4325 = vmatpush.msra.mxu0 0.0
        %4326 = vmatpush.msra.mxu0 0.0
        %4327 = vmatpush.msra.mxu0 0.0
        %4328 = vmatpush.msra.mxu0 0.0
        %4329 = vmatpush.msra.mxu0 0.0
        %4330 = vmatpush.msra.mxu0 %v4077
        %4331 = vmatpush.msra.mxu0 %v4039
        %4332 = vmatpush.msra.mxu0 %v4027
        %4333 = vmatmul.f32.gmra.mxu0 %v4059
        %v4334 = vpop.f32.mrf.mxu0
        %v4335 = vadd.f32 %v4315, %v4334
        %4336 = vdwg.mxu0
        %4337 = vmatpush.msra.mxu0 %v4016
        %4338 = vmatpush.msra.mxu0 %v4004
        %4339 = vmatpush.msra.mxu0 %v3992
        %4340 = vmatpush.msra.mxu0 %v3980
        %4341 = vmatpush.msra.mxu0 %v3968
        %4342 = vmatpush.msra.mxu0 %v3956
        %4343 = vmatpush.msra.mxu0 %v3944
        %4344 = vmatpush.msra.mxu0 %v3932
        %4345 = vmatpush.msra.mxu0 %v3920
        %4346 = vmatpush.msra.mxu0 %v3908
        %4347 = vmatpush.msra.mxu0 %v3896
        %4348 = vmatpush.msra.mxu0 %v3884
        %4349 = vmatpush.msra.mxu0 %v3872
        %4350 = vmatpush.msra.mxu0 %v3860
        %4351 = vmatpush.msra.mxu0 %v3848
        %4352 = vmatpush.msra.mxu0 %v3836
        %4353 = vmatmul.f32.gmra.mxu0 %v3827
        %v4354 = vpop.f32.mrf.mxu0
        %v4355 = vadd.f32 0.0, %v4354
        %4356 = vdwg.mxu0
        %4357 = vmatpush.msra.mxu0 0.0
        %4358 = vmatpush.msra.mxu0 0.0
        %4359 = vmatpush.msra.mxu0 0.0
        %4360 = vmatpush.msra.mxu0 0.0
        %4361 = vmatpush.msra.mxu0 0.0
        %4362 = vmatpush.msra.mxu0 0.0
        %4363 = vmatpush.msra.mxu0 0.0
        %4364 = vmatpush.msra.mxu0 0.0
        %4365 = vmatpush.msra.mxu0 0.0
        %4366 = vmatpush.msra.mxu0 0.0
        %4367 = vmatpush.msra.mxu0 0.0
        %4368 = vmatpush.msra.mxu0 0.0
        %4369 = vmatpush.msra.mxu0 0.0
        %4370 = vmatpush.msra.mxu0 %v4080
        %4371 = vmatpush.msra.mxu0 %v4040
        %4372 = vmatpush.msra.mxu0 %v4028
        %4373 = vmatmul.f32.gmra.mxu0 %v4059
        %v4374 = vpop.f32.mrf.mxu0
        %v4375 = vadd.f32 %v4355, %v4374
        %4376 = vdwg.mxu0
        %4377 = vmatpush.msra.mxu0 %v4017
        %4378 = vmatpush.msra.mxu0 %v4005
        %4379 = vmatpush.msra.mxu0 %v3993
        %4380 = vmatpush.msra.mxu0 %v3981
        %4381 = vmatpush.msra.mxu0 %v3969
        %4382 = vmatpush.msra.mxu0 %v3957
        %4383 = vmatpush.msra.mxu0 %v3945
        %4384 = vmatpush.msra.mxu0 %v3933
        %4385 = vmatpush.msra.mxu0 %v3921
        %4386 = vmatpush.msra.mxu0 %v3909
        %4387 = vmatpush.msra.mxu0 %v3897
        %4388 = vmatpush.msra.mxu0 %v3885
        %4389 = vmatpush.msra.mxu0 %v3873
        %4390 = vmatpush.msra.mxu0 %v3861
        %4391 = vmatpush.msra.mxu0 %v3849
        %4392 = vmatpush.msra.mxu0 %v3837
        %4393 = vmatmul.f32.gmra.mxu0 %v3827
        %v4394 = vpop.f32.mrf.mxu0
        %v4395 = vadd.f32 0.0, %v4394
        %4396 = vdwg.mxu0
        %4397 = vmatpush.msra.mxu0 0.0
        %4398 = vmatpush.msra.mxu0 0.0
        %4399 = vmatpush.msra.mxu0 0.0
        %4400 = vmatpush.msra.mxu0 0.0
        %4401 = vmatpush.msra.mxu0 0.0
        %4402 = vmatpush.msra.mxu0 0.0
        %4403 = vmatpush.msra.mxu0 0.0
        %4404 = vmatpush.msra.mxu0 0.0
        %4405 = vmatpush.msra.mxu0 0.0
        %4406 = vmatpush.msra.mxu0 0.0
        %4407 = vmatpush.msra.mxu0 0.0
        %4408 = vmatpush.msra.mxu0 0.0
        %4409 = vmatpush.msra.mxu0 0.0
        %4410 = vmatpush.msra.mxu0 %v4083
        %4411 = vmatpush.msra.mxu0 %v4041
        %4412 = vmatpush.msra.mxu0 %v4029
        %4413 = vmatmul.f32.gmra.mxu0 %v4059
        %v4414 = vpop.f32.mrf.mxu0
        %v4415 = vadd.f32 %v4395, %v4414
        %4416 = vdwg.mxu0
        %4417 = vmatpush.msra.mxu0 %v4018
        %4418 = vmatpush.msra.mxu0 %v4006
        %4419 = vmatpush.msra.mxu0 %v3994
        %4420 = vmatpush.msra.mxu0 %v3982
        %4421 = vmatpush.msra.mxu0 %v3970
        %4422 = vmatpush.msra.mxu0 %v3958
        %4423 = vmatpush.msra.mxu0 %v3946
        %4424 = vmatpush.msra.mxu0 %v3934
        %4425 = vmatpush.msra.mxu0 %v3922
        %4426 = vmatpush.msra.mxu0 %v3910
        %4427 = vmatpush.msra.mxu0 %v3898
        %4428 = vmatpush.msra.mxu0 %v3886
        %4429 = vmatpush.msra.mxu0 %v3874
        %4430 = vmatpush.msra.mxu0 %v3862
        %4431 = vmatpush.msra.mxu0 %v3850
        %4432 = vmatpush.msra.mxu0 %v3838
        %4433 = vmatmul.f32.gmra.mxu0 %v3827
        %v4434 = vpop.f32.mrf.mxu0
        %v4435 = vadd.f32 0.0, %v4434
        %4436 = vdwg.mxu0
        %4437 = vmatpush.msra.mxu0 0.0
        %4438 = vmatpush.msra.mxu0 0.0
        %4439 = vmatpush.msra.mxu0 0.0
        %4440 = vmatpush.msra.mxu0 0.0
        %4441 = vmatpush.msra.mxu0 0.0
        %4442 = vmatpush.msra.mxu0 0.0
        %4443 = vmatpush.msra.mxu0 0.0
        %4444 = vmatpush.msra.mxu0 0.0
        %4445 = vmatpush.msra.mxu0 0.0
        %4446 = vmatpush.msra.mxu0 0.0
        %4447 = vmatpush.msra.mxu0 0.0
        %4448 = vmatpush.msra.mxu0 0.0
        %4449 = vmatpush.msra.mxu0 0.0
        %4450 = vmatpush.msra.mxu0 %v4086
        %4451 = vmatpush.msra.mxu0 %v4042
        %4452 = vmatpush.msra.mxu0 %v4030
        %4453 = vmatmul.f32.gmra.mxu0 %v4059
        %v4454 = vpop.f32.mrf.mxu0
        %v4455 = vadd.f32 %v4435, %v4454
        %4456 = vdwg.mxu0
        %4457 = vmatpush.msra.mxu0 %v4019
        %4458 = vmatpush.msra.mxu0 %v4007
        %4459 = vmatpush.msra.mxu0 %v3995
        %4460 = vmatpush.msra.mxu0 %v3983
        %4461 = vmatpush.msra.mxu0 %v3971
        %4462 = vmatpush.msra.mxu0 %v3959
        %4463 = vmatpush.msra.mxu0 %v3947
        %4464 = vmatpush.msra.mxu0 %v3935
        %4465 = vmatpush.msra.mxu0 %v3923
        %4466 = vmatpush.msra.mxu0 %v3911
        %4467 = vmatpush.msra.mxu0 %v3899
        %4468 = vmatpush.msra.mxu0 %v3887
        %4469 = vmatpush.msra.mxu0 %v3875
        %4470 = vmatpush.msra.mxu0 %v3863
        %4471 = vmatpush.msra.mxu0 %v3851
        %4472 = vmatpush.msra.mxu0 %v3839
        %4473 = vmatmul.f32.gmra.mxu0 %v3827
        %v4474 = vpop.f32.mrf.mxu0
        %v4475 = vadd.f32 0.0, %v4474
        %4476 = vdwg.mxu0
        %4477 = vmatpush.msra.mxu0 0.0
        %4478 = vmatpush.msra.mxu0 0.0
        %4479 = vmatpush.msra.mxu0 0.0
        %4480 = vmatpush.msra.mxu0 0.0
        %4481 = vmatpush.msra.mxu0 0.0
        %4482 = vmatpush.msra.mxu0 0.0
        %4483 = vmatpush.msra.mxu0 0.0
        %4484 = vmatpush.msra.mxu0 0.0
        %4485 = vmatpush.msra.mxu0 0.0
        %4486 = vmatpush.msra.mxu0 0.0
        %4487 = vmatpush.msra.mxu0 0.0
        %4488 = vmatpush.msra.mxu0 0.0
        %4489 = vmatpush.msra.mxu0 0.0
        %4490 = vmatpush.msra.mxu0 %v4089
        %4491 = vmatpush.msra.mxu0 %v4043
        %4492 = vmatpush.msra.mxu0 %v4031
        %4493 = vmatmul.f32.gmra.mxu0 %v4059
        %v4494 = vpop.f32.mrf.mxu0
        %v4495 = vadd.f32 %v4475, %v4494
        %4496 = vdwg.mxu0
        %4497 = vmatpush.msra.mxu0 %v4020
        %4498 = vmatpush.msra.mxu0 %v4008
        %4499 = vmatpush.msra.mxu0 %v3996
        %4500 = vmatpush.msra.mxu0 %v3984
        %4501 = vmatpush.msra.mxu0 %v3972
        %4502 = vmatpush.msra.mxu0 %v3960
        %4503 = vmatpush.msra.mxu0 %v3948
        %4504 = vmatpush.msra.mxu0 %v3936
        %4505 = vmatpush.msra.mxu0 %v3924
        %4506 = vmatpush.msra.mxu0 %v3912
        %4507 = vmatpush.msra.mxu0 %v3900
        %4508 = vmatpush.msra.mxu0 %v3888
        %4509 = vmatpush.msra.mxu0 %v3876
        %4510 = vmatpush.msra.mxu0 %v3864
        %4511 = vmatpush.msra.mxu0 %v3852
        %4512 = vmatpush.msra.mxu0 %v3840
        %4513 = vmatmul.f32.gmra.mxu0 %v3827
        %v4514 = vpop.f32.mrf.mxu0
        %v4515 = vadd.f32 0.0, %v4514
        %4516 = vdwg.mxu0
        %4517 = vmatpush.msra.mxu0 0.0
        %4518 = vmatpush.msra.mxu0 0.0
        %4519 = vmatpush.msra.mxu0 0.0
        %4520 = vmatpush.msra.mxu0 0.0
        %4521 = vmatpush.msra.mxu0 0.0
        %4522 = vmatpush.msra.mxu0 0.0
        %4523 = vmatpush.msra.mxu0 0.0
        %4524 = vmatpush.msra.mxu0 0.0
        %4525 = vmatpush.msra.mxu0 0.0
        %4526 = vmatpush.msra.mxu0 0.0
        %4527 = vmatpush.msra.mxu0 0.0
        %4528 = vmatpush.msra.mxu0 0.0
        %4529 = vmatpush.msra.mxu0 0.0
        %4530 = vmatpush.msra.mxu0 %v4092
        %4531 = vmatpush.msra.mxu0 %v4044
        %4532 = vmatpush.msra.mxu0 %v4032
        %4533 = vmatmul.f32.gmra.mxu0 %v4059
        %v4534 = vpop.f32.mrf.mxu0
        %v4535 = vadd.f32 %v4515, %v4534
        %4536 = vdwg.mxu0
        %4537 = vmatpush.msra.mxu0 %v4021
        %4538 = vmatpush.msra.mxu0 %v4009
        %4539 = vmatpush.msra.mxu0 %v3997
        %4540 = vmatpush.msra.mxu0 %v3985
        %4541 = vmatpush.msra.mxu0 %v3973
        %4542 = vmatpush.msra.mxu0 %v3961
        %4543 = vmatpush.msra.mxu0 %v3949
        %4544 = vmatpush.msra.mxu0 %v3937
        %4545 = vmatpush.msra.mxu0 %v3925
        %4546 = vmatpush.msra.mxu0 %v3913
        %4547 = vmatpush.msra.mxu0 %v3901
        %4548 = vmatpush.msra.mxu0 %v3889
        %4549 = vmatpush.msra.mxu0 %v3877
        %4550 = vmatpush.msra.mxu0 %v3865
        %4551 = vmatpush.msra.mxu0 %v3853
        %4552 = vmatpush.msra.mxu0 %v3841
        %4553 = vmatmul.f32.gmra.mxu0 %v3827
        %v4554 = vpop.f32.mrf.mxu0
        %v4555 = vadd.f32 0.0, %v4554
        %4556 = vdwg.mxu0
        %4557 = vmatpush.msra.mxu0 0.0
        %4558 = vmatpush.msra.mxu0 0.0
        %4559 = vmatpush.msra.mxu0 0.0
        %4560 = vmatpush.msra.mxu0 0.0
        %4561 = vmatpush.msra.mxu0 0.0
        %4562 = vmatpush.msra.mxu0 0.0
        %4563 = vmatpush.msra.mxu0 0.0
        %4564 = vmatpush.msra.mxu0 0.0
        %4565 = vmatpush.msra.mxu0 0.0
        %4566 = vmatpush.msra.mxu0 0.0
        %4567 = vmatpush.msra.mxu0 0.0
        %4568 = vmatpush.msra.mxu0 0.0
        %4569 = vmatpush.msra.mxu0 0.0
        %4570 = vmatpush.msra.mxu0 %v4095
        %4571 = vmatpush.msra.mxu0 %v4045
        %4572 = vmatpush.msra.mxu0 %v4033
        %4573 = vmatmul.f32.gmra.mxu0 %v4059
        %v4574 = vpop.f32.mrf.mxu0
        %v4575 = vadd.f32 %v4555, %v4574
        %4576 = vdwg.mxu0
        %v4577 = vand.u32 2147483647, %v4135
        %v4578 = vand.u32 2147483647, %v4175
        %v4579 = vand.u32 2147483647, %v4215
        %v4580 = vand.u32 2147483647, %v4255
        %v4581 = vand.u32 2147483647, %v4295
        %v4582 = vand.u32 2147483647, %v4335
        %v4583 = vand.u32 2147483647, %v4375
        %v4584 = vand.u32 2147483647, %v4415
        %v4585 = vand.u32 2147483647, %v4455
        %v4586 = vand.u32 2147483647, %v4495
        %v4587 = vand.u32 2147483647, %v4535
        %v4588 = vand.u32 2147483647, %v4575
        %s4589 = scalar_lea.vmem %s2, 4512
        %v4590 = vld [vmem:[%s4589] sm:$0xff]
        %v4591 = vld [vmem:[%s4589 + $0x8] sm:$0xff]
        %v4592 = vld [vmem:[%s4589 + $0x10] sm:$0xff]
        %v4593 = vld [vmem:[%s4589 + $0x18] sm:$0xff]
        %v4594 = vld [vmem:[%s4589 + $0x20] sm:$0xff]
        %v4595 = vld [vmem:[%s4589 + $0x28] sm:$0xff]
        %v4596 = vld [vmem:[%s4589 + $0x30] sm:$0xff]
        %v4597 = vld [vmem:[%s4589 + $0x38] sm:$0xff]
        %v4598 = vld [vmem:[%s4589 + $0x40] sm:$0xff]
        %v4599 = vld [vmem:[%s4589 + $0x48] sm:$0xff]
        %v4600 = vld [vmem:[%s4589 + $0x50] sm:$0xff]
        %v4601 = vld [vmem:[%s4589 + $0x58] sm:$0xff]
        %v4602 = vld [vmem:[%s4589 + $0x60] sm:$0xff]
        %v4603 = vld [vmem:[%s4589 + $0x68] sm:$0xff]
        %v4604 = vld [vmem:[%s4589 + $0x70] sm:$0xff]
        %v4605 = vld [vmem:[%s4589 + $0x78] sm:$0xff]
        %v4606 = vld [vmem:[%s4589 + $0x80] sm:$0xff]
        %v4607 = vld [vmem:[%s4589 + $0x88] sm:$0xff]
        %v4608 = vld [vmem:[%s4589 + $0x90] sm:$0xff]
        %v4609 = vld [vmem:[%s4589 + $0x98] sm:$0xff]
        %v4610 = vld [vmem:[%s4589 + $0xa0] sm:$0xff]
        %v4611 = vld [vmem:[%s4589 + $0xa8] sm:$0xff]
        %v4612 = vld [vmem:[%s4589 + $0xb0] sm:$0xff]
        %v4613 = vld [vmem:[%s4589 + $0xb8] sm:$0xff]
        %v4614 = vld [vmem:[%s4589 + $0xc0] sm:$0xff]
        %v4615 = vld [vmem:[%s4589 + $0xc8] sm:$0xff]
        %v4616 = vld [vmem:[%s4589 + $0xd0] sm:$0xff]
        %v4617 = vld [vmem:[%s4589 + $0xd8] sm:$0xff]
        %v4618 = vld [vmem:[%s4589 + $0xe0] sm:$0xff]
        %v4619 = vld [vmem:[%s4589 + $0xe8] sm:$0xff]
        %v4620 = vld [vmem:[%s4589 + $0xf0] sm:$0xff]
        %v4621 = vld [vmem:[%s4589 + $0xf8] sm:$0xff]
        %v4622 = vld [vmem:[%s4589 + $0x100] sm:$0xff]
        %v4623 = vld [vmem:[%s4589 + $0x108] sm:$0xff]
        %v4624 = vld [vmem:[%s4589 + $0x110] sm:$0xff]
        %v4625 = vld [vmem:[%s4589 + $0x118] sm:$0xff]
        %v4626 = vld [vmem:[%s4589 + $0x120] sm:$0xff]
        %v4627 = vld [vmem:[%s4589 + $0x128] sm:$0xff]
        %v4628 = vld [vmem:[%s4589 + $0x130] sm:$0xff]
        %v4629 = vld [vmem:[%s4589 + $0x138] sm:$0xff]
        %v4630 = vld [vmem:[%s4589 + $0x140] sm:$0xff]
        %v4631 = vld [vmem:[%s4589 + $0x148] sm:$0xff]
        %v4632 = vld [vmem:[%s4589 + $0x150] sm:$0xff]
        %v4633 = vld [vmem:[%s4589 + $0x158] sm:$0xff]
        %v4634 = vld [vmem:[%s4589 + $0x160] sm:$0xff]
        %v4635 = vld [vmem:[%s4589 + $0x168] sm:$0xff]
        %v4636 = vld [vmem:[%s4589 + $0x170] sm:$0xff]
        %v4637 = vld [vmem:[%s4589 + $0x178] sm:$0xff]
        %v4638 = vld [vmem:[%s4589 + $0x180] sm:$0xff]
        %v4639 = vld [vmem:[%s4589 + $0x188] sm:$0xff]
        %v4640 = vld [vmem:[%s4589 + $0x190] sm:$0xff]
        %v4641 = vld [vmem:[%s4589 + $0x198] sm:$0xff]
        %v4642 = vld [vmem:[%s4589 + $0x1a0] sm:$0xff]
        %v4643 = vld [vmem:[%s4589 + $0x1a8] sm:$0xff]
        %v4644 = vld [vmem:[%s4589 + $0x1b0] sm:$0xff]
        %v4645 = vld [vmem:[%s4589 + $0x1b8] sm:$0xff]
        %v4646 = vld [vmem:[%s4589 + $0x1c0] sm:$0xff]
        %v4647 = vld [vmem:[%s4589 + $0x1c8] sm:$0xff]
        %v4648 = vld [vmem:[%s4589 + $0x1d0] sm:$0xff]
        %v4649 = vld [vmem:[%s4589 + $0x1d8] sm:$0xff]
        %v4650 = vld [vmem:[%s4589 + $0x1e0] sm:$0xff]
        %v4651 = vld [vmem:[%s4589 + $0x1e8] sm:$0xff]
        %v4652 = vld [vmem:[%s4589 + $0x1f0] sm:$0xff]
        %v4653 = vld [vmem:[%s4589 + $0x1f8] sm:$0xff]
        %v4654 = vld [vmem:[%s4589 + $0x200] sm:$0xff]
        %v4655 = vld [vmem:[%s4589 + $0x208] sm:$0xff]
        %v4656 = vld [vmem:[%s4589 + $0x210] sm:$0xff]
        %v4657 = vld [vmem:[%s4589 + $0x218] sm:$0xff]
        %v4658 = vld [vmem:[%s4589 + $0x220] sm:$0xff]
        %v4659 = vld [vmem:[%s4589 + $0x228] sm:$0xff]
        %v4660 = vld [vmem:[%s4589 + $0x230] sm:$0xff]
        %v4661 = vld [vmem:[%s4589 + $0x238] sm:$0xff]
        %v4662 = vld [vmem:[%s4589 + $0x240] sm:$0xff]
        %v4663 = vld [vmem:[%s4589 + $0x248] sm:$0xff]
        %v4664 = vld [vmem:[%s4589 + $0x250] sm:$0xff]
        %v4665 = vld [vmem:[%s4589 + $0x258] sm:$0xff]
        %v4666 = vld [vmem:[%s4589 + $0x260] sm:$0xff]
        %v4667 = vld [vmem:[%s4589 + $0x268] sm:$0xff]
        %v4668 = vld [vmem:[%s4589 + $0x270] sm:$0xff]
        %v4669 = vld [vmem:[%s4589 + $0x278] sm:$0xff]
        %v4670 = vld [vmem:[%s4589 + $0x280] sm:$0xff]
        %v4671 = vld [vmem:[%s4589 + $0x288] sm:$0xff]
        %v4672 = vld [vmem:[%s4589 + $0x290] sm:$0xff]
        %v4673 = vld [vmem:[%s4589 + $0x298] sm:$0xff]
        %v4674 = vld [vmem:[%s4589 + $0x2a0] sm:$0xff]
        %v4675 = vld [vmem:[%s4589 + $0x2a8] sm:$0xff]
        %v4676 = vld [vmem:[%s4589 + $0x2b0] sm:$0xff]
        %v4677 = vld [vmem:[%s4589 + $0x2b8] sm:$0xff]
        %v4678 = vld [vmem:[%s4589 + $0x2c0] sm:$0xff]
        %v4679 = vld [vmem:[%s4589 + $0x2c8] sm:$0xff]
        %v4680 = vld [vmem:[%s4589 + $0x2d0] sm:$0xff]
        %v4681 = vld [vmem:[%s4589 + $0x2d8] sm:$0xff]
        %v4682 = vld [vmem:[%s4589 + $0x2e0] sm:$0xff]
        %v4683 = vld [vmem:[%s4589 + $0x2e8] sm:$0xff]
        %v4684 = vld [vmem:[%s4589 + $0x2f0] sm:$0xff]
        %v4685 = vld [vmem:[%s4589 + $0x2f8] sm:$0xff]
        %v4686 = vld [vmem:[%s4589 + $0x300] sm:$0xff]
        %v4687 = vld [vmem:[%s4589 + $0x308] sm:$0xff]
        %v4688 = vld [vmem:[%s4589 + $0x310] sm:$0xff]
        %v4689 = vld [vmem:[%s4589 + $0x318] sm:$0xff]
        %v4690 = vld [vmem:[%s4589 + $0x320] sm:$0xff]
        %v4691 = vld [vmem:[%s4589 + $0x328] sm:$0xff]
        %v4692 = vld [vmem:[%s4589 + $0x330] sm:$0xff]
        %v4693 = vld [vmem:[%s4589 + $0x338] sm:$0xff]
        %v4694 = vld [vmem:[%s4589 + $0x340] sm:$0xff]
        %v4695 = vld [vmem:[%s4589 + $0x348] sm:$0xff]
        %v4696 = vld [vmem:[%s4589 + $0x350] sm:$0xff]
        %v4697 = vld [vmem:[%s4589 + $0x358] sm:$0xff]
        %v4698 = vld [vmem:[%s4589 + $0x360] sm:$0xff]
        %v4699 = vld [vmem:[%s4589 + $0x368] sm:$0xff]
        %v4700 = vld [vmem:[%s4589 + $0x370] sm:$0xff]
        %v4701 = vld [vmem:[%s4589 + $0x378] sm:$0xff]
        %v4702 = vld [vmem:[%s4589 + $0x380] sm:$0xff]
        %v4703 = vld [vmem:[%s4589 + $0x388] sm:$0xff]
        %v4704 = vld [vmem:[%s4589 + $0x390] sm:$0xff]
        %v4705 = vld [vmem:[%s4589 + $0x398] sm:$0xff]
        %v4706 = vld [vmem:[%s4589 + $0x3a0] sm:$0xff]
        %v4707 = vld [vmem:[%s4589 + $0x3a8] sm:$0xff]
        %v4708 = vld [vmem:[%s4589 + $0x3b0] sm:$0xff]
        %v4709 = vld [vmem:[%s4589 + $0x3b8] sm:$0xff]
        %v4710 = vld [vmem:[%s4589 + $0x3c0] sm:$0xff]
        %v4711 = vld [vmem:[%s4589 + $0x3c8] sm:$0xff]
        %v4712 = vld [vmem:[%s4589 + $0x3d0] sm:$0xff]
        %v4713 = vld [vmem:[%s4589 + $0x3d8] sm:$0xff]
        %v4714 = vld [vmem:[%s4589 + $0x3e0] sm:$0xff]
        %v4715 = vld [vmem:[%s4589 + $0x3e8] sm:$0xff]
        %v4716 = vld [vmem:[%s4589 + $0x3f0] sm:$0xff]
        %v4717 = vld [vmem:[%s4589 + $0x3f8] sm:$0xff]
        %v4718 = vld [vmem:[%s4589 + $0x400] sm:$0xff]
        %v4719 = vld [vmem:[%s4589 + $0x408] sm:$0xff]
        %v4720 = vld [vmem:[%s4589 + $0x410] sm:$0xff]
        %v4721 = vld [vmem:[%s4589 + $0x418] sm:$0xff]
        %v4722 = vld [vmem:[%s4589 + $0x420] sm:$0xff]
        %v4723 = vld [vmem:[%s4589 + $0x428] sm:$0xff]
        %v4724 = vld [vmem:[%s4589 + $0x430] sm:$0xff]
        %v4725 = vld [vmem:[%s4589 + $0x438] sm:$0xff]
        %v4726 = vld [vmem:[%s4589 + $0x440] sm:$0xff]
        %v4727 = vld [vmem:[%s4589 + $0x448] sm:$0xff]
        %v4728 = vld [vmem:[%s4589 + $0x450] sm:$0xff]
        %v4729 = vld [vmem:[%s4589 + $0x458] sm:$0xff]
        %v4730 = vld [vmem:[%s4589 + $0x460] sm:$0xff]
        %v4731 = vld [vmem:[%s4589 + $0x468] sm:$0xff]
        %v4732 = vld [vmem:[%s4589 + $0x470] sm:$0xff]
        %v4733 = vld [vmem:[%s4589 + $0x478] sm:$0xff]
        %v4734 = vld [vmem:[%s4589 + $0x480] sm:$0xff]
        %v4735 = vld [vmem:[%s4589 + $0x488] sm:$0xff]
        %v4736 = vld [vmem:[%s4589 + $0x490] sm:$0xff]
        %v4737 = vld [vmem:[%s4589 + $0x498] sm:$0xff]
        %v4738 = vld [vmem:[%s4589 + $0x4a0] sm:$0xff]
        %v4739 = vld [vmem:[%s4589 + $0x4a8] sm:$0xff]
        %v4740 = vld [vmem:[%s4589 + $0x4b0] sm:$0xff]
        %v4741 = vld [vmem:[%s4589 + $0x4b8] sm:$0xff]
        %v4742 = vld [vmem:[%s4589 + $0x4c0] sm:$0xff]
        %v4743 = vld [vmem:[%s4589 + $0x4c8] sm:$0xff]
        %v4744 = vld [vmem:[%s4589 + $0x4d0] sm:$0xff]
        %v4745 = vld [vmem:[%s4589 + $0x4d8] sm:$0xff]
        %v4746 = vld [vmem:[%s4589 + $0x4e0] sm:$0xff]
        %v4747 = vld [vmem:[%s4589 + $0x4e8] sm:$0xff]
        %v4748 = vld [vmem:[%s4589 + $0x4f0] sm:$0xff]
        %v4749 = vld [vmem:[%s4589 + $0x4f8] sm:$0xff]
        %v4750 = vld [vmem:[%s4589 + $0x500] sm:$0xff]
        %v4751 = vld [vmem:[%s4589 + $0x508] sm:$0xff]
        %v4752 = vld [vmem:[%s4589 + $0x510] sm:$0xff]
        %v4753 = vld [vmem:[%s4589 + $0x518] sm:$0xff]
        %v4754 = vld [vmem:[%s4589 + $0x520] sm:$0xff]
        %v4755 = vld [vmem:[%s4589 + $0x528] sm:$0xff]
        %v4756 = vld [vmem:[%s4589 + $0x530] sm:$0xff]
        %v4757 = vld [vmem:[%s4589 + $0x538] sm:$0xff]
        %v4758 = vld [vmem:[%s4589 + $0x540] sm:$0xff]
        %v4759 = vld [vmem:[%s4589 + $0x548] sm:$0xff]
        %v4760 = vld [vmem:[%s4589 + $0x550] sm:$0xff]
        %v4761 = vld [vmem:[%s4589 + $0x558] sm:$0xff]
        %v4762 = vld [vmem:[%s4589 + $0x560] sm:$0xff]
        %v4763 = vld [vmem:[%s4589 + $0x568] sm:$0xff]
        %v4764 = vld [vmem:[%s4589 + $0x570] sm:$0xff]
        %v4765 = vld [vmem:[%s4589 + $0x578] sm:$0xff]
        %v4766 = vld [vmem:[%s4589 + $0x580] sm:$0xff]
        %v4767 = vld [vmem:[%s4589 + $0x588] sm:$0xff]
        %v4768 = vld [vmem:[%s4589 + $0x590] sm:$0xff]
        %v4769 = vld [vmem:[%s4589 + $0x598] sm:$0xff]
        %v4770 = vld [vmem:[%s4589 + $0x5a0] sm:$0xff]
        %v4771 = vld [vmem:[%s4589 + $0x5a8] sm:$0xff]
        %v4772 = vld [vmem:[%s4589 + $0x5b0] sm:$0xff]
        %v4773 = vld [vmem:[%s4589 + $0x5b8] sm:$0xff]
        %v4774 = vld [vmem:[%s4589 + $0x5c0] sm:$0xff]
        %v4775 = vld [vmem:[%s4589 + $0x5c8] sm:$0xff]
        %v4776 = vld [vmem:[%s4589 + $0x5d0] sm:$0xff]
        %v4777 = vld [vmem:[%s4589 + $0x5d8] sm:$0xf]
        %v4779 = vsel %vm2133, %v4588, 0
        %v4782 = vsel %vm2137, %v4777, 0
        %4784 = vmatpush.msra.mxu0 %v4605
        %4785 = vmatpush.msra.mxu0 %v4604
        %4786 = vmatpush.msra.mxu0 %v4603
        %4787 = vmatpush.msra.mxu0 %v4602
        %4788 = vmatpush.msra.mxu0 %v4601
        %4789 = vmatpush.msra.mxu0 %v4600
        %4790 = vmatpush.msra.mxu0 %v4599
        %4791 = vmatpush.msra.mxu0 %v4598
        %4792 = vmatpush.msra.mxu0 %v4597
        %4793 = vmatpush.msra.mxu0 %v4596
        %4794 = vmatpush.msra.mxu0 %v4595
        %4795 = vmatpush.msra.mxu0 %v4594
        %4796 = vmatpush.msra.mxu0 %v4593
        %4797 = vmatpush.msra.mxu0 %v4592
        %4798 = vmatpush.msra.mxu0 %v4591
        %4799 = vmatpush.msra.mxu0 %v4590
        %4800 = vmatmul.f32.gmra.mxu0 %v4577
        %v4801 = vpop.f32.mrf.mxu0
        %v4802 = vadd.f32 0.0, %v4801
        %4803 = vdwg.mxu0
        %4804 = vmatpush.msra.mxu0 %v4621
        %4805 = vmatpush.msra.mxu0 %v4620
        %4806 = vmatpush.msra.mxu0 %v4619
        %4807 = vmatpush.msra.mxu0 %v4618
        %4808 = vmatpush.msra.mxu0 %v4617
        %4809 = vmatpush.msra.mxu0 %v4616
        %4810 = vmatpush.msra.mxu0 %v4615
        %4811 = vmatpush.msra.mxu0 %v4614
        %4812 = vmatpush.msra.mxu0 %v4613
        %4813 = vmatpush.msra.mxu0 %v4612
        %4814 = vmatpush.msra.mxu0 %v4611
        %4815 = vmatpush.msra.mxu0 %v4610
        %4816 = vmatpush.msra.mxu0 %v4609
        %4817 = vmatpush.msra.mxu0 %v4608
        %4818 = vmatpush.msra.mxu0 %v4607
        %4819 = vmatpush.msra.mxu0 %v4606
        %4820 = vmatmul.f32.gmra.mxu0 %v4578
        %v4821 = vpop.f32.mrf.mxu0
        %v4822 = vadd.f32 %v4802, %v4821
        %4823 = vdwg.mxu0
        %4824 = vmatpush.msra.mxu0 %v4637
        %4825 = vmatpush.msra.mxu0 %v4636
        %4826 = vmatpush.msra.mxu0 %v4635
        %4827 = vmatpush.msra.mxu0 %v4634
        %4828 = vmatpush.msra.mxu0 %v4633
        %4829 = vmatpush.msra.mxu0 %v4632
        %4830 = vmatpush.msra.mxu0 %v4631
        %4831 = vmatpush.msra.mxu0 %v4630
        %4832 = vmatpush.msra.mxu0 %v4629
        %4833 = vmatpush.msra.mxu0 %v4628
        %4834 = vmatpush.msra.mxu0 %v4627
        %4835 = vmatpush.msra.mxu0 %v4626
        %4836 = vmatpush.msra.mxu0 %v4625
        %4837 = vmatpush.msra.mxu0 %v4624
        %4838 = vmatpush.msra.mxu0 %v4623
        %4839 = vmatpush.msra.mxu0 %v4622
        %4840 = vmatmul.f32.gmra.mxu0 %v4579
        %v4841 = vpop.f32.mrf.mxu0
        %v4842 = vadd.f32 %v4822, %v4841
        %4843 = vdwg.mxu0
        %4844 = vmatpush.msra.mxu0 %v4653
        %4845 = vmatpush.msra.mxu0 %v4652
        %4846 = vmatpush.msra.mxu0 %v4651
        %4847 = vmatpush.msra.mxu0 %v4650
        %4848 = vmatpush.msra.mxu0 %v4649
        %4849 = vmatpush.msra.mxu0 %v4648
        %4850 = vmatpush.msra.mxu0 %v4647
        %4851 = vmatpush.msra.mxu0 %v4646
        %4852 = vmatpush.msra.mxu0 %v4645
        %4853 = vmatpush.msra.mxu0 %v4644
        %4854 = vmatpush.msra.mxu0 %v4643
        %4855 = vmatpush.msra.mxu0 %v4642
        %4856 = vmatpush.msra.mxu0 %v4641
        %4857 = vmatpush.msra.mxu0 %v4640
        %4858 = vmatpush.msra.mxu0 %v4639
        %4859 = vmatpush.msra.mxu0 %v4638
        %4860 = vmatmul.f32.gmra.mxu0 %v4580
        %v4861 = vpop.f32.mrf.mxu0
        %v4862 = vadd.f32 %v4842, %v4861
        %4863 = vdwg.mxu0
        %4864 = vmatpush.msra.mxu0 %v4669
        %4865 = vmatpush.msra.mxu0 %v4668
        %4866 = vmatpush.msra.mxu0 %v4667
        %4867 = vmatpush.msra.mxu0 %v4666
        %4868 = vmatpush.msra.mxu0 %v4665
        %4869 = vmatpush.msra.mxu0 %v4664
        %4870 = vmatpush.msra.mxu0 %v4663
        %4871 = vmatpush.msra.mxu0 %v4662
        %4872 = vmatpush.msra.mxu0 %v4661
        %4873 = vmatpush.msra.mxu0 %v4660
        %4874 = vmatpush.msra.mxu0 %v4659
        %4875 = vmatpush.msra.mxu0 %v4658
        %4876 = vmatpush.msra.mxu0 %v4657
        %4877 = vmatpush.msra.mxu0 %v4656
        %4878 = vmatpush.msra.mxu0 %v4655
        %4879 = vmatpush.msra.mxu0 %v4654
        %4880 = vmatmul.f32.gmra.mxu0 %v4581
        %v4881 = vpop.f32.mrf.mxu0
        %v4882 = vadd.f32 %v4862, %v4881
        %4883 = vdwg.mxu0
        %4884 = vmatpush.msra.mxu0 %v4685
        %4885 = vmatpush.msra.mxu0 %v4684
        %4886 = vmatpush.msra.mxu0 %v4683
        %4887 = vmatpush.msra.mxu0 %v4682
        %4888 = vmatpush.msra.mxu0 %v4681
        %4889 = vmatpush.msra.mxu0 %v4680
        %4890 = vmatpush.msra.mxu0 %v4679
        %4891 = vmatpush.msra.mxu0 %v4678
        %4892 = vmatpush.msra.mxu0 %v4677
        %4893 = vmatpush.msra.mxu0 %v4676
        %4894 = vmatpush.msra.mxu0 %v4675
        %4895 = vmatpush.msra.mxu0 %v4674
        %4896 = vmatpush.msra.mxu0 %v4673
        %4897 = vmatpush.msra.mxu0 %v4672
        %4898 = vmatpush.msra.mxu0 %v4671
        %4899 = vmatpush.msra.mxu0 %v4670
        %4900 = vmatmul.f32.gmra.mxu0 %v4582
        %v4901 = vpop.f32.mrf.mxu0
        %v4902 = vadd.f32 %v4882, %v4901
        %4903 = vdwg.mxu0
        %4904 = vmatpush.msra.mxu0 %v4701
        %4905 = vmatpush.msra.mxu0 %v4700
        %4906 = vmatpush.msra.mxu0 %v4699
        %4907 = vmatpush.msra.mxu0 %v4698
        %4908 = vmatpush.msra.mxu0 %v4697
        %4909 = vmatpush.msra.mxu0 %v4696
        %4910 = vmatpush.msra.mxu0 %v4695
        %4911 = vmatpush.msra.mxu0 %v4694
        %4912 = vmatpush.msra.mxu0 %v4693
        %4913 = vmatpush.msra.mxu0 %v4692
        %4914 = vmatpush.msra.mxu0 %v4691
        %4915 = vmatpush.msra.mxu0 %v4690
        %4916 = vmatpush.msra.mxu0 %v4689
        %4917 = vmatpush.msra.mxu0 %v4688
        %4918 = vmatpush.msra.mxu0 %v4687
        %4919 = vmatpush.msra.mxu0 %v4686
        %4920 = vmatmul.f32.gmra.mxu0 %v4583
        %v4921 = vpop.f32.mrf.mxu0
        %v4922 = vadd.f32 %v4902, %v4921
        %4923 = vdwg.mxu0
        %4924 = vmatpush.msra.mxu0 %v4717
        %4925 = vmatpush.msra.mxu0 %v4716
        %4926 = vmatpush.msra.mxu0 %v4715
        %4927 = vmatpush.msra.mxu0 %v4714
        %4928 = vmatpush.msra.mxu0 %v4713
        %4929 = vmatpush.msra.mxu0 %v4712
        %4930 = vmatpush.msra.mxu0 %v4711
        %4931 = vmatpush.msra.mxu0 %v4710
        %4932 = vmatpush.msra.mxu0 %v4709
        %4933 = vmatpush.msra.mxu0 %v4708
        %4934 = vmatpush.msra.mxu0 %v4707
        %4935 = vmatpush.msra.mxu0 %v4706
        %4936 = vmatpush.msra.mxu0 %v4705
        %4937 = vmatpush.msra.mxu0 %v4704
        %4938 = vmatpush.msra.mxu0 %v4703
        %4939 = vmatpush.msra.mxu0 %v4702
        %4940 = vmatmul.f32.gmra.mxu0 %v4584
        %v4941 = vpop.f32.mrf.mxu0
        %v4942 = vadd.f32 %v4922, %v4941
        %4943 = vdwg.mxu0
        %4944 = vmatpush.msra.mxu0 %v4733
        %4945 = vmatpush.msra.mxu0 %v4732
        %4946 = vmatpush.msra.mxu0 %v4731
        %4947 = vmatpush.msra.mxu0 %v4730
        %4948 = vmatpush.msra.mxu0 %v4729
        %4949 = vmatpush.msra.mxu0 %v4728
        %4950 = vmatpush.msra.mxu0 %v4727
        %4951 = vmatpush.msra.mxu0 %v4726
        %4952 = vmatpush.msra.mxu0 %v4725
        %4953 = vmatpush.msra.mxu0 %v4724
        %4954 = vmatpush.msra.mxu0 %v4723
        %4955 = vmatpush.msra.mxu0 %v4722
        %4956 = vmatpush.msra.mxu0 %v4721
        %4957 = vmatpush.msra.mxu0 %v4720
        %4958 = vmatpush.msra.mxu0 %v4719
        %4959 = vmatpush.msra.mxu0 %v4718
        %4960 = vmatmul.f32.gmra.mxu0 %v4585
        %v4961 = vpop.f32.mrf.mxu0
        %v4962 = vadd.f32 %v4942, %v4961
        %4963 = vdwg.mxu0
        %4964 = vmatpush.msra.mxu0 %v4749
        %4965 = vmatpush.msra.mxu0 %v4748
        %4966 = vmatpush.msra.mxu0 %v4747
        %4967 = vmatpush.msra.mxu0 %v4746
        %4968 = vmatpush.msra.mxu0 %v4745
        %4969 = vmatpush.msra.mxu0 %v4744
        %4970 = vmatpush.msra.mxu0 %v4743
        %4971 = vmatpush.msra.mxu0 %v4742
        %4972 = vmatpush.msra.mxu0 %v4741
        %4973 = vmatpush.msra.mxu0 %v4740
        %4974 = vmatpush.msra.mxu0 %v4739
        %4975 = vmatpush.msra.mxu0 %v4738
        %4976 = vmatpush.msra.mxu0 %v4737
        %4977 = vmatpush.msra.mxu0 %v4736
        %4978 = vmatpush.msra.mxu0 %v4735
        %4979 = vmatpush.msra.mxu0 %v4734
        %4980 = vmatmul.f32.gmra.mxu0 %v4586
        %v4981 = vpop.f32.mrf.mxu0
        %v4982 = vadd.f32 %v4962, %v4981
        %4983 = vdwg.mxu0
        %4984 = vmatpush.msra.mxu0 %v4765
        %4985 = vmatpush.msra.mxu0 %v4764
        %4986 = vmatpush.msra.mxu0 %v4763
        %4987 = vmatpush.msra.mxu0 %v4762
        %4988 = vmatpush.msra.mxu0 %v4761
        %4989 = vmatpush.msra.mxu0 %v4760
        %4990 = vmatpush.msra.mxu0 %v4759
        %4991 = vmatpush.msra.mxu0 %v4758
        %4992 = vmatpush.msra.mxu0 %v4757
        %4993 = vmatpush.msra.mxu0 %v4756
        %4994 = vmatpush.msra.mxu0 %v4755
        %4995 = vmatpush.msra.mxu0 %v4754
        %4996 = vmatpush.msra.mxu0 %v4753
        %4997 = vmatpush.msra.mxu0 %v4752
        %4998 = vmatpush.msra.mxu0 %v4751
        %4999 = vmatpush.msra.mxu0 %v4750
        %5000 = vmatmul.f32.gmra.mxu0 %v4587
        %v5001 = vpop.f32.mrf.mxu0
        %v5002 = vadd.f32 %v4982, %v5001
        %5003 = vdwg.mxu0
        %5004 = vmatpush.msra.mxu0 0.0
        %5005 = vmatpush.msra.mxu0 0.0
        %5006 = vmatpush.msra.mxu0 0.0
        %5007 = vmatpush.msra.mxu0 0.0
        %5008 = vmatpush.msra.mxu0 %v4782
        %5009 = vmatpush.msra.mxu0 %v4776
        %5010 = vmatpush.msra.mxu0 %v4775
        %5011 = vmatpush.msra.mxu0 %v4774
        %5012 = vmatpush.msra.mxu0 %v4773
        %5013 = vmatpush.msra.mxu0 %v4772
        %5014 = vmatpush.msra.mxu0 %v4771
        %5015 = vmatpush.msra.mxu0 %v4770
        %5016 = vmatpush.msra.mxu0 %v4769
        %5017 = vmatpush.msra.mxu0 %v4768
        %5018 = vmatpush.msra.mxu0 %v4767
        %5019 = vmatpush.msra.mxu0 %v4766
        %5020 = vmatmul.f32.gmra.mxu0 %v4779
        %v5021 = vpop.f32.mrf.mxu0
        %v5022 = vadd.f32 %v5002, %v5021
        %5023 = vdwg.mxu0
        %v5024 = vadd.f32 %v3825, %v5022
        %v5025 = vld [vmem:[%s3] sm:$0x1]
        %v5027 = vperm.slane %v5025, 0
        %v5029 = vadd.f32 %v5024, %v5027
        %vm5030 = vcmask 23552
        %5031 = vst.msk [vmem:[%s229] sm:$0xff] %vm5030, %v5029
        %p5032 = scmp.lt.s32.totalorder %s15, 1
        %s5033 = scalar_select %p5032, %s15, 1
        %s5034 = smul.addr %s5033, 8
        %s5035 = scalar_lea.vmem %s4, %s5034
        // Predicated region
        $region60: #{tpu_custom_call.1} parent=54 // pred_check
          %p5036 = pneg %p122
        $region61: #{tpu_custom_call.1} parent=54 // pred_check_branch
          %5038 = sbr.rel (%p5036) target = $region63
        $region62: #{tpu_custom_call.1} parent=54 // pred_region
          _
        $region63: #{tpu_custom_call.1} parent=54 // pred_fallthru
          _
      $region55: #{tpu_custom_call.1} parent=5 // pred_fallthru
        _
      %p5039 = scmp.le.s32.totalorder 2, %s10
      // Predicated region
      $region64: #{tpu_custom_call.1} parent=5 // pred_check
        %p5040 = pneg %p5039
      $region65: #{tpu_custom_call.1} parent=5 // pred_check_branch
        %5042 = sbr.rel (%p5040) target = $region67
      $region66: #{tpu_custom_call.1} parent=5 // pred_region
        %s5043 = ssub.s32 %s10, 2
        // Predicated region
        $region68: #{tpu_custom_call.1} parent=66 // pred_check
          %p5044 = pneg %p128
        $region69: #{tpu_custom_call.1} parent=66 // pred_check_branch
          %5046 = sbr.rel (%p5044) target = $region71
        $region70: #{tpu_custom_call.1} parent=66 // pred_region
          %p5047 = scmp.lt.s32.totalorder %s16, 1
          %s5048 = scalar_select %p5047, %s16, 1
          %s5049 = smul.addr %s5048, 8
          %s5050 = scalar_lea.vmem %s4, %s5049
        $region71: #{tpu_custom_call.1} parent=66 // pred_fallthru
          _
      $region67: #{tpu_custom_call.1} parent=5 // pred_fallthru
        _
    $region6: #{tpu_custom_call.1} parent=1 // loop_footer
      %s14 = sadd.s32 1, %s10
    $region7: #{tpu_custom_call.1} parent=1 // loop_footer_branch
      %9 = sbr.rel target = $region3
    $region8: #{tpu_custom_call.1} parent=1 // loop_exit
      _

</llo_original>
